<compile_context>
chip_gen: v6e
topology: v6e:2x2x1
jax: 0.10.0
libtpu: 0.0.40
codegen_flags: <defaults>
</compile_context>

<pallas_src>
import functools

import jax
import jax.numpy as jnp
from jax.experimental import pallas as pl
from jax.experimental.pallas import tpu as pltpu

BN_EPS = 1e-5
LANE = 128

# A_hat (bf16) of this padded size (<= 8 MiB) is held fully resident in VMEM and all
# layers run in a single pallas_call.
_SMALL_FUSE_MAX_NP = 2048
# Budget for the one-pass (tk == n_p) variant's per-step working set; conservative so a
# plan derived here also fits v7x's 64 MiB physical VMEM with headroom.
_ONEPASS_VMEM_BUDGET = 40 * 1024 * 1024


def _round_up(x, m):
    return ((x + m - 1) // m) * m


def _pad2(x, rows, cols):
    r, c = x.shape
    if r == rows and c == cols:
        return x
    return jnp.pad(x, ((0, rows - r), (0, cols - c)))


def _vmem_limit(est_bytes):
    # Raise the scoped-VMEM limit above the estimated working set, but stay well under
    # the smallest physical VMEM across generations (v7x: 64 MiB).
    return int(min(max(2 * est_bytes, 32 * 1024 * 1024), 56 * 1024 * 1024))


# ---------------------------------------------------------------------------
# In-kernel epilogues
# ---------------------------------------------------------------------------
def _masked_log_softmax(h, num_classes):
    col = jax.lax.broadcasted_iota(jnp.int32, h.shape, 1)
    valid = col < num_classes
    h = jnp.where(valid, h, -jnp.inf)          # mask padded class columns
    m = jnp.max(h, axis=-1, keepdims=True)
    s = h - m
    e = jnp.where(valid, jnp.exp(s), 0.0)
    return s - jnp.log(jnp.sum(e, axis=-1, keepdims=True))


def _store_hidden(h, o_ref):
    o_ref[...] = jnp.maximum(h, 0.0).astype(o_ref.dtype)


def _store_logsoftmax(h, o_ref, num_classes):
    o_ref[...] = _masked_log_softmax(h, num_classes).astype(o_ref.dtype)


# ---------------------------------------------------------------------------
# Kernel 1: all layers fused, everything resident in VMEM (tiny-N regime)
# ---------------------------------------------------------------------------
def _fused_all_layers_kernel(*refs, num_layers, num_classes):
    x_ref, a_ref = refs[0], refs[1]
    o_ref = refs[2 + 2 * num_layers]
    h = x_ref[...]                                   # (n_p, f_in_p) bf16
    for i in range(num_layers):
        w_ref = refs[2 + 2 * i]
        b_ref = refs[3 + 2 * i]
        xw = jnp.dot(h, w_ref[...],
                     preferred_element_type=jnp.float32).astype(jnp.bfloat16)
        z = jnp.dot(a_ref[...], xw,
                    preferred_element_type=jnp.float32) + b_ref[...]
        if i < num_layers - 1:
            h = jnp.maximum(z, 0.0).astype(jnp.bfloat16)   # eval-mode dropout = identity
        else:
            _store_logsoftmax(z, o_ref, num_classes)


# ---------------------------------------------------------------------------
# Kernel 2: one fused GCN layer, one-pass rows (tk == n_p, X/W resident, no scratch)
# ---------------------------------------------------------------------------
def _layer_onepass_kernel(a_ref, x_ref, w_ref, b_ref, o_ref, *, num_classes, last_layer):
    xw = jnp.dot(x_ref[...], w_ref[...],
                 preferred_element_type=jnp.float32).astype(jnp.bfloat16)
    h = jnp.dot(a_ref[...], xw, preferred_element_type=jnp.float32) + b_ref[...]
    if last_layer:
        _store_logsoftmax(h, o_ref, num_classes)
    else:
        _store_hidden(h, o_ref)


# ---------------------------------------------------------------------------
# Kernel 3: one fused GCN layer, K-tiled streaming of A_hat (huge-graph fallback)
# ---------------------------------------------------------------------------
def _layer_ktiled_kernel(a_ref, x_ref, w_ref, b_ref, o_ref, acc_ref,
                         *, num_classes, last_layer):
    k = pl.program_id(1)

    @pl.when(k == 0)
    def _():
        acc_ref[...] = jnp.zeros_like(acc_ref)

    xw = jnp.dot(x_ref[...], w_ref[...],
                 preferred_element_type=jnp.float32).astype(jnp.bfloat16)
    acc_ref[...] += jnp.dot(a_ref[...], xw, preferred_element_type=jnp.float32)

    @pl.when(k == pl.num_programs(1) - 1)
    def _():
        h = acc_ref[...] + b_ref[...]
        if last_layer:
            _store_logsoftmax(h, o_ref, num_classes)
        else:
            _store_hidden(h, o_ref)


# ---------------------------------------------------------------------------
# Per-layer dispatch (tiled path)
# ---------------------------------------------------------------------------
def _gcn_layer(a_p, x_p, w_p, b_p, *, tm, max_tk, last_layer, num_classes):
    n_p = a_p.shape[0]
    f_in_p, f_out_p = w_p.shape
    out_dtype = jnp.float32 if last_layer else jnp.bfloat16
    out_bytes = jnp.dtype(out_dtype).itemsize
    transcend = n_p * f_out_p if last_layer else 0

    # --- one-pass (tk == n_p): A row band streamed once, X/W resident ---------------
    onepass_vmem = (2 * tm * n_p * 2            # double-buffered A row band (bf16)
                    + 2 * n_p * f_in_p * 2      # resident X (bf16)
                    + 2 * f_in_p * f_out_p * 2  # resident W (bf16)
                    + 2 * tm * f_out_p * out_bytes
                    + tm * f_out_p * 4)
    use_onepass = (onepass_vmem <= _ONEPASS_VMEM_BUDGET
                   and (max_tk is None or max_tk >= n_p))

    if use_onepass:
        flops = 2 * (n_p // tm) * n_p * f_in_p * f_out_p + 2 * n_p * n_p * f_out_p
        bytes_acc = (2 * n_p * n_p + 2 * n_p * f_in_p + 2 * f_in_p * f_out_p
                     + 4 * f_out_p + out_bytes * n_p * f_out_p)
        return pl.pallas_call(
            functools.partial(_layer_onepass_kernel,
                              num_classes=num_classes, last_layer=last_layer),
            out_shape=jax.ShapeDtypeStruct((n_p, f_out_p), out_dtype),
            grid=(n_p // tm,),
            in_specs=[
                pl.BlockSpec((tm, n_p), lambda i: (i, 0)),        # A_hat row band
                pl.BlockSpec((n_p, f_in_p), lambda i: (0, 0)),    # X resident
                pl.BlockSpec((f_in_p, f_out_p), lambda i: (0, 0)),
                pl.BlockSpec((1, f_out_p), lambda i: (0, 0)),
            ],
            out_specs=pl.BlockSpec((tm, f_out_p), lambda i: (i, 0)),
            compiler_params=pltpu.CompilerParams(
                dimension_semantics=("parallel",),
                vmem_limit_bytes=_vmem_limit(onepass_vmem)),
            cost_estimate=pl.CostEstimate(flops=flops, transcendentals=transcend,
                                          bytes_accessed=bytes_acc),
        )(a_p, x_p, w_p, b_p)

    # --- K-tiled fallback: stream A_hat in (tm, tk) tiles, f32 VMEM accumulator ------
    tk = max(LANE, min(max_tk if max_tk is not None else tm, tm))
    while tm % tk:                       # tk must divide tm (and hence n_p)
        tk -= LANE
    ktiled_vmem = (2 * tm * tk * 2 + 2 * tk * f_in_p * 2 + 2 * f_in_p * f_out_p * 2
                   + 2 * tm * f_out_p * out_bytes + tm * f_out_p * 4)
    flops = 2 * (n_p // tm) * n_p * f_in_p * f_out_p + 2 * n_p * n_p * f_out_p
    bytes_acc = (2 * n_p * n_p
                 + (n_p // tm) * n_p * f_in_p * 2      # X re-stream per row tile
                 + 2 * f_in_p * f_out_p + 4 * f_out_p
                 + out_bytes * n_p * f_out_p)
    return pl.pallas_call(
        functools.partial(_layer_ktiled_kernel,
                          num_classes=num_classes, last_layer=last_layer),
        out_shape=jax.ShapeDtypeStruct((n_p, f_out_p), out_dtype),
        grid=(n_p // tm, n_p // tk),
        in_specs=[
            pl.BlockSpec((tm, tk), lambda i, k: (i, k)),          # A_hat tile
            pl.BlockSpec((tk, f_in_p), lambda i, k: (k, 0)),      # X K-tile
            pl.BlockSpec((f_in_p, f_out_p), lambda i, k: (0, 0)),  # W resident
            pl.BlockSpec((1, f_out_p), lambda i, k: (0, 0)),       # folded bias
        ],
        out_specs=pl.BlockSpec((tm, f_out_p), lambda i, k: (i, 0)),
        scratch_shapes=[pltpu.VMEM((tm, f_out_p), jnp.float32)],
        compiler_params=pltpu.CompilerParams(
            dimension_semantics=("parallel", "arbitrary"),
            vmem_limit_bytes=_vmem_limit(ktiled_vmem)),
        cost_estimate=pl.CostEstimate(flops=flops, transcendentals=transcend,
                                      bytes_accessed=bytes_acc),
    )(a_p, x_p, w_p, b_p)


# ---------------------------------------------------------------------------
# Trace-time parameter folding and full forward
# ---------------------------------------------------------------------------
def fold_bn(w, b, gamma, beta, mean, var):
    """Fold eval-mode BatchNorm1d into the linear layer (exact)."""
    s = gamma * jax.lax.rsqrt(var + BN_EPS)
    return w * s[None, :], (b - mean) * s + beta


def _layer_weights(params, i, num_layers):
    w, b = params["W"][i], params["b"][i]
    if i < num_layers - 1:
        w, b = fold_bn(w, b, params["gamma"][i], params["beta"][i],
                       params["mean"][i], params["var"][i])
    f_in, f_out = w.shape
    f_in_p, f_out_p = _round_up(f_in, LANE), _round_up(f_out, LANE)
    w_p = _pad2(w, f_in_p, f_out_p).astype(jnp.bfloat16)
    b_p = _pad2(b.reshape(1, f_out), 1, f_out_p).astype(jnp.float32)
    return w_p, b_p, f_out, f_out_p


def _forward_fused_small(x, a_hat, params):
    """Tiny-N regime: all layers in one pallas_call, A_hat & h resident in VMEM."""
    n, in_ch = x.shape
    num_layers = len(params["W"])
    out_ch = params["W"][-1].shape[1]
    n_p = _round_up(n, LANE)

    a_p = _pad2(a_hat, n_p, n_p).astype(jnp.bfloat16)
    x_p = _pad2(x, n_p, _round_up(in_ch, LANE)).astype(jnp.bfloat16)

    flat = [x_p, a_p]
    flops = 0
    f_out_p_last = LANE
    for i in range(num_layers):
        w_p, b_p, _, f_out_p = _layer_weights(params, i, num_layers)
        flat += [w_p, b_p]
        flops += 2 * n_p * w_p.shape[0] * f_out_p + 2 * n_p * n_p * f_out_p
        f_out_p_last = f_out_p

    in_bytes = sum(int(t.size) * t.dtype.itemsize for t in flat)
    est_vmem = 2 * int(a_p.size) * 2 + in_bytes + 8 * n_p * f_out_p_last * 4

    out_p = pl.pallas_call(
        functools.partial(_fused_all_layers_kernel,
                          num_layers=num_layers, num_classes=out_ch),
        out_shape=jax.ShapeDtypeStruct((n_p, f_out_p_last), jnp.float32),
        compiler_params=pltpu.CompilerParams(vmem_limit_bytes=_vmem_limit(est_vmem)),
        cost_estimate=pl.CostEstimate(flops=flops,
                                      transcendentals=n_p * f_out_p_last,
                                      bytes_accessed=in_bytes + 4 * n_p * f_out_p_last),
    )(*flat)
    return out_p[:n, :out_ch]


def _forward_tiled(x, a_hat, params, *, tm, max_tk):
    n, in_ch = x.shape
    num_layers = len(params["W"])
    out_ch = params["W"][-1].shape[1]

    # tm >= 512 by default (mem-bound roofline); tk is always tm or n_p so the padding
    # of N stays linear-minimal (lcm(tm, tk) == max).
    tm = max(LANE, min(tm, _round_up(n, LANE)))
    n_p = _round_up(n, tm)
    a_p = _pad2(a_hat, n_p, n_p).astype(jnp.bfloat16)
    h = _pad2(x, n_p, _round_up(in_ch, LANE)).astype(jnp.bfloat16)

    out_p = None
    for i in range(num_layers):
        last = i == num_layers - 1
        w_p, b_p, f_out, _ = _layer_weights(params, i, num_layers)
        res = _gcn_layer(a_p, h, w_p, b_p, tm=tm, max_tk=max_tk,
                         last_layer=last, num_classes=f_out)
        if last:
            out_p = res
        else:
            h = res          # F.dropout(..., training=False) -> identity
    return out_p[:n, :out_ch]


def gcn_ogb_forward(x, a_hat, params, *, tm=512, max_tk=None, force_tiled=False):
    """Eval-mode GCN_OGB forward on a dense symmetrically-normalized A_hat."""
    if (not force_tiled) and _round_up(x.shape[0], LANE) <= _SMALL_FUSE_MAX_NP:
        return _forward_fused_small(x, a_hat, params)
    return _forward_tiled(x, a_hat, params, tm=tm, max_tk=max_tk)


# ---------------------------------------------------------------------------
# Pure-JAX reference (same bf16 operand casts) for correctness checking
# ---------------------------------------------------------------------------
def reference_forward(x, a_hat, params):
    num_layers = len(params["W"])
    a16 = a_hat.astype(jnp.bfloat16)
    h = x.astype(jnp.bfloat16)
    for i in range(num_layers):
        w, b = params["W"][i], params["b"][i]
        last = i == num_layers - 1
        if not last:
            w, b = fold_bn(w, b, params["gamma"][i], params["beta"][i],
                           params["mean"][i], params["var"][i])
        xw = jnp.dot(h, w.astype(jnp.bfloat16),
                     preferred_element_type=jnp.float32).astype(jnp.bfloat16)
        z = jnp.dot(a16, xw, preferred_element_type=jnp.float32) + b[None, :]
        if not last:
            h = jnp.maximum(z, 0.0).astype(jnp.bfloat16)
        else:
            return jax.nn.log_softmax(z, axis=-1)


# ---------------------------------------------------------------------------
# Deterministic parameter / input construction
# ---------------------------------------------------------------------------
def glorot(key, fan_in, fan_out):
    lim = jnp.sqrt(6.0 / (fan_in + fan_out))
    return jax.random.uniform(key, (fan_in, fan_out), jnp.float32, -lim, lim)


def build_params(key, in_channels, hidden_channels, out_channels, num_layers):
    dims = [in_channels] + [hidden_channels] * (num_layers - 1) + [out_channels]
    keys = jax.random.split(key, 4 * num_layers)
    W, b, gamma, beta, mean, var = [], [], [], [], [], []
    for i in range(num_layers):
        W.append(glorot(keys[4 * i], dims[i], dims[i + 1]))
        b.append(0.01 * jax.random.normal(keys[4 * i + 1], (dims[i + 1],), jnp.float32))
        if i < num_layers - 1:
            gamma.append(1.0 + 0.1 * jax.random.normal(
                keys[4 * i + 2], (dims[i + 1],), jnp.float32))
            beta.append(0.05 * jax.random.normal(
                keys[4 * i + 3], (dims[i + 1],), jnp.float32))
            mean.append(0.1 * jnp.arange(dims[i + 1], dtype=jnp.float32) / dims[i + 1])
            var.append(jnp.ones((dims[i + 1],), jnp.float32)
                       + 0.05 * jnp.arange(dims[i + 1], dtype=jnp.float32) / dims[i + 1])
    return {"W": W, "b": b, "gamma": gamma, "beta": beta, "mean": mean, "var": var}


def build_normalized_adjacency(key, n):
    # random symmetric adjacency + self-loops, GCN normalization D^-1/2 (A+I) D^-1/2
    a = jax.random.bernoulli(key, p=0.1, shape=(n, n)).astype(jnp.float32)
    a = jnp.maximum(a, a.T)
    a = a * (1.0 - jnp.eye(n, dtype=jnp.float32)) + jnp.eye(n, dtype=jnp.float32)
    deg = jnp.sum(a, axis=1)
    d_inv_sqrt = jax.lax.rsqrt(deg)
    return a * d_inv_sqrt[:, None] * d_inv_sqrt[None, :]


if __name__ == "__main__":
    NUM_LAYERS = 3
    IN_CH = 16               # input feature dim   (pads to 128)
    HID = 64                 # hidden_channels     (pads to 128)
    OUT_CH = 10              # out_channels / classes (pads to 128, masked in softmax)

    root = jax.random.PRNGKey(0)
    k_x1, k_a1, k_x2, k_a2, k_par = jax.random.split(root, 5)
    params = build_params(k_par, IN_CH, HID, OUT_CH, NUM_LAYERS)

    # --- tiny graph: single fully-fused pallas_call (A_hat + h resident in VMEM) ----
    N_SMALL = 300
    x1 = jax.random.normal(k_x1, (N_SMALL, IN_CH), jnp.float32)
    a1 = build_normalized_adjacency(k_a1, N_SMALL)
    out1 = jax.block_until_ready(gcn_ogb_forward(x1, a1, params))
    ref1 = jax.block_until_ready(reference_forward(x1, a1, params))
    assert out1.shape == (N_SMALL, OUT_CH)
    assert bool(jnp.all(jnp.isfinite(out1)))
    assert bool(jnp.allclose(jnp.sum(jnp.exp(out1), axis=-1), 1.0, atol=1e-4))
    assert bool(jnp.allclose(out1, ref1, atol=1e-1, rtol=1e-2)), float(
        jnp.max(jnp.abs(out1 - ref1)))

    # --- larger graph: tiled per-layer path, one-pass variant (tk == n_p) -----------
    N_BIG = 2000             # pads to 2048 -> 4 row tiles of tm=512 (even for megacore)
    x2 = jax.random.normal(k_x2, (N_BIG, IN_CH), jnp.float32)
    a2 = build_normalized_adjacency(k_a2, N_BIG)
    out2 = jax.block_until_ready(gcn_ogb_forward(x2, a2, params, force_tiled=True))
    ref2 = jax.block_until_ready(reference_forward(x2, a2, params))
    assert out2.shape == (N_BIG, OUT_CH)
    assert bool(jnp.all(jnp.isfinite(out2)))
    assert bool(jnp.allclose(out2, ref2, atol=1e-1, rtol=1e-2)), float(
        jnp.max(jnp.abs(out2 - ref2)))

    # --- same graph, force the K-tiled streaming fallback (huge-graph code path) ----
    out3 = jax.block_until_ready(
        gcn_ogb_forward(x2, a2, params, force_tiled=True, max_tk=512))
    assert bool(jnp.allclose(out3, ref2, atol=1e-1, rtol=1e-2)), float(
        jnp.max(jnp.abs(out3 - ref2)))

    print("KERNEL_OK")
</pallas_src>

<mosaic_0001>
module attributes {stable_mosaic.version = 11 : i64} {
  func.func @_fused_all_layers_kernel(%arg0: memref<384x128xbf16, #tpu.memory_space<vmem>>, %arg1: memref<384x384xbf16, #tpu.memory_space<vmem>>, %arg2: memref<128x128xbf16, #tpu.memory_space<vmem>>, %arg3: memref<1x128xf32, #tpu.memory_space<vmem>>, %arg4: memref<128x128xbf16, #tpu.memory_space<vmem>>, %arg5: memref<1x128xf32, #tpu.memory_space<vmem>>, %arg6: memref<128x128xbf16, #tpu.memory_space<vmem>>, %arg7: memref<1x128xf32, #tpu.memory_space<vmem>>, %arg8: memref<384x128xf32, #tpu.memory_space<vmem>>) attributes {dimension_semantics = [], scalar_prefetch = 0 : i64, scratch_operands = 0 : i64, tpu.core_type = #tpu.core_type<tc>} {
    %c0 = arith.constant 0 : index
    %c0_0 = arith.constant 0 : index
    %0 = vector.load %arg0[%c0, %c0_0] : memref<384x128xbf16, #tpu.memory_space<vmem>>, vector<384x128xbf16>
    %c0_1 = arith.constant 0 : index
    %c0_2 = arith.constant 0 : index
    %1 = vector.load %arg2[%c0_1, %c0_2] : memref<128x128xbf16, #tpu.memory_space<vmem>>, vector<128x128xbf16>
    %cst = arith.constant dense<0.000000e+00> : vector<384x128xf32>
    %2 = tpu.matmul %0, %1, %cst {dimension_numbers = #tpu.dot_dimension_numbers<[1], [0], [0], [1], [0, 0, 1, 1], [], []>} : vector<384x128xbf16>, vector<128x128xbf16>, vector<384x128xf32> -> vector<384x128xf32>
    %3 = arith.truncf %2 : vector<384x128xf32> to vector<384x128xbf16>
    %c0_3 = arith.constant 0 : index
    %c0_4 = arith.constant 0 : index
    %4 = vector.load %arg1[%c0_3, %c0_4] : memref<384x384xbf16, #tpu.memory_space<vmem>>, vector<384x384xbf16>
    %cst_5 = arith.constant dense<0.000000e+00> : vector<384x128xf32>
    %5 = tpu.matmul %4, %3, %cst_5 {dimension_numbers = #tpu.dot_dimension_numbers<[1], [0], [0], [1], [0, 0, 1, 1], [], []>} : vector<384x384xbf16>, vector<384x128xbf16>, vector<384x128xf32> -> vector<384x128xf32>
    %c0_6 = arith.constant 0 : index
    %c0_7 = arith.constant 0 : index
    %6 = vector.load %arg3[%c0_6, %c0_7] : memref<1x128xf32, #tpu.memory_space<vmem>>, vector<1x128xf32>
    %7 = vector.broadcast %6 : vector<1x128xf32> to vector<384x128xf32>
    %8 = arith.addf %5, %7 : vector<384x128xf32>
    %cst_8 = arith.constant 0.000000e+00 : f32
    %9 = vector.broadcast %cst_8 : f32 to vector<384x128xf32>
    %10 = arith.maximumf %8, %9 : vector<384x128xf32>
    %11 = arith.truncf %10 : vector<384x128xf32> to vector<384x128xbf16>
    %c0_9 = arith.constant 0 : index
    %c0_10 = arith.constant 0 : index
    %12 = vector.load %arg4[%c0_9, %c0_10] : memref<128x128xbf16, #tpu.memory_space<vmem>>, vector<128x128xbf16>
    %cst_11 = arith.constant dense<0.000000e+00> : vector<384x128xf32>
    %13 = tpu.matmul %11, %12, %cst_11 {dimension_numbers = #tpu.dot_dimension_numbers<[1], [0], [0], [1], [0, 0, 1, 1], [], []>} : vector<384x128xbf16>, vector<128x128xbf16>, vector<384x128xf32> -> vector<384x128xf32>
    %14 = arith.truncf %13 : vector<384x128xf32> to vector<384x128xbf16>
    %c0_12 = arith.constant 0 : index
    %c0_13 = arith.constant 0 : index
    %15 = vector.load %arg1[%c0_12, %c0_13] : memref<384x384xbf16, #tpu.memory_space<vmem>>, vector<384x384xbf16>
    %cst_14 = arith.constant dense<0.000000e+00> : vector<384x128xf32>
    %16 = tpu.matmul %15, %14, %cst_14 {dimension_numbers = #tpu.dot_dimension_numbers<[1], [0], [0], [1], [0, 0, 1, 1], [], []>} : vector<384x384xbf16>, vector<384x128xbf16>, vector<384x128xf32> -> vector<384x128xf32>
    %c0_15 = arith.constant 0 : index
    %c0_16 = arith.constant 0 : index
    %17 = vector.load %arg5[%c0_15, %c0_16] : memref<1x128xf32, #tpu.memory_space<vmem>>, vector<1x128xf32>
    %18 = vector.broadcast %17 : vector<1x128xf32> to vector<384x128xf32>
    %19 = arith.addf %16, %18 : vector<384x128xf32>
    %cst_17 = arith.constant 0.000000e+00 : f32
    %20 = vector.broadcast %cst_17 : f32 to vector<384x128xf32>
    %21 = arith.maximumf %19, %20 : vector<384x128xf32>
    %22 = arith.truncf %21 : vector<384x128xf32> to vector<384x128xbf16>
    %c0_18 = arith.constant 0 : index
    %c0_19 = arith.constant 0 : index
    %23 = vector.load %arg6[%c0_18, %c0_19] : memref<128x128xbf16, #tpu.memory_space<vmem>>, vector<128x128xbf16>
    %cst_20 = arith.constant dense<0.000000e+00> : vector<384x128xf32>
    %24 = tpu.matmul %22, %23, %cst_20 {dimension_numbers = #tpu.dot_dimension_numbers<[1], [0], [0], [1], [0, 0, 1, 1], [], []>} : vector<384x128xbf16>, vector<128x128xbf16>, vector<384x128xf32> -> vector<384x128xf32>
    %25 = arith.truncf %24 : vector<384x128xf32> to vector<384x128xbf16>
    %c0_21 = arith.constant 0 : index
    %c0_22 = arith.constant 0 : index
    %26 = vector.load %arg1[%c0_21, %c0_22] : memref<384x384xbf16, #tpu.memory_space<vmem>>, vector<384x384xbf16>
    %cst_23 = arith.constant dense<0.000000e+00> : vector<384x128xf32>
    %27 = tpu.matmul %26, %25, %cst_23 {dimension_numbers = #tpu.dot_dimension_numbers<[1], [0], [0], [1], [0, 0, 1, 1], [], []>} : vector<384x384xbf16>, vector<384x128xbf16>, vector<384x128xf32> -> vector<384x128xf32>
    %c0_24 = arith.constant 0 : index
    %c0_25 = arith.constant 0 : index
    %28 = vector.load %arg7[%c0_24, %c0_25] : memref<1x128xf32, #tpu.memory_space<vmem>>, vector<1x128xf32>
    %29 = vector.broadcast %28 : vector<1x128xf32> to vector<384x128xf32>
    %30 = arith.addf %27, %29 : vector<384x128xf32>
    %31 = tpu.iota {dimensions = array<i32: 1>} : vector<384x128xi32>
    %c10_i32 = arith.constant 10 : i32
    %32 = vector.broadcast %c10_i32 : i32 to vector<384x128xi32>
    %33 = arith.cmpi slt, %31, %32 : vector<384x128xi32>
    %cst_26 = arith.constant 0xFF800000 : f32
    %34 = vector.broadcast %cst_26 : f32 to vector<384x128xf32>
    %35 = arith.select %33, %30, %34 : vector<384x128xi1>, vector<384x128xf32>
    %cst_27 = arith.constant dense<0xFF800000> : vector<384xf32>
    %36 = vector.multi_reduction <maximumf>, %35, %cst_27 [1] : vector<384x128xf32> to vector<384xf32>
    %37 = vector.shape_cast %36 : vector<384xf32> to vector<384x1xf32>
    %38 = vector.broadcast %37 : vector<384x1xf32> to vector<384x128xf32>
    %39 = arith.subf %35, %38 : vector<384x128xf32>
    %40 = math.exp %39 : vector<384x128xf32>
    %cst_28 = arith.constant 0.000000e+00 : f32
    %41 = vector.broadcast %cst_28 : f32 to vector<384x128xf32>
    %42 = arith.select %33, %40, %41 : vector<384x128xi1>, vector<384x128xf32>
    %cst_29 = arith.constant dense<0.000000e+00> : vector<384xf32>
    %43 = vector.multi_reduction <add>, %42, %cst_29 [1] : vector<384x128xf32> to vector<384xf32>
    %44 = vector.shape_cast %43 : vector<384xf32> to vector<384x1xf32>
    %45 = math.log %44 : vector<384x1xf32>
    %46 = vector.broadcast %45 : vector<384x1xf32> to vector<384x128xf32>
    %47 = arith.subf %39, %46 : vector<384x128xf32>
    %c0_30 = arith.constant 0 : index
    %c0_31 = arith.constant 0 : index
    %48 = vector.load %arg8[%c0_30, %c0_31] : memref<384x128xf32, #tpu.memory_space<vmem>>, vector<384x128xf32>
    tpu.vector_store %arg8[%c0_30, %c0_31], %47 {strides = array<i32>} : memref<384x128xf32, #tpu.memory_space<vmem>>, vector<384x128xf32>,
    return
  }
}

</mosaic_0001>

<llo_original>
// kernel: tpu_custom_call.1
$region0: #{tpu_custom_call.1}
  #allocation0 [shape = 'u32[]', space=smem, size = 0x4, offset = 0x4, fixed_abs, tag = 'smem constant byte address 0x4 - core index']
  #allocation1 [shape = 'u32[144,128]{1,0:T(1,128)}', space=vmem, size = 0x12000, scoped, tag = 'internal scratch']
  %s0 = inlined_call_operand.hbm [shape: bf16[384,128], index: 0, kind: input, shape index: {}]
  %s1 = inlined_call_operand.hbm [shape: bf16[384,384], index: 1, kind: input, shape index: {}]
  %s2 = inlined_call_operand.hbm [shape: bf16[128,128], index: 2, kind: input, shape index: {}]
  %s3 = inlined_call_operand.vmem [shape: f32[1,128], index: 3, kind: input, shape index: {}]
  %s4 = inlined_call_operand.hbm [shape: bf16[128,128], index: 4, kind: input, shape index: {}]
  %s5 = inlined_call_operand.vmem [shape: f32[1,128], index: 5, kind: input, shape index: {}]
  %s6 = inlined_call_operand.hbm [shape: bf16[128,128], index: 6, kind: input, shape index: {}]
  %s7 = inlined_call_operand.vmem [shape: f32[1,128], index: 7, kind: input, shape index: {}]
  %s8 = inlined_call_operand.hbm [shape: f32[384,128], index: 8, kind: output, shape index: {}]
  %s9 = sld [smem:[#allocation0]]
  $region62: #{tpu_custom_call.1} parent=0
    _
  %s11 = ssub.s32 1, %s9
  %s12 = scalar_select 0, %s11, %s9
  $region1: #{tpu_custom_call.1} parent=0
    #allocation2 [shape = 'u8[98304]{0}', space=vmem, size = 0x18000, scoped, tag = 'input window, operand 0, single buffered']
    #allocation3 [shape = 's32[1]{0}', space=sflag, size = 0x4, scoped, tag = 'scoped memory for tpu_custom_call.1']
    #allocation4 [shape = 's32[1]{0}', space=sflag, size = 0x4, scoped, tag = 'scoped memory for tpu_custom_call.1']
    #allocation5 [shape = 'u8[294912]{0}', space=vmem, size = 0x48000, scoped, tag = 'input window, operand 1, single buffered']
    #allocation6 [shape = 's32[1]{0}', space=sflag, size = 0x4, scoped, tag = 'scoped memory for tpu_custom_call.1']
    #allocation7 [shape = 'u8[32768]{0}', space=vmem, size = 0x8000, scoped, tag = 'input window, operand 2, single buffered']
    #allocation8 [shape = 'u8[32768]{0}', space=vmem, size = 0x8000, scoped, tag = 'input window, operand 4, single buffered']
    #allocation9 [shape = 's32[1]{0}', space=sflag, size = 0x4, scoped, tag = 'scoped memory for tpu_custom_call.1']
    #allocation10 [shape = 'u8[32768]{0}', space=vmem, size = 0x8000, scoped, tag = 'input window, operand 6, single buffered']
    #allocation11 [shape = 'u8[196608]{0}', space=vmem, size = 0x30000, scoped, tag = 'output window, operand 0, single buffered']
    %13 = vsyncpa [#allocation3], 0
    %14 = vsyncpa [#allocation6], 0
    %15 = vsyncpa [#allocation9], 0
    %16 = vsyncpa [#allocation4], 0
    // Predicated region
    $region2: #{tpu_custom_call.1} parent=1 // pred_check
      _
    $region3: #{tpu_custom_call.1} parent=1 // pred_check_branch
      %18 = sbr.rel (0) target = $region5
    $region4: #{tpu_custom_call.1} parent=1 // pred_region
      %s20 = ssub.s32 3072, 3072
      %21 = vsyncadd [#allocation3], %s20
      %s22 = sshll.u32 [#allocation2], 4
      %s23 = int_to_ptr.vmem [resolvable:$true] %s22
      %28 = dma.hbm_to_vmem [thread:$0]  %s0, 3072, %s23, [#allocation3], 64, 64, 4
    $region5: #{tpu_custom_call.1} parent=1 // pred_fallthru
      _
    // Predicated region
    $region6: #{tpu_custom_call.1} parent=1 // pred_check
      _
    $region7: #{tpu_custom_call.1} parent=1 // pred_check_branch
      %30 = sbr.rel (0) target = $region9
    $region8: #{tpu_custom_call.1} parent=1 // pred_region
      %s32 = ssub.s32 9216, 9216
      %33 = vsyncadd [#allocation6], %s32
      %s34 = sshll.u32 [#allocation5], 4
      %s35 = int_to_ptr.vmem [resolvable:$true] %s34
      %40 = dma.hbm_to_vmem [thread:$0]  %s1, 9216, %s35, [#allocation6], 192, 192, 12
    $region9: #{tpu_custom_call.1} parent=1 // pred_fallthru
      _
    // Predicated region
    $region10: #{tpu_custom_call.1} parent=1 // pred_check
      _
    $region11: #{tpu_custom_call.1} parent=1 // pred_check_branch
      %42 = sbr.rel (0) target = $region13
    $region12: #{tpu_custom_call.1} parent=1 // pred_region
      %s44 = ssub.s32 1024, 1024
      %45 = vsyncadd [#allocation6], %s44
      %s46 = sshll.u32 [#allocation7], 4
      %s47 = int_to_ptr.vmem [resolvable:$true] %s46
      %52 = dma.hbm_to_vmem [thread:$0]  %s2, 1024, %s47, [#allocation6], 64, 64, 4
    $region13: #{tpu_custom_call.1} parent=1 // pred_fallthru
      _
    // Predicated region
    $region14: #{tpu_custom_call.1} parent=1 // pred_check
      _
    $region15: #{tpu_custom_call.1} parent=1 // pred_check_branch
      %54 = sbr.rel (0) target = $region17
    $region16: #{tpu_custom_call.1} parent=1 // pred_region
      _
    $region17: #{tpu_custom_call.1} parent=1 // pred_fallthru
      _
    // Predicated region
    $region18: #{tpu_custom_call.1} parent=1 // pred_check
      _
    $region19: #{tpu_custom_call.1} parent=1 // pred_check_branch
      %56 = sbr.rel (0) target = $region21
    $region20: #{tpu_custom_call.1} parent=1 // pred_region
      %s58 = ssub.s32 1024, 1024
      %59 = vsyncadd [#allocation9], %s58
      %s60 = sshll.u32 [#allocation8], 4
      %s61 = int_to_ptr.vmem [resolvable:$true] %s60
      %66 = dma.hbm_to_vmem [thread:$0]  %s4, 1024, %s61, [#allocation9], 64, 64, 4
    $region21: #{tpu_custom_call.1} parent=1 // pred_fallthru
      _
    // Predicated region
    $region22: #{tpu_custom_call.1} parent=1 // pred_check
      _
    $region23: #{tpu_custom_call.1} parent=1 // pred_check_branch
      %68 = sbr.rel (0) target = $region25
    $region24: #{tpu_custom_call.1} parent=1 // pred_region
      _
    $region25: #{tpu_custom_call.1} parent=1 // pred_fallthru
      _
    // Predicated region
    $region26: #{tpu_custom_call.1} parent=1 // pred_check
      _
    $region27: #{tpu_custom_call.1} parent=1 // pred_check_branch
      %70 = sbr.rel (0) target = $region29
    $region28: #{tpu_custom_call.1} parent=1 // pred_region
      %s72 = ssub.s32 1024, 1024
      %73 = vsyncadd [#allocation9], %s72
      %s74 = sshll.u32 [#allocation10], 4
      %s75 = int_to_ptr.vmem [resolvable:$true] %s74
      %80 = dma.hbm_to_vmem [thread:$0]  %s6, 1024, %s75, [#allocation9], 64, 64, 4
    $region29: #{tpu_custom_call.1} parent=1 // pred_fallthru
      _
    // Predicated region
    $region30: #{tpu_custom_call.1} parent=1 // pred_check
      _
    $region31: #{tpu_custom_call.1} parent=1 // pred_check_branch
      %82 = sbr.rel (0) target = $region33
    $region32: #{tpu_custom_call.1} parent=1 // pred_region
      _
    $region33: #{tpu_custom_call.1} parent=1 // pred_fallthru
      _
    // Predicated region
    $region34: #{tpu_custom_call.1} parent=1 // pred_check
      _
    $region35: #{tpu_custom_call.1} parent=1 // pred_check_branch
      %84 = sbr.rel (0) target = $region37
    $region36: #{tpu_custom_call.1} parent=1 // pred_region
      %85 = dma.done [#allocation3], 3072
    $region37: #{tpu_custom_call.1} parent=1 // pred_fallthru
      _
    // Predicated region
    $region38: #{tpu_custom_call.1} parent=1 // pred_check
      _
    $region39: #{tpu_custom_call.1} parent=1 // pred_check_branch
      %87 = sbr.rel (0) target = $region41
    $region40: #{tpu_custom_call.1} parent=1 // pred_region
      %88 = dma.done [#allocation6], 9216
    $region41: #{tpu_custom_call.1} parent=1 // pred_fallthru
      _
    // Predicated region
    $region42: #{tpu_custom_call.1} parent=1 // pred_check
      _
    $region43: #{tpu_custom_call.1} parent=1 // pred_check_branch
      %90 = sbr.rel (0) target = $region45
    $region44: #{tpu_custom_call.1} parent=1 // pred_region
      %91 = dma.done [#allocation6], 1024
    $region45: #{tpu_custom_call.1} parent=1 // pred_fallthru
      _
    // Predicated region
    $region46: #{tpu_custom_call.1} parent=1 // pred_check
      _
    $region47: #{tpu_custom_call.1} parent=1 // pred_check_branch
      %93 = sbr.rel (0) target = $region49
    $region48: #{tpu_custom_call.1} parent=1 // pred_region
      %94 = dma.done [#allocation9], 1024
    $region49: #{tpu_custom_call.1} parent=1 // pred_fallthru
      _
    // Predicated region
    $region50: #{tpu_custom_call.1} parent=1 // pred_check
      _
    $region51: #{tpu_custom_call.1} parent=1 // pred_check_branch
      %96 = sbr.rel (0) target = $region53
    $region52: #{tpu_custom_call.1} parent=1 // pred_region
      %97 = dma.done [#allocation9], 1024
    $region53: #{tpu_custom_call.1} parent=1 // pred_fallthru
      _
    %v99 = vld [vmem:[#allocation2] sm:$0xf]
    %v100 = vld [vmem:[#allocation2 + $0x4] sm:$0xf]
    %v101 = vld [vmem:[#allocation2 + $0x8] sm:$0xf]
    %v102 = vld [vmem:[#allocation2 + $0xc] sm:$0xf]
    %v103 = vld [vmem:[#allocation2 + $0x10] sm:$0xf]
    %v104 = vld [vmem:[#allocation2 + $0x14] sm:$0xf]
    %v105 = vld [vmem:[#allocation2 + $0x18] sm:$0xf]
    %v106 = vld [vmem:[#allocation2 + $0x1c] sm:$0xf]
    %v107 = vld [vmem:[#allocation2 + $0x20] sm:$0xf]
    %v108 = vld [vmem:[#allocation2 + $0x24] sm:$0xf]
    %v109 = vld [vmem:[#allocation2 + $0x28] sm:$0xf]
    %v110 = vld [vmem:[#allocation2 + $0x2c] sm:$0xf]
    %v111 = vld [vmem:[#allocation2 + $0x30] sm:$0xf]
    %v112 = vld [vmem:[#allocation2 + $0x34] sm:$0xf]
    %v113 = vld [vmem:[#allocation2 + $0x38] sm:$0xf]
    %v114 = vld [vmem:[#allocation2 + $0x3c] sm:$0xf]
    %v115 = vld [vmem:[#allocation2 + $0x40] sm:$0xf]
    %v116 = vld [vmem:[#allocation2 + $0x44] sm:$0xf]
    %v117 = vld [vmem:[#allocation2 + $0x48] sm:$0xf]
    %v118 = vld [vmem:[#allocation2 + $0x4c] sm:$0xf]
    %v119 = vld [vmem:[#allocation2 + $0x50] sm:$0xf]
    %v120 = vld [vmem:[#allocation2 + $0x54] sm:$0xf]
    %v121 = vld [vmem:[#allocation2 + $0x58] sm:$0xf]
    %v122 = vld [vmem:[#allocation2 + $0x5c] sm:$0xf]
    %v123 = vld [vmem:[#allocation2 + $0x60] sm:$0xf]
    %v124 = vld [vmem:[#allocation2 + $0x64] sm:$0xf]
    %v125 = vld [vmem:[#allocation2 + $0x68] sm:$0xf]
    %v126 = vld [vmem:[#allocation2 + $0x6c] sm:$0xf]
    %v127 = vld [vmem:[#allocation2 + $0x70] sm:$0xf]
    %v128 = vld [vmem:[#allocation2 + $0x74] sm:$0xf]
    %v129 = vld [vmem:[#allocation2 + $0x78] sm:$0xf]
    %v130 = vld [vmem:[#allocation2 + $0x7c] sm:$0xf]
    %v131 = vld [vmem:[#allocation2 + $0x80] sm:$0xf]
    %v132 = vld [vmem:[#allocation2 + $0x84] sm:$0xf]
    %v133 = vld [vmem:[#allocation2 + $0x88] sm:$0xf]
    %v134 = vld [vmem:[#allocation2 + $0x8c] sm:$0xf]
    %v135 = vld [vmem:[#allocation2 + $0x90] sm:$0xf]
    %v136 = vld [vmem:[#allocation2 + $0x94] sm:$0xf]
    %v137 = vld [vmem:[#allocation2 + $0x98] sm:$0xf]
    %v138 = vld [vmem:[#allocation2 + $0x9c] sm:$0xf]
    %v139 = vld [vmem:[#allocation2 + $0xa0] sm:$0xf]
    %v140 = vld [vmem:[#allocation2 + $0xa4] sm:$0xf]
    %v141 = vld [vmem:[#allocation2 + $0xa8] sm:$0xf]
    %v142 = vld [vmem:[#allocation2 + $0xac] sm:$0xf]
    %v143 = vld [vmem:[#allocation2 + $0xb0] sm:$0xf]
    %v144 = vld [vmem:[#allocation2 + $0xb4] sm:$0xf]
    %v145 = vld [vmem:[#allocation2 + $0xb8] sm:$0xf]
    %v146 = vld [vmem:[#allocation2 + $0xbc] sm:$0xf]
    %v147 = vld [vmem:[#allocation7] sm:$0xf]
    %v148 = vld [vmem:[#allocation7 + $0x4] sm:$0xf]
    %v149 = vld [vmem:[#allocation7 + $0x8] sm:$0xf]
    %v150 = vld [vmem:[#allocation7 + $0xc] sm:$0xf]
    %v151 = vld [vmem:[#allocation7 + $0x10] sm:$0xf]
    %v152 = vld [vmem:[#allocation7 + $0x14] sm:$0xf]
    %v153 = vld [vmem:[#allocation7 + $0x18] sm:$0xf]
    %v154 = vld [vmem:[#allocation7 + $0x1c] sm:$0xf]
    %v155 = vld [vmem:[#allocation7 + $0x20] sm:$0xf]
    %v156 = vld [vmem:[#allocation7 + $0x24] sm:$0xf]
    %v157 = vld [vmem:[#allocation7 + $0x28] sm:$0xf]
    %v158 = vld [vmem:[#allocation7 + $0x2c] sm:$0xf]
    %v159 = vld [vmem:[#allocation7 + $0x30] sm:$0xf]
    %v160 = vld [vmem:[#allocation7 + $0x34] sm:$0xf]
    %v161 = vld [vmem:[#allocation7 + $0x38] sm:$0xf]
    %v162 = vld [vmem:[#allocation7 + $0x3c] sm:$0xf]
    %v211 = vunpack.c.l.b16 %v99
    %v212 = vunpack.c.l.b16 %v100
    %v213 = vunpack.c.l.b16 %v101
    %v214 = vunpack.c.l.b16 %v102
    %v215 = vunpack.c.l.b16 %v103
    %v216 = vunpack.c.l.b16 %v104
    %v217 = vunpack.c.l.b16 %v105
    %v218 = vunpack.c.l.b16 %v106
    %v219 = vunpack.c.l.b16 %v107
    %v220 = vunpack.c.l.b16 %v108
    %v221 = vunpack.c.l.b16 %v109
    %v222 = vunpack.c.l.b16 %v110
    %v223 = vunpack.c.l.b16 %v111
    %v224 = vunpack.c.l.b16 %v112
    %v225 = vunpack.c.l.b16 %v113
    %v226 = vunpack.c.l.b16 %v114
    %v227 = vunpack.c.l.b16 %v115
    %v228 = vunpack.c.l.b16 %v116
    %v229 = vunpack.c.l.b16 %v117
    %v230 = vunpack.c.l.b16 %v118
    %v231 = vunpack.c.l.b16 %v119
    %v232 = vunpack.c.l.b16 %v120
    %v233 = vunpack.c.l.b16 %v121
    %v234 = vunpack.c.l.b16 %v122
    %v235 = vunpack.c.l.b16 %v123
    %v236 = vunpack.c.l.b16 %v124
    %v237 = vunpack.c.l.b16 %v125
    %v238 = vunpack.c.l.b16 %v126
    %v239 = vunpack.c.l.b16 %v127
    %v240 = vunpack.c.l.b16 %v128
    %v241 = vunpack.c.l.b16 %v129
    %v242 = vunpack.c.l.b16 %v130
    %v243 = vunpack.c.l.b16 %v131
    %v244 = vunpack.c.l.b16 %v132
    %v245 = vunpack.c.l.b16 %v133
    %v246 = vunpack.c.l.b16 %v134
    %v247 = vunpack.c.l.b16 %v135
    %v248 = vunpack.c.l.b16 %v136
    %v249 = vunpack.c.l.b16 %v137
    %v250 = vunpack.c.l.b16 %v138
    %v251 = vunpack.c.l.b16 %v139
    %v252 = vunpack.c.l.b16 %v140
    %v253 = vunpack.c.l.b16 %v141
    %v254 = vunpack.c.l.b16 %v142
    %v255 = vunpack.c.l.b16 %v143
    %v256 = vunpack.c.l.b16 %v144
    %v257 = vunpack.c.l.b16 %v145
    %v258 = vunpack.c.l.b16 %v146
    %v259 = vpack.c.b16 %v212, %v211
    %v260 = vpack.c.b16 %v214, %v213
    %v261 = vpack.c.b16 %v216, %v215
    %v262 = vpack.c.b16 %v218, %v217
    %v263 = vpack.c.b16 %v220, %v219
    %v264 = vpack.c.b16 %v222, %v221
    %v265 = vpack.c.b16 %v224, %v223
    %v266 = vpack.c.b16 %v226, %v225
    %v267 = vpack.c.b16 %v228, %v227
    %v268 = vpack.c.b16 %v230, %v229
    %v269 = vpack.c.b16 %v232, %v231
    %v270 = vpack.c.b16 %v234, %v233
    %v271 = vpack.c.b16 %v236, %v235
    %v272 = vpack.c.b16 %v238, %v237
    %v273 = vpack.c.b16 %v240, %v239
    %v274 = vpack.c.b16 %v242, %v241
    %v275 = vpack.c.b16 %v244, %v243
    %v276 = vpack.c.b16 %v246, %v245
    %v277 = vpack.c.b16 %v248, %v247
    %v278 = vpack.c.b16 %v250, %v249
    %v279 = vpack.c.b16 %v252, %v251
    %v280 = vpack.c.b16 %v254, %v253
    %v281 = vpack.c.b16 %v256, %v255
    %v282 = vpack.c.b16 %v258, %v257
    %v323 = vunpack.c.l.b16 %v147
    %v324 = vunpack.c.l.b16 %v148
    %v325 = vunpack.c.l.b16 %v149
    %v326 = vunpack.c.l.b16 %v150
    %v327 = vunpack.c.l.b16 %v151
    %v328 = vunpack.c.l.b16 %v152
    %v329 = vunpack.c.l.b16 %v153
    %v330 = vunpack.c.l.b16 %v154
    %v331 = vunpack.c.l.b16 %v155
    %v332 = vunpack.c.l.b16 %v156
    %v333 = vunpack.c.l.b16 %v157
    %v334 = vunpack.c.l.b16 %v158
    %v335 = vunpack.c.l.b16 %v159
    %v336 = vunpack.c.l.b16 %v160
    %v337 = vunpack.c.l.b16 %v161
    %v338 = vunpack.c.l.b16 %v162
    %v339 = vpack.c.b16 %v324, %v323
    %v340 = vpack.c.b16 %v326, %v325
    %v341 = vpack.c.b16 %v328, %v327
    %v342 = vpack.c.b16 %v330, %v329
    %v343 = vpack.c.b16 %v332, %v331
    %v344 = vpack.c.b16 %v334, %v333
    %v345 = vpack.c.b16 %v336, %v335
    %v346 = vpack.c.b16 %v338, %v337
    %355 = vmatprep.subr.bf16.mxu0 0
    %356 = vmatpush1.bf16.msra.mxu0 %v346
    %357 = vmatprep.subr.bf16.mxu0 0
    %358 = vmatpush1.bf16.msra.mxu0 %v345
    %359 = vmatprep.subr.bf16.mxu0 0
    %360 = vmatpush1.bf16.msra.mxu0 %v344
    %361 = vmatprep.subr.bf16.mxu0 0
    %362 = vmatpush1.bf16.msra.mxu0 %v343
    %363 = vmatprep.subr.bf16.mxu0 0
    %364 = vmatpush1.bf16.msra.mxu0 %v342
    %365 = vmatprep.subr.bf16.mxu0 0
    %366 = vmatpush1.bf16.msra.mxu0 %v341
    %367 = vmatprep.subr.bf16.mxu0 0
    %368 = vmatpush1.bf16.msra.mxu0 %v340
    %369 = vmatprep.subr.bf16.mxu0 0
    %370 = vmatpush1.bf16.msra.mxu0 %v339
    %371 = vmatprep.subr.bf16.mxu0 0
    %372 = vmatpush2.bf16.msra.mxu0 0
    %373 = vmatprep.subr.bf16.mxu0 0
    %374 = vmatpush2.bf16.msra.mxu0 0
    %375 = vmatprep.subr.bf16.mxu0 0
    %376 = vmatpush2.bf16.msra.mxu0 0
    %377 = vmatprep.subr.bf16.mxu0 0
    %378 = vmatpush2.bf16.msra.mxu0 0
    %379 = vmatprep.subr.bf16.mxu0 0
    %380 = vmatpush2.bf16.msra.mxu0 0
    %381 = vmatprep.subr.bf16.mxu0 0
    %382 = vmatpush2.bf16.msra.mxu0 0
    %383 = vmatprep.subr.bf16.mxu0 0
    %384 = vmatpush2.bf16.msra.mxu0 0
    %385 = vmatprep.subr.bf16.mxu0 0
    %386 = vmatpush2.bf16.msra.mxu0 0
    %387 = vmatprep.mubr.bf16.mxu0 0
    %388 = vmatmul.mubr.bf16.gmra.mxu0 %v259
    %v389 = vpop.f32.mrf.mxu0
    %v390 = vadd.f32 0.0, %v389
    %v391 = vpop.f32.mrf.mxu0
    %v392 = vpop.f32.mrf.mxu0
    %v393 = vadd.f32 0.0, %v392
    %v394 = vpop.f32.mrf.mxu0
    %395 = vmatprep.mubr.bf16.mxu0 0
    %396 = vmatmul.mubr.bf16.gmra.mxu0 %v260
    %v397 = vpop.f32.mrf.mxu0
    %v398 = vadd.f32 0.0, %v397
    %v399 = vpop.f32.mrf.mxu0
    %v400 = vpop.f32.mrf.mxu0
    %v401 = vadd.f32 0.0, %v400
    %v402 = vpop.f32.mrf.mxu0
    %403 = vmatprep.mubr.bf16.mxu0 0
    %404 = vmatmul.mubr.bf16.gmra.mxu0 %v261
    %v405 = vpop.f32.mrf.mxu0
    %v406 = vadd.f32 0.0, %v405
    %v407 = vpop.f32.mrf.mxu0
    %v408 = vpop.f32.mrf.mxu0
    %v409 = vadd.f32 0.0, %v408
    %v410 = vpop.f32.mrf.mxu0
    %411 = vmatprep.mubr.bf16.mxu0 0
    %412 = vmatmul.mubr.bf16.gmra.mxu0 %v262
    %v413 = vpop.f32.mrf.mxu0
    %v414 = vadd.f32 0.0, %v413
    %v415 = vpop.f32.mrf.mxu0
    %v416 = vpop.f32.mrf.mxu0
    %v417 = vadd.f32 0.0, %v416
    %v418 = vpop.f32.mrf.mxu0
    %419 = vmatprep.mubr.bf16.mxu0 0
    %420 = vmatmul.mubr.bf16.gmra.mxu0 %v263
    %v421 = vpop.f32.mrf.mxu0
    %v422 = vadd.f32 0.0, %v421
    %v423 = vpop.f32.mrf.mxu0
    %v424 = vpop.f32.mrf.mxu0
    %v425 = vadd.f32 0.0, %v424
    %v426 = vpop.f32.mrf.mxu0
    %427 = vmatprep.mubr.bf16.mxu0 0
    %428 = vmatmul.mubr.bf16.gmra.mxu0 %v264
    %v429 = vpop.f32.mrf.mxu0
    %v430 = vadd.f32 0.0, %v429
    %v431 = vpop.f32.mrf.mxu0
    %v432 = vpop.f32.mrf.mxu0
    %v433 = vadd.f32 0.0, %v432
    %v434 = vpop.f32.mrf.mxu0
    %435 = vmatprep.mubr.bf16.mxu0 0
    %436 = vmatmul.mubr.bf16.gmra.mxu0 %v265
    %v437 = vpop.f32.mrf.mxu0
    %v438 = vadd.f32 0.0, %v437
    %v439 = vpop.f32.mrf.mxu0
    %v440 = vpop.f32.mrf.mxu0
    %v441 = vadd.f32 0.0, %v440
    %v442 = vpop.f32.mrf.mxu0
    %443 = vmatprep.mubr.bf16.mxu0 0
    %444 = vmatmul.mubr.bf16.gmra.mxu0 %v266
    %v445 = vpop.f32.mrf.mxu0
    %v446 = vadd.f32 0.0, %v445
    %v447 = vpop.f32.mrf.mxu0
    %v448 = vpop.f32.mrf.mxu0
    %v449 = vadd.f32 0.0, %v448
    %v450 = vpop.f32.mrf.mxu0
    %451 = vmatprep.mubr.bf16.mxu0 0
    %452 = vmatmul.mubr.bf16.gmra.mxu0 %v267
    %v453 = vpop.f32.mrf.mxu0
    %v454 = vadd.f32 0.0, %v453
    %v455 = vpop.f32.mrf.mxu0
    %v456 = vpop.f32.mrf.mxu0
    %v457 = vadd.f32 0.0, %v456
    %v458 = vpop.f32.mrf.mxu0
    %459 = vmatprep.mubr.bf16.mxu0 0
    %460 = vmatmul.mubr.bf16.gmra.mxu0 %v268
    %v461 = vpop.f32.mrf.mxu0
    %v462 = vadd.f32 0.0, %v461
    %v463 = vpop.f32.mrf.mxu0
    %v464 = vpop.f32.mrf.mxu0
    %v465 = vadd.f32 0.0, %v464
    %v466 = vpop.f32.mrf.mxu0
    %467 = vmatprep.mubr.bf16.mxu0 0
    %468 = vmatmul.mubr.bf16.gmra.mxu0 %v269
    %v469 = vpop.f32.mrf.mxu0
    %v470 = vadd.f32 0.0, %v469
    %v471 = vpop.f32.mrf.mxu0
    %v472 = vpop.f32.mrf.mxu0
    %v473 = vadd.f32 0.0, %v472
    %v474 = vpop.f32.mrf.mxu0
    %475 = vmatprep.mubr.bf16.mxu0 0
    %476 = vmatmul.mubr.bf16.gmra.mxu0 %v270
    %v477 = vpop.f32.mrf.mxu0
    %v478 = vadd.f32 0.0, %v477
    %v479 = vpop.f32.mrf.mxu0
    %v480 = vpop.f32.mrf.mxu0
    %v481 = vadd.f32 0.0, %v480
    %v482 = vpop.f32.mrf.mxu0
    %483 = vmatprep.mubr.bf16.mxu0 0
    %484 = vmatmul.mubr.bf16.gmra.mxu0 %v271
    %v485 = vpop.f32.mrf.mxu0
    %v486 = vadd.f32 0.0, %v485
    %v487 = vpop.f32.mrf.mxu0
    %v488 = vpop.f32.mrf.mxu0
    %v489 = vadd.f32 0.0, %v488
    %v490 = vpop.f32.mrf.mxu0
    %491 = vmatprep.mubr.bf16.mxu0 0
    %492 = vmatmul.mubr.bf16.gmra.mxu0 %v272
    %v493 = vpop.f32.mrf.mxu0
    %v494 = vadd.f32 0.0, %v493
    %v495 = vpop.f32.mrf.mxu0
    %v496 = vpop.f32.mrf.mxu0
    %v497 = vadd.f32 0.0, %v496
    %v498 = vpop.f32.mrf.mxu0
    %499 = vmatprep.mubr.bf16.mxu0 0
    %500 = vmatmul.mubr.bf16.gmra.mxu0 %v273
    %v501 = vpop.f32.mrf.mxu0
    %v502 = vadd.f32 0.0, %v501
    %v503 = vpop.f32.mrf.mxu0
    %v504 = vpop.f32.mrf.mxu0
    %v505 = vadd.f32 0.0, %v504
    %v506 = vpop.f32.mrf.mxu0
    %507 = vmatprep.mubr.bf16.mxu0 0
    %508 = vmatmul.mubr.bf16.gmra.mxu0 %v274
    %v509 = vpop.f32.mrf.mxu0
    %v510 = vadd.f32 0.0, %v509
    %v511 = vpop.f32.mrf.mxu0
    %v512 = vpop.f32.mrf.mxu0
    %v513 = vadd.f32 0.0, %v512
    %v514 = vpop.f32.mrf.mxu0
    %515 = vmatprep.mubr.bf16.mxu0 0
    %516 = vmatmul.mubr.bf16.gmra.mxu0 %v275
    %v517 = vpop.f32.mrf.mxu0
    %v518 = vadd.f32 0.0, %v517
    %v519 = vpop.f32.mrf.mxu0
    %v520 = vpop.f32.mrf.mxu0
    %v521 = vadd.f32 0.0, %v520
    %v522 = vpop.f32.mrf.mxu0
    %523 = vmatprep.mubr.bf16.mxu0 0
    %524 = vmatmul.mubr.bf16.gmra.mxu0 %v276
    %v525 = vpop.f32.mrf.mxu0
    %v526 = vadd.f32 0.0, %v525
    %v527 = vpop.f32.mrf.mxu0
    %v528 = vpop.f32.mrf.mxu0
    %v529 = vadd.f32 0.0, %v528
    %v530 = vpop.f32.mrf.mxu0
    %531 = vmatprep.mubr.bf16.mxu0 0
    %532 = vmatmul.mubr.bf16.gmra.mxu0 %v277
    %v533 = vpop.f32.mrf.mxu0
    %v534 = vadd.f32 0.0, %v533
    %v535 = vpop.f32.mrf.mxu0
    %v536 = vpop.f32.mrf.mxu0
    %v537 = vadd.f32 0.0, %v536
    %v538 = vpop.f32.mrf.mxu0
    %539 = vmatprep.mubr.bf16.mxu0 0
    %540 = vmatmul.mubr.bf16.gmra.mxu0 %v278
    %v541 = vpop.f32.mrf.mxu0
    %v542 = vadd.f32 0.0, %v541
    %v543 = vpop.f32.mrf.mxu0
    %v544 = vpop.f32.mrf.mxu0
    %v545 = vadd.f32 0.0, %v544
    %v546 = vpop.f32.mrf.mxu0
    %547 = vmatprep.mubr.bf16.mxu0 0
    %548 = vmatmul.mubr.bf16.gmra.mxu0 %v279
    %v549 = vpop.f32.mrf.mxu0
    %v550 = vadd.f32 0.0, %v549
    %v551 = vpop.f32.mrf.mxu0
    %v552 = vpop.f32.mrf.mxu0
    %v553 = vadd.f32 0.0, %v552
    %v554 = vpop.f32.mrf.mxu0
    %555 = vmatprep.mubr.bf16.mxu0 0
    %556 = vmatmul.mubr.bf16.gmra.mxu0 %v280
    %v557 = vpop.f32.mrf.mxu0
    %v558 = vadd.f32 0.0, %v557
    %v559 = vpop.f32.mrf.mxu0
    %v560 = vpop.f32.mrf.mxu0
    %v561 = vadd.f32 0.0, %v560
    %v562 = vpop.f32.mrf.mxu0
    %563 = vmatprep.mubr.bf16.mxu0 0
    %564 = vmatmul.mubr.bf16.gmra.mxu0 %v281
    %v565 = vpop.f32.mrf.mxu0
    %v566 = vadd.f32 0.0, %v565
    %v567 = vpop.f32.mrf.mxu0
    %v568 = vpop.f32.mrf.mxu0
    %v569 = vadd.f32 0.0, %v568
    %v570 = vpop.f32.mrf.mxu0
    %571 = vmatprep.mubr.bf16.mxu0 0
    %572 = vmatmul.mubr.bf16.gmra.mxu0 %v282
    %v573 = vpop.f32.mrf.mxu0
    %v574 = vadd.f32 0.0, %v573
    %v575 = vpop.f32.mrf.mxu0
    %v576 = vpop.f32.mrf.mxu0
    %v577 = vadd.f32 0.0, %v576
    %v578 = vpop.f32.mrf.mxu0
    %579 = vdwg.mxu0
    %v580 = vpack.c.bf16 %v393, %v390
    %v581 = vpack.c.bf16 %v401, %v398
    %v582 = vpack.c.bf16 %v409, %v406
    %v583 = vpack.c.bf16 %v417, %v414
    %v584 = vpack.c.bf16 %v425, %v422
    %v585 = vpack.c.bf16 %v433, %v430
    %v586 = vpack.c.bf16 %v441, %v438
    %v587 = vpack.c.bf16 %v449, %v446
    %v588 = vpack.c.bf16 %v457, %v454
    %v589 = vpack.c.bf16 %v465, %v462
    %v590 = vpack.c.bf16 %v473, %v470
    %v591 = vpack.c.bf16 %v481, %v478
    %v592 = vpack.c.bf16 %v489, %v486
    %v593 = vpack.c.bf16 %v497, %v494
    %v594 = vpack.c.bf16 %v505, %v502
    %v595 = vpack.c.bf16 %v513, %v510
    %v596 = vpack.c.bf16 %v521, %v518
    %v597 = vpack.c.bf16 %v529, %v526
    %v598 = vpack.c.bf16 %v537, %v534
    %v599 = vpack.c.bf16 %v545, %v542
    %v600 = vpack.c.bf16 %v553, %v550
    %v601 = vpack.c.bf16 %v561, %v558
    %v602 = vpack.c.bf16 %v569, %v566
    %v603 = vpack.c.bf16 %v577, %v574
    %v604 = vld [vmem:[#allocation5] sm:$0xff]
    %v605 = vld [vmem:[#allocation5 + $0x8] sm:$0xf]
    %v606 = vld [vmem:[#allocation5 + $0xc] sm:$0xff]
    %v607 = vld [vmem:[#allocation5 + $0x14] sm:$0xf]
    %v608 = vld [vmem:[#allocation5 + $0x18] sm:$0xff]
    %v609 = vld [vmem:[#allocation5 + $0x20] sm:$0xf]
    %v610 = vld [vmem:[#allocation5 + $0x24] sm:$0xff]
    %v611 = vld [vmem:[#allocation5 + $0x2c] sm:$0xf]
    %v612 = vld [vmem:[#allocation5 + $0x30] sm:$0xff]
    %v613 = vld [vmem:[#allocation5 + $0x38] sm:$0xf]
    %v614 = vld [vmem:[#allocation5 + $0x3c] sm:$0xff]
    %v615 = vld [vmem:[#allocation5 + $0x44] sm:$0xf]
    %v616 = vld [vmem:[#allocation5 + $0x48] sm:$0xff]
    %v617 = vld [vmem:[#allocation5 + $0x50] sm:$0xf]
    %v618 = vld [vmem:[#allocation5 + $0x54] sm:$0xff]
    %v619 = vld [vmem:[#allocation5 + $0x5c] sm:$0xf]
    %v620 = vld [vmem:[#allocation5 + $0x60] sm:$0xff]
    %v621 = vld [vmem:[#allocation5 + $0x68] sm:$0xf]
    %v622 = vld [vmem:[#allocation5 + $0x6c] sm:$0xff]
    %v623 = vld [vmem:[#allocation5 + $0x74] sm:$0xf]
    %v624 = vld [vmem:[#allocation5 + $0x78] sm:$0xff]
    %v625 = vld [vmem:[#allocation5 + $0x80] sm:$0xf]
    %v626 = vld [vmem:[#allocation5 + $0x84] sm:$0xff]
    %v627 = vld [vmem:[#allocation5 + $0x8c] sm:$0xf]
    %v628 = vld [vmem:[#allocation5 + $0x90] sm:$0xff]
    %v629 = vld [vmem:[#allocation5 + $0x98] sm:$0xf]
    %v630 = vld [vmem:[#allocation5 + $0x9c] sm:$0xff]
    %v631 = vld [vmem:[#allocation5 + $0xa4] sm:$0xf]
    %v632 = vld [vmem:[#allocation5 + $0xa8] sm:$0xff]
    %v633 = vld [vmem:[#allocation5 + $0xb0] sm:$0xf]
    %v634 = vld [vmem:[#allocation5 + $0xb4] sm:$0xff]
    %v635 = vld [vmem:[#allocation5 + $0xbc] sm:$0xf]
    %v636 = vld [vmem:[#allocation5 + $0xc0] sm:$0xff]
    %v637 = vld [vmem:[#allocation5 + $0xc8] sm:$0xf]
    %v638 = vld [vmem:[#allocation5 + $0xcc] sm:$0xff]
    %v639 = vld [vmem:[#allocation5 + $0xd4] sm:$0xf]
    %v640 = vld [vmem:[#allocation5 + $0xd8] sm:$0xff]
    %v641 = vld [vmem:[#allocation5 + $0xe0] sm:$0xf]
    %v642 = vld [vmem:[#allocation5 + $0xe4] sm:$0xff]
    %v643 = vld [vmem:[#allocation5 + $0xec] sm:$0xf]
    %v644 = vld [vmem:[#allocation5 + $0xf0] sm:$0xff]
    %v645 = vld [vmem:[#allocation5 + $0xf8] sm:$0xf]
    %v646 = vld [vmem:[#allocation5 + $0xfc] sm:$0xff]
    %v647 = vld [vmem:[#allocation5 + $0x104] sm:$0xf]
    %v648 = vld [vmem:[#allocation5 + $0x108] sm:$0xff]
    %v649 = vld [vmem:[#allocation5 + $0x110] sm:$0xf]
    %v650 = vld [vmem:[#allocation5 + $0x114] sm:$0xff]
    %v651 = vld [vmem:[#allocation5 + $0x11c] sm:$0xf]
    %v652 = vld [vmem:[#allocation5 + $0x120] sm:$0xff]
    %v653 = vld [vmem:[#allocation5 + $0x128] sm:$0xf]
    %v654 = vld [vmem:[#allocation5 + $0x12c] sm:$0xff]
    %v655 = vld [vmem:[#allocation5 + $0x134] sm:$0xf]
    %v656 = vld [vmem:[#allocation5 + $0x138] sm:$0xff]
    %v657 = vld [vmem:[#allocation5 + $0x140] sm:$0xf]
    %v658 = vld [vmem:[#allocation5 + $0x144] sm:$0xff]
    %v659 = vld [vmem:[#allocation5 + $0x14c] sm:$0xf]
    %v660 = vld [vmem:[#allocation5 + $0x150] sm:$0xff]
    %v661 = vld [vmem:[#allocation5 + $0x158] sm:$0xf]
    %v662 = vld [vmem:[#allocation5 + $0x15c] sm:$0xff]
    %v663 = vld [vmem:[#allocation5 + $0x164] sm:$0xf]
    %v664 = vld [vmem:[#allocation5 + $0x168] sm:$0xff]
    %v665 = vld [vmem:[#allocation5 + $0x170] sm:$0xf]
    %v666 = vld [vmem:[#allocation5 + $0x174] sm:$0xff]
    %v667 = vld [vmem:[#allocation5 + $0x17c] sm:$0xf]
    %v668 = vld [vmem:[#allocation5 + $0x180] sm:$0xff]
    %v669 = vld [vmem:[#allocation5 + $0x188] sm:$0xf]
    %v670 = vld [vmem:[#allocation5 + $0x18c] sm:$0xff]
    %v671 = vld [vmem:[#allocation5 + $0x194] sm:$0xf]
    %v672 = vld [vmem:[#allocation5 + $0x198] sm:$0xff]
    %v673 = vld [vmem:[#allocation5 + $0x1a0] sm:$0xf]
    %v674 = vld [vmem:[#allocation5 + $0x1a4] sm:$0xff]
    %v675 = vld [vmem:[#allocation5 + $0x1ac] sm:$0xf]
    %v676 = vld [vmem:[#allocation5 + $0x1b0] sm:$0xff]
    %v677 = vld [vmem:[#allocation5 + $0x1b8] sm:$0xf]
    %v678 = vld [vmem:[#allocation5 + $0x1bc] sm:$0xff]
    %v679 = vld [vmem:[#allocation5 + $0x1c4] sm:$0xf]
    %v680 = vld [vmem:[#allocation5 + $0x1c8] sm:$0xff]
    %v681 = vld [vmem:[#allocation5 + $0x1d0] sm:$0xf]
    %v682 = vld [vmem:[#allocation5 + $0x1d4] sm:$0xff]
    %v683 = vld [vmem:[#allocation5 + $0x1dc] sm:$0xf]
    %v684 = vld [vmem:[#allocation5 + $0x1e0] sm:$0xff]
    %v685 = vld [vmem:[#allocation5 + $0x1e8] sm:$0xf]
    %v686 = vld [vmem:[#allocation5 + $0x1ec] sm:$0xff]
    %v687 = vld [vmem:[#allocation5 + $0x1f4] sm:$0xf]
    %v688 = vld [vmem:[#allocation5 + $0x1f8] sm:$0xff]
    %v689 = vld [vmem:[#allocation5 + $0x200] sm:$0xf]
    %v690 = vld [vmem:[#allocation5 + $0x204] sm:$0xff]
    %v691 = vld [vmem:[#allocation5 + $0x20c] sm:$0xf]
    %v692 = vld [vmem:[#allocation5 + $0x210] sm:$0xff]
    %v693 = vld [vmem:[#allocation5 + $0x218] sm:$0xf]
    %v694 = vld [vmem:[#allocation5 + $0x21c] sm:$0xff]
    %v695 = vld [vmem:[#allocation5 + $0x224] sm:$0xf]
    %v696 = vld [vmem:[#allocation5 + $0x228] sm:$0xff]
    %v697 = vld [vmem:[#allocation5 + $0x230] sm:$0xf]
    %v698 = vld [vmem:[#allocation5 + $0x234] sm:$0xff]
    %v699 = vld [vmem:[#allocation5 + $0x23c] sm:$0xf]
    %v700 = vld [vmem:[%s3] sm:$0x1]
    %v702 = vlaneseq
    %v703 = vshrl.u32 %v702, 7
    %v704 = vsub.s32 0, %v703
    %v705 = vrot.slane %v700, %v704
    %v803 = vunpack.c.l.b16 %v604
    %v804 = vunpack.c.h.b16 %v604
    %v805 = vunpack.c.l.b16 %v605
    %v806 = vunpack.c.l.b16 %v606
    %v807 = vunpack.c.h.b16 %v606
    %v808 = vunpack.c.l.b16 %v607
    %v809 = vunpack.c.l.b16 %v608
    %v810 = vunpack.c.h.b16 %v608
    %v811 = vunpack.c.l.b16 %v609
    %v812 = vunpack.c.l.b16 %v610
    %v813 = vunpack.c.h.b16 %v610
    %v814 = vunpack.c.l.b16 %v611
    %v815 = vunpack.c.l.b16 %v612
    %v816 = vunpack.c.h.b16 %v612
    %v817 = vunpack.c.l.b16 %v613
    %v818 = vunpack.c.l.b16 %v614
    %v819 = vunpack.c.h.b16 %v614
    %v820 = vunpack.c.l.b16 %v615
    %v821 = vunpack.c.l.b16 %v616
    %v822 = vunpack.c.h.b16 %v616
    %v823 = vunpack.c.l.b16 %v617
    %v824 = vunpack.c.l.b16 %v618
    %v825 = vunpack.c.h.b16 %v618
    %v826 = vunpack.c.l.b16 %v619
    %v827 = vunpack.c.l.b16 %v620
    %v828 = vunpack.c.h.b16 %v620
    %v829 = vunpack.c.l.b16 %v621
    %v830 = vunpack.c.l.b16 %v622
    %v831 = vunpack.c.h.b16 %v622
    %v832 = vunpack.c.l.b16 %v623
    %v833 = vunpack.c.l.b16 %v624
    %v834 = vunpack.c.h.b16 %v624
    %v835 = vunpack.c.l.b16 %v625
    %v836 = vunpack.c.l.b16 %v626
    %v837 = vunpack.c.h.b16 %v626
    %v838 = vunpack.c.l.b16 %v627
    %v839 = vunpack.c.l.b16 %v628
    %v840 = vunpack.c.h.b16 %v628
    %v841 = vunpack.c.l.b16 %v629
    %v842 = vunpack.c.l.b16 %v630
    %v843 = vunpack.c.h.b16 %v630
    %v844 = vunpack.c.l.b16 %v631
    %v845 = vunpack.c.l.b16 %v632
    %v846 = vunpack.c.h.b16 %v632
    %v847 = vunpack.c.l.b16 %v633
    %v848 = vunpack.c.l.b16 %v634
    %v849 = vunpack.c.h.b16 %v634
    %v850 = vunpack.c.l.b16 %v635
    %v851 = vunpack.c.l.b16 %v636
    %v852 = vunpack.c.h.b16 %v636
    %v853 = vunpack.c.l.b16 %v637
    %v854 = vunpack.c.l.b16 %v638
    %v855 = vunpack.c.h.b16 %v638
    %v856 = vunpack.c.l.b16 %v639
    %v857 = vunpack.c.l.b16 %v640
    %v858 = vunpack.c.h.b16 %v640
    %v859 = vunpack.c.l.b16 %v641
    %v860 = vunpack.c.l.b16 %v642
    %v861 = vunpack.c.h.b16 %v642
    %v862 = vunpack.c.l.b16 %v643
    %v863 = vunpack.c.l.b16 %v644
    %v864 = vunpack.c.h.b16 %v644
    %v865 = vunpack.c.l.b16 %v645
    %v866 = vunpack.c.l.b16 %v646
    %v867 = vunpack.c.h.b16 %v646
    %v868 = vunpack.c.l.b16 %v647
    %v869 = vunpack.c.l.b16 %v648
    %v870 = vunpack.c.h.b16 %v648
    %v871 = vunpack.c.l.b16 %v649
    %v872 = vunpack.c.l.b16 %v650
    %v873 = vunpack.c.h.b16 %v650
    %v874 = vunpack.c.l.b16 %v651
    %v875 = vunpack.c.l.b16 %v652
    %v876 = vunpack.c.h.b16 %v652
    %v877 = vunpack.c.l.b16 %v653
    %v878 = vunpack.c.l.b16 %v654
    %v879 = vunpack.c.h.b16 %v654
    %v880 = vunpack.c.l.b16 %v655
    %v881 = vunpack.c.l.b16 %v656
    %v882 = vunpack.c.h.b16 %v656
    %v883 = vunpack.c.l.b16 %v657
    %v884 = vunpack.c.l.b16 %v658
    %v885 = vunpack.c.h.b16 %v658
    %v886 = vunpack.c.l.b16 %v659
    %v887 = vunpack.c.l.b16 %v660
    %v888 = vunpack.c.h.b16 %v660
    %v889 = vunpack.c.l.b16 %v661
    %v890 = vunpack.c.l.b16 %v662
    %v891 = vunpack.c.h.b16 %v662
    %v892 = vunpack.c.l.b16 %v663
    %v893 = vunpack.c.l.b16 %v664
    %v894 = vunpack.c.h.b16 %v664
    %v895 = vunpack.c.l.b16 %v665
    %v896 = vunpack.c.l.b16 %v666
    %v897 = vunpack.c.h.b16 %v666
    %v898 = vunpack.c.l.b16 %v667
    %v899 = vunpack.c.l.b16 %v668
    %v900 = vunpack.c.h.b16 %v668
    %v901 = vunpack.c.l.b16 %v669
    %v902 = vunpack.c.l.b16 %v670
    %v903 = vunpack.c.h.b16 %v670
    %v904 = vunpack.c.l.b16 %v671
    %v905 = vunpack.c.l.b16 %v672
    %v906 = vunpack.c.h.b16 %v672
    %v907 = vunpack.c.l.b16 %v673
    %v908 = vunpack.c.l.b16 %v674
    %v909 = vunpack.c.h.b16 %v674
    %v910 = vunpack.c.l.b16 %v675
    %v911 = vunpack.c.l.b16 %v676
    %v912 = vunpack.c.h.b16 %v676
    %v913 = vunpack.c.l.b16 %v677
    %v914 = vunpack.c.l.b16 %v678
    %v915 = vunpack.c.h.b16 %v678
    %v916 = vunpack.c.l.b16 %v679
    %v917 = vunpack.c.l.b16 %v680
    %v918 = vunpack.c.h.b16 %v680
    %v919 = vunpack.c.l.b16 %v681
    %v920 = vunpack.c.l.b16 %v682
    %v921 = vunpack.c.h.b16 %v682
    %v922 = vunpack.c.l.b16 %v683
    %v923 = vunpack.c.l.b16 %v684
    %v924 = vunpack.c.h.b16 %v684
    %v925 = vunpack.c.l.b16 %v685
    %v926 = vunpack.c.l.b16 %v686
    %v927 = vunpack.c.h.b16 %v686
    %v928 = vunpack.c.l.b16 %v687
    %v929 = vunpack.c.l.b16 %v688
    %v930 = vunpack.c.h.b16 %v688
    %v931 = vunpack.c.l.b16 %v689
    %v932 = vunpack.c.l.b16 %v690
    %v933 = vunpack.c.h.b16 %v690
    %v934 = vunpack.c.l.b16 %v691
    %v935 = vunpack.c.l.b16 %v692
    %v936 = vunpack.c.h.b16 %v692
    %v937 = vunpack.c.l.b16 %v693
    %v938 = vunpack.c.l.b16 %v694
    %v939 = vunpack.c.h.b16 %v694
    %v940 = vunpack.c.l.b16 %v695
    %v941 = vunpack.c.l.b16 %v696
    %v942 = vunpack.c.h.b16 %v696
    %v943 = vunpack.c.l.b16 %v697
    %v944 = vunpack.c.l.b16 %v698
    %v945 = vunpack.c.h.b16 %v698
    %v946 = vunpack.c.l.b16 %v699
    %v947 = vpack.c.b16 %v806, %v803
    %v948 = vpack.c.b16 %v807, %v804
    %v949 = vpack.c.b16 %v808, %v805
    %v950 = vpack.c.b16 %v812, %v809
    %v951 = vpack.c.b16 %v813, %v810
    %v952 = vpack.c.b16 %v814, %v811
    %v953 = vpack.c.b16 %v818, %v815
    %v954 = vpack.c.b16 %v819, %v816
    %v955 = vpack.c.b16 %v820, %v817
    %v956 = vpack.c.b16 %v824, %v821
    %v957 = vpack.c.b16 %v825, %v822
    %v958 = vpack.c.b16 %v826, %v823
    %v959 = vpack.c.b16 %v830, %v827
    %v960 = vpack.c.b16 %v831, %v828
    %v961 = vpack.c.b16 %v832, %v829
    %v962 = vpack.c.b16 %v836, %v833
    %v963 = vpack.c.b16 %v837, %v834
    %v964 = vpack.c.b16 %v838, %v835
    %v965 = vpack.c.b16 %v842, %v839
    %v966 = vpack.c.b16 %v843, %v840
    %v967 = vpack.c.b16 %v844, %v841
    %v968 = vpack.c.b16 %v848, %v845
    %v969 = vpack.c.b16 %v849, %v846
    %v970 = vpack.c.b16 %v850, %v847
    %v971 = vpack.c.b16 %v854, %v851
    %v972 = vpack.c.b16 %v855, %v852
    %v973 = vpack.c.b16 %v856, %v853
    %v974 = vpack.c.b16 %v860, %v857
    %v975 = vpack.c.b16 %v861, %v858
    %v976 = vpack.c.b16 %v862, %v859
    %v977 = vpack.c.b16 %v866, %v863
    %v978 = vpack.c.b16 %v867, %v864
    %v979 = vpack.c.b16 %v868, %v865
    %v980 = vpack.c.b16 %v872, %v869
    %v981 = vpack.c.b16 %v873, %v870
    %v982 = vpack.c.b16 %v874, %v871
    %v983 = vpack.c.b16 %v878, %v875
    %v984 = vpack.c.b16 %v879, %v876
    %v985 = vpack.c.b16 %v880, %v877
    %v986 = vpack.c.b16 %v884, %v881
    %v987 = vpack.c.b16 %v885, %v882
    %v988 = vpack.c.b16 %v886, %v883
    %v989 = vpack.c.b16 %v890, %v887
    %v990 = vpack.c.b16 %v891, %v888
    %v991 = vpack.c.b16 %v892, %v889
    %v992 = vpack.c.b16 %v896, %v893
    %v993 = vpack.c.b16 %v897, %v894
    %v994 = vpack.c.b16 %v898, %v895
    %v995 = vpack.c.b16 %v902, %v899
    %v996 = vpack.c.b16 %v903, %v900
    %v997 = vpack.c.b16 %v904, %v901
    %v998 = vpack.c.b16 %v908, %v905
    %v999 = vpack.c.b16 %v909, %v906
    %v1000 = vpack.c.b16 %v910, %v907
    %v1001 = vpack.c.b16 %v914, %v911
    %v1002 = vpack.c.b16 %v915, %v912
    %v1003 = vpack.c.b16 %v916, %v913
    %v1004 = vpack.c.b16 %v920, %v917
    %v1005 = vpack.c.b16 %v921, %v918
    %v1006 = vpack.c.b16 %v922, %v919
    %v1007 = vpack.c.b16 %v926, %v923
    %v1008 = vpack.c.b16 %v927, %v924
    %v1009 = vpack.c.b16 %v928, %v925
    %v1010 = vpack.c.b16 %v932, %v929
    %v1011 = vpack.c.b16 %v933, %v930
    %v1012 = vpack.c.b16 %v934, %v931
    %v1013 = vpack.c.b16 %v938, %v935
    %v1014 = vpack.c.b16 %v939, %v936
    %v1015 = vpack.c.b16 %v940, %v937
    %v1016 = vpack.c.b16 %v944, %v941
    %v1017 = vpack.c.b16 %v945, %v942
    %v1018 = vpack.c.b16 %v946, %v943
    %1091 = vmatprep.subr.bf16.mxu0 0
    %1092 = vmatpush1.bf16.msra.mxu0 %v587
    %1093 = vmatprep.subr.bf16.mxu0 0
    %1094 = vmatpush1.bf16.msra.mxu0 %v586
    %1095 = vmatprep.subr.bf16.mxu0 0
    %1096 = vmatpush1.bf16.msra.mxu0 %v585
    %1097 = vmatprep.subr.bf16.mxu0 0
    %1098 = vmatpush1.bf16.msra.mxu0 %v584
    %1099 = vmatprep.subr.bf16.mxu0 0
    %1100 = vmatpush1.bf16.msra.mxu0 %v583
    %1101 = vmatprep.subr.bf16.mxu0 0
    %1102 = vmatpush1.bf16.msra.mxu0 %v582
    %1103 = vmatprep.subr.bf16.mxu0 0
    %1104 = vmatpush1.bf16.msra.mxu0 %v581
    %1105 = vmatprep.subr.bf16.mxu0 0
    %1106 = vmatpush1.bf16.msra.mxu0 %v580
    %1107 = vmatprep.subr.bf16.mxu0 0
    %1108 = vmatpush2.bf16.msra.mxu0 %v595
    %1109 = vmatprep.subr.bf16.mxu0 0
    %1110 = vmatpush2.bf16.msra.mxu0 %v594
    %1111 = vmatprep.subr.bf16.mxu0 0
    %1112 = vmatpush2.bf16.msra.mxu0 %v593
    %1113 = vmatprep.subr.bf16.mxu0 0
    %1114 = vmatpush2.bf16.msra.mxu0 %v592
    %1115 = vmatprep.subr.bf16.mxu0 0
    %1116 = vmatpush2.bf16.msra.mxu0 %v591
    %1117 = vmatprep.subr.bf16.mxu0 0
    %1118 = vmatpush2.bf16.msra.mxu0 %v590
    %1119 = vmatprep.subr.bf16.mxu0 0
    %1120 = vmatpush2.bf16.msra.mxu0 %v589
    %1121 = vmatprep.subr.bf16.mxu0 0
    %1122 = vmatpush2.bf16.msra.mxu0 %v588
    %1123 = vmatprep.mubr.bf16.mxu0 %v948
    %1124 = vmatmul.mubr.bf16.gmra.mxu0 %v947
    %v1125 = vpop.f32.mrf.mxu0
    %v1126 = vadd.f32 %v705, %v1125
    %v1127 = vpop.f32.mrf.mxu0
    %v1128 = vpop.f32.mrf.mxu0
    %v1129 = vadd.f32 %v705, %v1128
    %v1130 = vpop.f32.mrf.mxu0
    %1131 = vmatprep.mubr.bf16.mxu0 %v951
    %1132 = vmatmul.mubr.bf16.gmra.mxu0 %v950
    %v1133 = vpop.f32.mrf.mxu0
    %v1134 = vadd.f32 %v705, %v1133
    %v1135 = vpop.f32.mrf.mxu0
    %v1136 = vpop.f32.mrf.mxu0
    %v1137 = vadd.f32 %v705, %v1136
    %v1138 = vpop.f32.mrf.mxu0
    %1139 = vmatprep.mubr.bf16.mxu0 %v954
    %1140 = vmatmul.mubr.bf16.gmra.mxu0 %v953
    %v1141 = vpop.f32.mrf.mxu0
    %v1142 = vadd.f32 %v705, %v1141
    %v1143 = vpop.f32.mrf.mxu0
    %v1144 = vpop.f32.mrf.mxu0
    %v1145 = vadd.f32 %v705, %v1144
    %v1146 = vpop.f32.mrf.mxu0
    %1147 = vmatprep.mubr.bf16.mxu0 %v957
    %1148 = vmatmul.mubr.bf16.gmra.mxu0 %v956
    %v1149 = vpop.f32.mrf.mxu0
    %v1150 = vadd.f32 %v705, %v1149
    %v1151 = vpop.f32.mrf.mxu0
    %v1152 = vpop.f32.mrf.mxu0
    %v1153 = vadd.f32 %v705, %v1152
    %v1154 = vpop.f32.mrf.mxu0
    %1155 = vmatprep.mubr.bf16.mxu0 %v960
    %1156 = vmatmul.mubr.bf16.gmra.mxu0 %v959
    %v1157 = vpop.f32.mrf.mxu0
    %v1158 = vadd.f32 %v705, %v1157
    %v1159 = vpop.f32.mrf.mxu0
    %v1160 = vpop.f32.mrf.mxu0
    %v1161 = vadd.f32 %v705, %v1160
    %v1162 = vpop.f32.mrf.mxu0
    %1163 = vmatprep.mubr.bf16.mxu0 %v963
    %1164 = vmatmul.mubr.bf16.gmra.mxu0 %v962
    %v1165 = vpop.f32.mrf.mxu0
    %v1166 = vadd.f32 %v705, %v1165
    %v1167 = vpop.f32.mrf.mxu0
    %v1168 = vpop.f32.mrf.mxu0
    %v1169 = vadd.f32 %v705, %v1168
    %v1170 = vpop.f32.mrf.mxu0
    %1171 = vmatprep.mubr.bf16.mxu0 %v966
    %1172 = vmatmul.mubr.bf16.gmra.mxu0 %v965
    %v1173 = vpop.f32.mrf.mxu0
    %v1174 = vadd.f32 %v705, %v1173
    %v1175 = vpop.f32.mrf.mxu0
    %v1176 = vpop.f32.mrf.mxu0
    %v1177 = vadd.f32 %v705, %v1176
    %v1178 = vpop.f32.mrf.mxu0
    %1179 = vmatprep.mubr.bf16.mxu0 %v969
    %1180 = vmatmul.mubr.bf16.gmra.mxu0 %v968
    %v1181 = vpop.f32.mrf.mxu0
    %v1182 = vadd.f32 %v705, %v1181
    %v1183 = vpop.f32.mrf.mxu0
    %v1184 = vpop.f32.mrf.mxu0
    %v1185 = vadd.f32 %v705, %v1184
    %v1186 = vpop.f32.mrf.mxu0
    %1187 = vmatprep.mubr.bf16.mxu0 %v972
    %1188 = vmatmul.mubr.bf16.gmra.mxu0 %v971
    %v1189 = vpop.f32.mrf.mxu0
    %v1190 = vadd.f32 %v705, %v1189
    %v1191 = vpop.f32.mrf.mxu0
    %v1192 = vpop.f32.mrf.mxu0
    %v1193 = vadd.f32 %v705, %v1192
    %v1194 = vpop.f32.mrf.mxu0
    %1195 = vmatprep.mubr.bf16.mxu0 %v975
    %1196 = vmatmul.mubr.bf16.gmra.mxu0 %v974
    %v1197 = vpop.f32.mrf.mxu0
    %v1198 = vadd.f32 %v705, %v1197
    %v1199 = vpop.f32.mrf.mxu0
    %v1200 = vpop.f32.mrf.mxu0
    %v1201 = vadd.f32 %v705, %v1200
    %v1202 = vpop.f32.mrf.mxu0
    %1203 = vmatprep.mubr.bf16.mxu0 %v978
    %1204 = vmatmul.mubr.bf16.gmra.mxu0 %v977
    %v1205 = vpop.f32.mrf.mxu0
    %v1206 = vadd.f32 %v705, %v1205
    %v1207 = vpop.f32.mrf.mxu0
    %v1208 = vpop.f32.mrf.mxu0
    %v1209 = vadd.f32 %v705, %v1208
    %v1210 = vpop.f32.mrf.mxu0
    %1211 = vmatprep.mubr.bf16.mxu0 %v981
    %1212 = vmatmul.mubr.bf16.gmra.mxu0 %v980
    %v1213 = vpop.f32.mrf.mxu0
    %v1214 = vadd.f32 %v705, %v1213
    %v1215 = vpop.f32.mrf.mxu0
    %v1216 = vpop.f32.mrf.mxu0
    %v1217 = vadd.f32 %v705, %v1216
    %v1218 = vpop.f32.mrf.mxu0
    %1219 = vmatprep.mubr.bf16.mxu0 %v984
    %1220 = vmatmul.mubr.bf16.gmra.mxu0 %v983
    %v1221 = vpop.f32.mrf.mxu0
    %v1222 = vadd.f32 %v705, %v1221
    %v1223 = vpop.f32.mrf.mxu0
    %v1224 = vpop.f32.mrf.mxu0
    %v1225 = vadd.f32 %v705, %v1224
    %v1226 = vpop.f32.mrf.mxu0
    %1227 = vmatprep.mubr.bf16.mxu0 %v987
    %1228 = vmatmul.mubr.bf16.gmra.mxu0 %v986
    %v1229 = vpop.f32.mrf.mxu0
    %v1230 = vadd.f32 %v705, %v1229
    %v1231 = vpop.f32.mrf.mxu0
    %v1232 = vpop.f32.mrf.mxu0
    %v1233 = vadd.f32 %v705, %v1232
    %v1234 = vpop.f32.mrf.mxu0
    %1235 = vmatprep.mubr.bf16.mxu0 %v990
    %1236 = vmatmul.mubr.bf16.gmra.mxu0 %v989
    %v1237 = vpop.f32.mrf.mxu0
    %v1238 = vadd.f32 %v705, %v1237
    %v1239 = vpop.f32.mrf.mxu0
    %v1240 = vpop.f32.mrf.mxu0
    %v1241 = vadd.f32 %v705, %v1240
    %v1242 = vpop.f32.mrf.mxu0
    %1243 = vmatprep.mubr.bf16.mxu0 %v993
    %1244 = vmatmul.mubr.bf16.gmra.mxu0 %v992
    %v1245 = vpop.f32.mrf.mxu0
    %v1246 = vadd.f32 %v705, %v1245
    %v1247 = vpop.f32.mrf.mxu0
    %v1248 = vpop.f32.mrf.mxu0
    %v1249 = vadd.f32 %v705, %v1248
    %v1250 = vpop.f32.mrf.mxu0
    %1251 = vmatprep.mubr.bf16.mxu0 %v996
    %1252 = vmatmul.mubr.bf16.gmra.mxu0 %v995
    %v1253 = vpop.f32.mrf.mxu0
    %v1254 = vadd.f32 %v705, %v1253
    %v1255 = vpop.f32.mrf.mxu0
    %v1256 = vpop.f32.mrf.mxu0
    %v1257 = vadd.f32 %v705, %v1256
    %v1258 = vpop.f32.mrf.mxu0
    %1259 = vmatprep.mubr.bf16.mxu0 %v999
    %1260 = vmatmul.mubr.bf16.gmra.mxu0 %v998
    %v1261 = vpop.f32.mrf.mxu0
    %v1262 = vadd.f32 %v705, %v1261
    %v1263 = vpop.f32.mrf.mxu0
    %v1264 = vpop.f32.mrf.mxu0
    %v1265 = vadd.f32 %v705, %v1264
    %v1266 = vpop.f32.mrf.mxu0
    %1267 = vmatprep.mubr.bf16.mxu0 %v1002
    %1268 = vmatmul.mubr.bf16.gmra.mxu0 %v1001
    %v1269 = vpop.f32.mrf.mxu0
    %v1270 = vadd.f32 %v705, %v1269
    %v1271 = vpop.f32.mrf.mxu0
    %v1272 = vpop.f32.mrf.mxu0
    %v1273 = vadd.f32 %v705, %v1272
    %v1274 = vpop.f32.mrf.mxu0
    %1275 = vmatprep.mubr.bf16.mxu0 %v1005
    %1276 = vmatmul.mubr.bf16.gmra.mxu0 %v1004
    %v1277 = vpop.f32.mrf.mxu0
    %v1278 = vadd.f32 %v705, %v1277
    %v1279 = vpop.f32.mrf.mxu0
    %v1280 = vpop.f32.mrf.mxu0
    %v1281 = vadd.f32 %v705, %v1280
    %v1282 = vpop.f32.mrf.mxu0
    %1283 = vmatprep.mubr.bf16.mxu0 %v1008
    %1284 = vmatmul.mubr.bf16.gmra.mxu0 %v1007
    %v1285 = vpop.f32.mrf.mxu0
    %v1286 = vadd.f32 %v705, %v1285
    %v1287 = vpop.f32.mrf.mxu0
    %v1288 = vpop.f32.mrf.mxu0
    %v1289 = vadd.f32 %v705, %v1288
    %v1290 = vpop.f32.mrf.mxu0
    %1291 = vmatprep.mubr.bf16.mxu0 %v1011
    %1292 = vmatmul.mubr.bf16.gmra.mxu0 %v1010
    %v1293 = vpop.f32.mrf.mxu0
    %v1294 = vadd.f32 %v705, %v1293
    %v1295 = vpop.f32.mrf.mxu0
    %v1296 = vpop.f32.mrf.mxu0
    %v1297 = vadd.f32 %v705, %v1296
    %v1298 = vpop.f32.mrf.mxu0
    %1299 = vmatprep.mubr.bf16.mxu0 %v1014
    %1300 = vmatmul.mubr.bf16.gmra.mxu0 %v1013
    %v1301 = vpop.f32.mrf.mxu0
    %v1302 = vadd.f32 %v705, %v1301
    %v1303 = vpop.f32.mrf.mxu0
    %v1304 = vpop.f32.mrf.mxu0
    %v1305 = vadd.f32 %v705, %v1304
    %v1306 = vpop.f32.mrf.mxu0
    %1307 = vmatprep.mubr.bf16.mxu0 %v1017
    %1308 = vmatmul.mubr.bf16.gmra.mxu0 %v1016
    %v1309 = vpop.f32.mrf.mxu0
    %v1310 = vadd.f32 %v705, %v1309
    %v1311 = vpop.f32.mrf.mxu0
    %v1312 = vpop.f32.mrf.mxu0
    %v1313 = vadd.f32 %v705, %v1312
    %v1314 = vpop.f32.mrf.mxu0
    %1315 = vdwg.mxu0
    %1316 = vmatprep.subr.bf16.mxu0 0
    %1317 = vmatpush1.bf16.msra.mxu0 %v603
    %1318 = vmatprep.subr.bf16.mxu0 0
    %1319 = vmatpush1.bf16.msra.mxu0 %v602
    %1320 = vmatprep.subr.bf16.mxu0 0
    %1321 = vmatpush1.bf16.msra.mxu0 %v601
    %1322 = vmatprep.subr.bf16.mxu0 0
    %1323 = vmatpush1.bf16.msra.mxu0 %v600
    %1324 = vmatprep.subr.bf16.mxu0 0
    %1325 = vmatpush1.bf16.msra.mxu0 %v599
    %1326 = vmatprep.subr.bf16.mxu0 0
    %1327 = vmatpush1.bf16.msra.mxu0 %v598
    %1328 = vmatprep.subr.bf16.mxu0 0
    %1329 = vmatpush1.bf16.msra.mxu0 %v597
    %1330 = vmatprep.subr.bf16.mxu0 0
    %1331 = vmatpush1.bf16.msra.mxu0 %v596
    %1332 = vmatprep.subr.bf16.mxu0 0
    %1333 = vmatpush2.bf16.msra.mxu0 0
    %1334 = vmatprep.subr.bf16.mxu0 0
    %1335 = vmatpush2.bf16.msra.mxu0 0
    %1336 = vmatprep.subr.bf16.mxu0 0
    %1337 = vmatpush2.bf16.msra.mxu0 0
    %1338 = vmatprep.subr.bf16.mxu0 0
    %1339 = vmatpush2.bf16.msra.mxu0 0
    %1340 = vmatprep.subr.bf16.mxu0 0
    %1341 = vmatpush2.bf16.msra.mxu0 0
    %1342 = vmatprep.subr.bf16.mxu0 0
    %1343 = vmatpush2.bf16.msra.mxu0 0
    %1344 = vmatprep.subr.bf16.mxu0 0
    %1345 = vmatpush2.bf16.msra.mxu0 0
    %1346 = vmatprep.subr.bf16.mxu0 0
    %1347 = vmatpush2.bf16.msra.mxu0 0
    %1348 = vmatprep.mubr.bf16.mxu0 0
    %1349 = vmatmul.mubr.bf16.gmra.mxu0 %v949
    %v1350 = vpop.f32.mrf.mxu0
    %v1351 = vadd.f32 %v1126, %v1350
    %v1352 = vpop.f32.mrf.mxu0
    %v1353 = vpop.f32.mrf.mxu0
    %v1354 = vadd.f32 %v1129, %v1353
    %v1355 = vpop.f32.mrf.mxu0
    %1356 = vmatprep.mubr.bf16.mxu0 0
    %1357 = vmatmul.mubr.bf16.gmra.mxu0 %v952
    %v1358 = vpop.f32.mrf.mxu0
    %v1359 = vadd.f32 %v1134, %v1358
    %v1360 = vpop.f32.mrf.mxu0
    %v1361 = vpop.f32.mrf.mxu0
    %v1362 = vadd.f32 %v1137, %v1361
    %v1363 = vpop.f32.mrf.mxu0
    %1364 = vmatprep.mubr.bf16.mxu0 0
    %1365 = vmatmul.mubr.bf16.gmra.mxu0 %v955
    %v1366 = vpop.f32.mrf.mxu0
    %v1367 = vadd.f32 %v1142, %v1366
    %v1368 = vpop.f32.mrf.mxu0
    %v1369 = vpop.f32.mrf.mxu0
    %v1370 = vadd.f32 %v1145, %v1369
    %v1371 = vpop.f32.mrf.mxu0
    %1372 = vmatprep.mubr.bf16.mxu0 0
    %1373 = vmatmul.mubr.bf16.gmra.mxu0 %v958
    %v1374 = vpop.f32.mrf.mxu0
    %v1375 = vadd.f32 %v1150, %v1374
    %v1376 = vpop.f32.mrf.mxu0
    %v1377 = vpop.f32.mrf.mxu0
    %v1378 = vadd.f32 %v1153, %v1377
    %v1379 = vpop.f32.mrf.mxu0
    %1380 = vmatprep.mubr.bf16.mxu0 0
    %1381 = vmatmul.mubr.bf16.gmra.mxu0 %v961
    %v1382 = vpop.f32.mrf.mxu0
    %v1383 = vadd.f32 %v1158, %v1382
    %v1384 = vpop.f32.mrf.mxu0
    %v1385 = vpop.f32.mrf.mxu0
    %v1386 = vadd.f32 %v1161, %v1385
    %v1387 = vpop.f32.mrf.mxu0
    %1388 = vmatprep.mubr.bf16.mxu0 0
    %1389 = vmatmul.mubr.bf16.gmra.mxu0 %v964
    %v1390 = vpop.f32.mrf.mxu0
    %v1391 = vadd.f32 %v1166, %v1390
    %v1392 = vpop.f32.mrf.mxu0
    %v1393 = vpop.f32.mrf.mxu0
    %v1394 = vadd.f32 %v1169, %v1393
    %v1395 = vpop.f32.mrf.mxu0
    %1396 = vmatprep.mubr.bf16.mxu0 0
    %1397 = vmatmul.mubr.bf16.gmra.mxu0 %v967
    %v1398 = vpop.f32.mrf.mxu0
    %v1399 = vadd.f32 %v1174, %v1398
    %v1400 = vpop.f32.mrf.mxu0
    %v1401 = vpop.f32.mrf.mxu0
    %v1402 = vadd.f32 %v1177, %v1401
    %v1403 = vpop.f32.mrf.mxu0
    %1404 = vmatprep.mubr.bf16.mxu0 0
    %1405 = vmatmul.mubr.bf16.gmra.mxu0 %v970
    %v1406 = vpop.f32.mrf.mxu0
    %v1407 = vadd.f32 %v1182, %v1406
    %v1408 = vpop.f32.mrf.mxu0
    %v1409 = vpop.f32.mrf.mxu0
    %v1410 = vadd.f32 %v1185, %v1409
    %v1411 = vpop.f32.mrf.mxu0
    %1412 = vmatprep.mubr.bf16.mxu0 0
    %1413 = vmatmul.mubr.bf16.gmra.mxu0 %v973
    %v1414 = vpop.f32.mrf.mxu0
    %v1415 = vadd.f32 %v1190, %v1414
    %v1416 = vpop.f32.mrf.mxu0
    %v1417 = vpop.f32.mrf.mxu0
    %v1418 = vadd.f32 %v1193, %v1417
    %v1419 = vpop.f32.mrf.mxu0
    %1420 = vmatprep.mubr.bf16.mxu0 0
    %1421 = vmatmul.mubr.bf16.gmra.mxu0 %v976
    %v1422 = vpop.f32.mrf.mxu0
    %v1423 = vadd.f32 %v1198, %v1422
    %v1424 = vpop.f32.mrf.mxu0
    %v1425 = vpop.f32.mrf.mxu0
    %v1426 = vadd.f32 %v1201, %v1425
    %v1427 = vpop.f32.mrf.mxu0
    %1428 = vmatprep.mubr.bf16.mxu0 0
    %1429 = vmatmul.mubr.bf16.gmra.mxu0 %v979
    %v1430 = vpop.f32.mrf.mxu0
    %v1431 = vadd.f32 %v1206, %v1430
    %v1432 = vpop.f32.mrf.mxu0
    %v1433 = vpop.f32.mrf.mxu0
    %v1434 = vadd.f32 %v1209, %v1433
    %v1435 = vpop.f32.mrf.mxu0
    %1436 = vmatprep.mubr.bf16.mxu0 0
    %1437 = vmatmul.mubr.bf16.gmra.mxu0 %v982
    %v1438 = vpop.f32.mrf.mxu0
    %v1439 = vadd.f32 %v1214, %v1438
    %v1440 = vpop.f32.mrf.mxu0
    %v1441 = vpop.f32.mrf.mxu0
    %v1442 = vadd.f32 %v1217, %v1441
    %v1443 = vpop.f32.mrf.mxu0
    %1444 = vmatprep.mubr.bf16.mxu0 0
    %1445 = vmatmul.mubr.bf16.gmra.mxu0 %v985
    %v1446 = vpop.f32.mrf.mxu0
    %v1447 = vadd.f32 %v1222, %v1446
    %v1448 = vpop.f32.mrf.mxu0
    %v1449 = vpop.f32.mrf.mxu0
    %v1450 = vadd.f32 %v1225, %v1449
    %v1451 = vpop.f32.mrf.mxu0
    %1452 = vmatprep.mubr.bf16.mxu0 0
    %1453 = vmatmul.mubr.bf16.gmra.mxu0 %v988
    %v1454 = vpop.f32.mrf.mxu0
    %v1455 = vadd.f32 %v1230, %v1454
    %v1456 = vpop.f32.mrf.mxu0
    %v1457 = vpop.f32.mrf.mxu0
    %v1458 = vadd.f32 %v1233, %v1457
    %v1459 = vpop.f32.mrf.mxu0
    %1460 = vmatprep.mubr.bf16.mxu0 0
    %1461 = vmatmul.mubr.bf16.gmra.mxu0 %v991
    %v1462 = vpop.f32.mrf.mxu0
    %v1463 = vadd.f32 %v1238, %v1462
    %v1464 = vpop.f32.mrf.mxu0
    %v1465 = vpop.f32.mrf.mxu0
    %v1466 = vadd.f32 %v1241, %v1465
    %v1467 = vpop.f32.mrf.mxu0
    %1468 = vmatprep.mubr.bf16.mxu0 0
    %1469 = vmatmul.mubr.bf16.gmra.mxu0 %v994
    %v1470 = vpop.f32.mrf.mxu0
    %v1471 = vadd.f32 %v1246, %v1470
    %v1472 = vpop.f32.mrf.mxu0
    %v1473 = vpop.f32.mrf.mxu0
    %v1474 = vadd.f32 %v1249, %v1473
    %v1475 = vpop.f32.mrf.mxu0
    %1476 = vmatprep.mubr.bf16.mxu0 0
    %1477 = vmatmul.mubr.bf16.gmra.mxu0 %v997
    %v1478 = vpop.f32.mrf.mxu0
    %v1479 = vadd.f32 %v1254, %v1478
    %v1480 = vpop.f32.mrf.mxu0
    %v1481 = vpop.f32.mrf.mxu0
    %v1482 = vadd.f32 %v1257, %v1481
    %v1483 = vpop.f32.mrf.mxu0
    %1484 = vmatprep.mubr.bf16.mxu0 0
    %1485 = vmatmul.mubr.bf16.gmra.mxu0 %v1000
    %v1486 = vpop.f32.mrf.mxu0
    %v1487 = vadd.f32 %v1262, %v1486
    %v1488 = vpop.f32.mrf.mxu0
    %v1489 = vpop.f32.mrf.mxu0
    %v1490 = vadd.f32 %v1265, %v1489
    %v1491 = vpop.f32.mrf.mxu0
    %1492 = vmatprep.mubr.bf16.mxu0 0
    %1493 = vmatmul.mubr.bf16.gmra.mxu0 %v1003
    %v1494 = vpop.f32.mrf.mxu0
    %v1495 = vadd.f32 %v1270, %v1494
    %v1496 = vpop.f32.mrf.mxu0
    %v1497 = vpop.f32.mrf.mxu0
    %v1498 = vadd.f32 %v1273, %v1497
    %v1499 = vpop.f32.mrf.mxu0
    %1500 = vmatprep.mubr.bf16.mxu0 0
    %1501 = vmatmul.mubr.bf16.gmra.mxu0 %v1006
    %v1502 = vpop.f32.mrf.mxu0
    %v1503 = vadd.f32 %v1278, %v1502
    %v1504 = vpop.f32.mrf.mxu0
    %v1505 = vpop.f32.mrf.mxu0
    %v1506 = vadd.f32 %v1281, %v1505
    %v1507 = vpop.f32.mrf.mxu0
    %1508 = vmatprep.mubr.bf16.mxu0 0
    %1509 = vmatmul.mubr.bf16.gmra.mxu0 %v1009
    %v1510 = vpop.f32.mrf.mxu0
    %v1511 = vadd.f32 %v1286, %v1510
    %v1512 = vpop.f32.mrf.mxu0
    %v1513 = vpop.f32.mrf.mxu0
    %v1514 = vadd.f32 %v1289, %v1513
    %v1515 = vpop.f32.mrf.mxu0
    %1516 = vmatprep.mubr.bf16.mxu0 0
    %1517 = vmatmul.mubr.bf16.gmra.mxu0 %v1012
    %v1518 = vpop.f32.mrf.mxu0
    %v1519 = vadd.f32 %v1294, %v1518
    %v1520 = vpop.f32.mrf.mxu0
    %v1521 = vpop.f32.mrf.mxu0
    %v1522 = vadd.f32 %v1297, %v1521
    %v1523 = vpop.f32.mrf.mxu0
    %1524 = vmatprep.mubr.bf16.mxu0 0
    %1525 = vmatmul.mubr.bf16.gmra.mxu0 %v1015
    %v1526 = vpop.f32.mrf.mxu0
    %v1527 = vadd.f32 %v1302, %v1526
    %v1528 = vpop.f32.mrf.mxu0
    %v1529 = vpop.f32.mrf.mxu0
    %v1530 = vadd.f32 %v1305, %v1529
    %v1531 = vpop.f32.mrf.mxu0
    %1532 = vmatprep.mubr.bf16.mxu0 0
    %1533 = vmatmul.mubr.bf16.gmra.mxu0 %v1018
    %v1534 = vpop.f32.mrf.mxu0
    %v1535 = vadd.f32 %v1310, %v1534
    %v1536 = vpop.f32.mrf.mxu0
    %v1537 = vpop.f32.mrf.mxu0
    %v1538 = vadd.f32 %v1313, %v1537
    %v1539 = vpop.f32.mrf.mxu0
    %1540 = vdwg.mxu0
    %v1541 = vmax.f32 %v1351, 0.0
    %v1542 = vmax.f32 %v1354, 0.0
    %v1543 = vmax.f32 %v1359, 0.0
    %v1544 = vmax.f32 %v1362, 0.0
    %v1545 = vmax.f32 %v1367, 0.0
    %v1546 = vmax.f32 %v1370, 0.0
    %v1547 = vmax.f32 %v1375, 0.0
    %v1548 = vmax.f32 %v1378, 0.0
    %v1549 = vmax.f32 %v1383, 0.0
    %v1550 = vmax.f32 %v1386, 0.0
    %v1551 = vmax.f32 %v1391, 0.0
    %v1552 = vmax.f32 %v1394, 0.0
    %v1553 = vmax.f32 %v1399, 0.0
    %v1554 = vmax.f32 %v1402, 0.0
    %v1555 = vmax.f32 %v1407, 0.0
    %v1556 = vmax.f32 %v1410, 0.0
    %v1557 = vmax.f32 %v1415, 0.0
    %v1558 = vmax.f32 %v1418, 0.0
    %v1559 = vmax.f32 %v1423, 0.0
    %v1560 = vmax.f32 %v1426, 0.0
    %v1561 = vmax.f32 %v1431, 0.0
    %v1562 = vmax.f32 %v1434, 0.0
    %v1563 = vmax.f32 %v1439, 0.0
    %v1564 = vmax.f32 %v1442, 0.0
    %v1565 = vmax.f32 %v1447, 0.0
    %v1566 = vmax.f32 %v1450, 0.0
    %v1567 = vmax.f32 %v1455, 0.0
    %v1568 = vmax.f32 %v1458, 0.0
    %v1569 = vmax.f32 %v1463, 0.0
    %v1570 = vmax.f32 %v1466, 0.0
    %v1571 = vmax.f32 %v1471, 0.0
    %v1572 = vmax.f32 %v1474, 0.0
    %v1573 = vmax.f32 %v1479, 0.0
    %v1574 = vmax.f32 %v1482, 0.0
    %v1575 = vmax.f32 %v1487, 0.0
    %v1576 = vmax.f32 %v1490, 0.0
    %v1577 = vmax.f32 %v1495, 0.0
    %v1578 = vmax.f32 %v1498, 0.0
    %v1579 = vmax.f32 %v1503, 0.0
    %v1580 = vmax.f32 %v1506, 0.0
    %v1581 = vmax.f32 %v1511, 0.0
    %v1582 = vmax.f32 %v1514, 0.0
    %v1583 = vmax.f32 %v1519, 0.0
    %v1584 = vmax.f32 %v1522, 0.0
    %v1585 = vmax.f32 %v1527, 0.0
    %v1586 = vmax.f32 %v1530, 0.0
    %v1587 = vmax.f32 %v1535, 0.0
    %v1588 = vmax.f32 %v1538, 0.0
    %v1589 = vpack.c.bf16 %v1542, %v1541
    %v1590 = vpack.c.bf16 %v1544, %v1543
    %v1591 = vpack.c.bf16 %v1546, %v1545
    %v1592 = vpack.c.bf16 %v1548, %v1547
    %v1593 = vpack.c.bf16 %v1550, %v1549
    %v1594 = vpack.c.bf16 %v1552, %v1551
    %v1595 = vpack.c.bf16 %v1554, %v1553
    %v1596 = vpack.c.bf16 %v1556, %v1555
    %v1597 = vpack.c.bf16 %v1558, %v1557
    %v1598 = vpack.c.bf16 %v1560, %v1559
    %v1599 = vpack.c.bf16 %v1562, %v1561
    %v1600 = vpack.c.bf16 %v1564, %v1563
    %v1601 = vpack.c.bf16 %v1566, %v1565
    %v1602 = vpack.c.bf16 %v1568, %v1567
    %v1603 = vpack.c.bf16 %v1570, %v1569
    %v1604 = vpack.c.bf16 %v1572, %v1571
    %v1605 = vpack.c.bf16 %v1574, %v1573
    %v1606 = vpack.c.bf16 %v1576, %v1575
    %v1607 = vpack.c.bf16 %v1578, %v1577
    %v1608 = vpack.c.bf16 %v1580, %v1579
    %v1609 = vpack.c.bf16 %v1582, %v1581
    %v1610 = vpack.c.bf16 %v1584, %v1583
    %v1611 = vpack.c.bf16 %v1586, %v1585
    %v1612 = vpack.c.bf16 %v1588, %v1587
    %v1613 = vld [vmem:[#allocation8] sm:$0xf]
    %v1614 = vld [vmem:[#allocation8 + $0x4] sm:$0xf]
    %v1615 = vld [vmem:[#allocation8 + $0x8] sm:$0xf]
    %v1616 = vld [vmem:[#allocation8 + $0xc] sm:$0xf]
    %v1617 = vld [vmem:[#allocation8 + $0x10] sm:$0xf]
    %v1618 = vld [vmem:[#allocation8 + $0x14] sm:$0xf]
    %v1619 = vld [vmem:[#allocation8 + $0x18] sm:$0xf]
    %v1620 = vld [vmem:[#allocation8 + $0x1c] sm:$0xf]
    %v1621 = vld [vmem:[#allocation8 + $0x20] sm:$0xf]
    %v1622 = vld [vmem:[#allocation8 + $0x24] sm:$0xf]
    %v1623 = vld [vmem:[#allocation8 + $0x28] sm:$0xf]
    %v1624 = vld [vmem:[#allocation8 + $0x2c] sm:$0xf]
    %v1625 = vld [vmem:[#allocation8 + $0x30] sm:$0xf]
    %v1626 = vld [vmem:[#allocation8 + $0x34] sm:$0xf]
    %v1627 = vld [vmem:[#allocation8 + $0x38] sm:$0xf]
    %v1628 = vld [vmem:[#allocation8 + $0x3c] sm:$0xf]
    %v1645 = vunpack.c.l.b16 %v1613
    %v1646 = vunpack.c.l.b16 %v1614
    %v1647 = vunpack.c.l.b16 %v1615
    %v1648 = vunpack.c.l.b16 %v1616
    %v1649 = vunpack.c.l.b16 %v1617
    %v1650 = vunpack.c.l.b16 %v1618
    %v1651 = vunpack.c.l.b16 %v1619
    %v1652 = vunpack.c.l.b16 %v1620
    %v1653 = vunpack.c.l.b16 %v1621
    %v1654 = vunpack.c.l.b16 %v1622
    %v1655 = vunpack.c.l.b16 %v1623
    %v1656 = vunpack.c.l.b16 %v1624
    %v1657 = vunpack.c.l.b16 %v1625
    %v1658 = vunpack.c.l.b16 %v1626
    %v1659 = vunpack.c.l.b16 %v1627
    %v1660 = vunpack.c.l.b16 %v1628
    %v1661 = vpack.c.b16 %v1646, %v1645
    %v1662 = vpack.c.b16 %v1648, %v1647
    %v1663 = vpack.c.b16 %v1650, %v1649
    %v1664 = vpack.c.b16 %v1652, %v1651
    %v1665 = vpack.c.b16 %v1654, %v1653
    %v1666 = vpack.c.b16 %v1656, %v1655
    %v1667 = vpack.c.b16 %v1658, %v1657
    %v1668 = vpack.c.b16 %v1660, %v1659
    %1677 = vmatprep.subr.bf16.mxu0 0
    %1678 = vmatpush1.bf16.msra.mxu0 %v1668
    %1679 = vmatprep.subr.bf16.mxu0 0
    %1680 = vmatpush1.bf16.msra.mxu0 %v1667
    %1681 = vmatprep.subr.bf16.mxu0 0
    %1682 = vmatpush1.bf16.msra.mxu0 %v1666
    %1683 = vmatprep.subr.bf16.mxu0 0
    %1684 = vmatpush1.bf16.msra.mxu0 %v1665
    %1685 = vmatprep.subr.bf16.mxu0 0
    %1686 = vmatpush1.bf16.msra.mxu0 %v1664
    %1687 = vmatprep.subr.bf16.mxu0 0
    %1688 = vmatpush1.bf16.msra.mxu0 %v1663
    %1689 = vmatprep.subr.bf16.mxu0 0
    %1690 = vmatpush1.bf16.msra.mxu0 %v1662
    %1691 = vmatprep.subr.bf16.mxu0 0
    %1692 = vmatpush1.bf16.msra.mxu0 %v1661
    %1693 = vmatprep.subr.bf16.mxu0 0
    %1694 = vmatpush2.bf16.msra.mxu0 0
    %1695 = vmatprep.subr.bf16.mxu0 0
    %1696 = vmatpush2.bf16.msra.mxu0 0
    %1697 = vmatprep.subr.bf16.mxu0 0
    %1698 = vmatpush2.bf16.msra.mxu0 0
    %1699 = vmatprep.subr.bf16.mxu0 0
    %1700 = vmatpush2.bf16.msra.mxu0 0
    %1701 = vmatprep.subr.bf16.mxu0 0
    %1702 = vmatpush2.bf16.msra.mxu0 0
    %1703 = vmatprep.subr.bf16.mxu0 0
    %1704 = vmatpush2.bf16.msra.mxu0 0
    %1705 = vmatprep.subr.bf16.mxu0 0
    %1706 = vmatpush2.bf16.msra.mxu0 0
    %1707 = vmatprep.subr.bf16.mxu0 0
    %1708 = vmatpush2.bf16.msra.mxu0 0
    %1709 = vmatprep.mubr.bf16.mxu0 0
    %1710 = vmatmul.mubr.bf16.gmra.mxu0 %v1589
    %v1711 = vpop.f32.mrf.mxu0
    %v1712 = vadd.f32 0.0, %v1711
    %v1713 = vpop.f32.mrf.mxu0
    %v1714 = vpop.f32.mrf.mxu0
    %v1715 = vadd.f32 0.0, %v1714
    %v1716 = vpop.f32.mrf.mxu0
    %1717 = vmatprep.mubr.bf16.mxu0 0
    %1718 = vmatmul.mubr.bf16.gmra.mxu0 %v1590
    %v1719 = vpop.f32.mrf.mxu0
    %v1720 = vadd.f32 0.0, %v1719
    %v1721 = vpop.f32.mrf.mxu0
    %v1722 = vpop.f32.mrf.mxu0
    %v1723 = vadd.f32 0.0, %v1722
    %v1724 = vpop.f32.mrf.mxu0
    %1725 = vmatprep.mubr.bf16.mxu0 0
    %1726 = vmatmul.mubr.bf16.gmra.mxu0 %v1591
    %v1727 = vpop.f32.mrf.mxu0
    %v1728 = vadd.f32 0.0, %v1727
    %v1729 = vpop.f32.mrf.mxu0
    %v1730 = vpop.f32.mrf.mxu0
    %v1731 = vadd.f32 0.0, %v1730
    %v1732 = vpop.f32.mrf.mxu0
    %1733 = vmatprep.mubr.bf16.mxu0 0
    %1734 = vmatmul.mubr.bf16.gmra.mxu0 %v1592
    %v1735 = vpop.f32.mrf.mxu0
    %v1736 = vadd.f32 0.0, %v1735
    %v1737 = vpop.f32.mrf.mxu0
    %v1738 = vpop.f32.mrf.mxu0
    %v1739 = vadd.f32 0.0, %v1738
    %v1740 = vpop.f32.mrf.mxu0
    %1741 = vmatprep.mubr.bf16.mxu0 0
    %1742 = vmatmul.mubr.bf16.gmra.mxu0 %v1593
    %v1743 = vpop.f32.mrf.mxu0
    %v1744 = vadd.f32 0.0, %v1743
    %v1745 = vpop.f32.mrf.mxu0
    %v1746 = vpop.f32.mrf.mxu0
    %v1747 = vadd.f32 0.0, %v1746
    %v1748 = vpop.f32.mrf.mxu0
    %1749 = vmatprep.mubr.bf16.mxu0 0
    %1750 = vmatmul.mubr.bf16.gmra.mxu0 %v1594
    %v1751 = vpop.f32.mrf.mxu0
    %v1752 = vadd.f32 0.0, %v1751
    %v1753 = vpop.f32.mrf.mxu0
    %v1754 = vpop.f32.mrf.mxu0
    %v1755 = vadd.f32 0.0, %v1754
    %v1756 = vpop.f32.mrf.mxu0
    %1757 = vmatprep.mubr.bf16.mxu0 0
    %1758 = vmatmul.mubr.bf16.gmra.mxu0 %v1595
    %v1759 = vpop.f32.mrf.mxu0
    %v1760 = vadd.f32 0.0, %v1759
    %v1761 = vpop.f32.mrf.mxu0
    %v1762 = vpop.f32.mrf.mxu0
    %v1763 = vadd.f32 0.0, %v1762
    %v1764 = vpop.f32.mrf.mxu0
    %1765 = vmatprep.mubr.bf16.mxu0 0
    %1766 = vmatmul.mubr.bf16.gmra.mxu0 %v1596
    %v1767 = vpop.f32.mrf.mxu0
    %v1768 = vadd.f32 0.0, %v1767
    %v1769 = vpop.f32.mrf.mxu0
    %v1770 = vpop.f32.mrf.mxu0
    %v1771 = vadd.f32 0.0, %v1770
    %v1772 = vpop.f32.mrf.mxu0
    %1773 = vmatprep.mubr.bf16.mxu0 0
    %1774 = vmatmul.mubr.bf16.gmra.mxu0 %v1597
    %v1775 = vpop.f32.mrf.mxu0
    %v1776 = vadd.f32 0.0, %v1775
    %v1777 = vpop.f32.mrf.mxu0
    %v1778 = vpop.f32.mrf.mxu0
    %v1779 = vadd.f32 0.0, %v1778
    %v1780 = vpop.f32.mrf.mxu0
    %1781 = vmatprep.mubr.bf16.mxu0 0
    %1782 = vmatmul.mubr.bf16.gmra.mxu0 %v1598
    %v1783 = vpop.f32.mrf.mxu0
    %v1784 = vadd.f32 0.0, %v1783
    %v1785 = vpop.f32.mrf.mxu0
    %v1786 = vpop.f32.mrf.mxu0
    %v1787 = vadd.f32 0.0, %v1786
    %v1788 = vpop.f32.mrf.mxu0
    %1789 = vmatprep.mubr.bf16.mxu0 0
    %1790 = vmatmul.mubr.bf16.gmra.mxu0 %v1599
    %v1791 = vpop.f32.mrf.mxu0
    %v1792 = vadd.f32 0.0, %v1791
    %v1793 = vpop.f32.mrf.mxu0
    %v1794 = vpop.f32.mrf.mxu0
    %v1795 = vadd.f32 0.0, %v1794
    %v1796 = vpop.f32.mrf.mxu0
    %1797 = vmatprep.mubr.bf16.mxu0 0
    %1798 = vmatmul.mubr.bf16.gmra.mxu0 %v1600
    %v1799 = vpop.f32.mrf.mxu0
    %v1800 = vadd.f32 0.0, %v1799
    %v1801 = vpop.f32.mrf.mxu0
    %v1802 = vpop.f32.mrf.mxu0
    %v1803 = vadd.f32 0.0, %v1802
    %v1804 = vpop.f32.mrf.mxu0
    %1805 = vmatprep.mubr.bf16.mxu0 0
    %1806 = vmatmul.mubr.bf16.gmra.mxu0 %v1601
    %v1807 = vpop.f32.mrf.mxu0
    %v1808 = vadd.f32 0.0, %v1807
    %v1809 = vpop.f32.mrf.mxu0
    %v1810 = vpop.f32.mrf.mxu0
    %v1811 = vadd.f32 0.0, %v1810
    %v1812 = vpop.f32.mrf.mxu0
    %1813 = vmatprep.mubr.bf16.mxu0 0
    %1814 = vmatmul.mubr.bf16.gmra.mxu0 %v1602
    %v1815 = vpop.f32.mrf.mxu0
    %v1816 = vadd.f32 0.0, %v1815
    %v1817 = vpop.f32.mrf.mxu0
    %v1818 = vpop.f32.mrf.mxu0
    %v1819 = vadd.f32 0.0, %v1818
    %v1820 = vpop.f32.mrf.mxu0
    %1821 = vmatprep.mubr.bf16.mxu0 0
    %1822 = vmatmul.mubr.bf16.gmra.mxu0 %v1603
    %v1823 = vpop.f32.mrf.mxu0
    %v1824 = vadd.f32 0.0, %v1823
    %v1825 = vpop.f32.mrf.mxu0
    %v1826 = vpop.f32.mrf.mxu0
    %v1827 = vadd.f32 0.0, %v1826
    %v1828 = vpop.f32.mrf.mxu0
    %1829 = vmatprep.mubr.bf16.mxu0 0
    %1830 = vmatmul.mubr.bf16.gmra.mxu0 %v1604
    %v1831 = vpop.f32.mrf.mxu0
    %v1832 = vadd.f32 0.0, %v1831
    %v1833 = vpop.f32.mrf.mxu0
    %v1834 = vpop.f32.mrf.mxu0
    %v1835 = vadd.f32 0.0, %v1834
    %v1836 = vpop.f32.mrf.mxu0
    %1837 = vmatprep.mubr.bf16.mxu0 0
    %1838 = vmatmul.mubr.bf16.gmra.mxu0 %v1605
    %v1839 = vpop.f32.mrf.mxu0
    %v1840 = vadd.f32 0.0, %v1839
    %v1841 = vpop.f32.mrf.mxu0
    %v1842 = vpop.f32.mrf.mxu0
    %v1843 = vadd.f32 0.0, %v1842
    %v1844 = vpop.f32.mrf.mxu0
    %1845 = vmatprep.mubr.bf16.mxu0 0
    %1846 = vmatmul.mubr.bf16.gmra.mxu0 %v1606
    %v1847 = vpop.f32.mrf.mxu0
    %v1848 = vadd.f32 0.0, %v1847
    %v1849 = vpop.f32.mrf.mxu0
    %v1850 = vpop.f32.mrf.mxu0
    %v1851 = vadd.f32 0.0, %v1850
    %v1852 = vpop.f32.mrf.mxu0
    %1853 = vmatprep.mubr.bf16.mxu0 0
    %1854 = vmatmul.mubr.bf16.gmra.mxu0 %v1607
    %v1855 = vpop.f32.mrf.mxu0
    %v1856 = vadd.f32 0.0, %v1855
    %v1857 = vpop.f32.mrf.mxu0
    %v1858 = vpop.f32.mrf.mxu0
    %v1859 = vadd.f32 0.0, %v1858
    %v1860 = vpop.f32.mrf.mxu0
    %1861 = vmatprep.mubr.bf16.mxu0 0
    %1862 = vmatmul.mubr.bf16.gmra.mxu0 %v1608
    %v1863 = vpop.f32.mrf.mxu0
    %v1864 = vadd.f32 0.0, %v1863
    %v1865 = vpop.f32.mrf.mxu0
    %v1866 = vpop.f32.mrf.mxu0
    %v1867 = vadd.f32 0.0, %v1866
    %v1868 = vpop.f32.mrf.mxu0
    %1869 = vmatprep.mubr.bf16.mxu0 0
    %1870 = vmatmul.mubr.bf16.gmra.mxu0 %v1609
    %v1871 = vpop.f32.mrf.mxu0
    %v1872 = vadd.f32 0.0, %v1871
    %v1873 = vpop.f32.mrf.mxu0
    %v1874 = vpop.f32.mrf.mxu0
    %v1875 = vadd.f32 0.0, %v1874
    %v1876 = vpop.f32.mrf.mxu0
    %1877 = vmatprep.mubr.bf16.mxu0 0
    %1878 = vmatmul.mubr.bf16.gmra.mxu0 %v1610
    %v1879 = vpop.f32.mrf.mxu0
    %v1880 = vadd.f32 0.0, %v1879
    %v1881 = vpop.f32.mrf.mxu0
    %v1882 = vpop.f32.mrf.mxu0
    %v1883 = vadd.f32 0.0, %v1882
    %v1884 = vpop.f32.mrf.mxu0
    %1885 = vmatprep.mubr.bf16.mxu0 0
    %1886 = vmatmul.mubr.bf16.gmra.mxu0 %v1611
    %v1887 = vpop.f32.mrf.mxu0
    %v1888 = vadd.f32 0.0, %v1887
    %v1889 = vpop.f32.mrf.mxu0
    %v1890 = vpop.f32.mrf.mxu0
    %v1891 = vadd.f32 0.0, %v1890
    %v1892 = vpop.f32.mrf.mxu0
    %1893 = vmatprep.mubr.bf16.mxu0 0
    %1894 = vmatmul.mubr.bf16.gmra.mxu0 %v1612
    %v1895 = vpop.f32.mrf.mxu0
    %v1896 = vadd.f32 0.0, %v1895
    %v1897 = vpop.f32.mrf.mxu0
    %v1898 = vpop.f32.mrf.mxu0
    %v1899 = vadd.f32 0.0, %v1898
    %v1900 = vpop.f32.mrf.mxu0
    %1901 = vdwg.mxu0
    %v1902 = vpack.c.bf16 %v1715, %v1712
    %v1903 = vpack.c.bf16 %v1723, %v1720
    %v1904 = vpack.c.bf16 %v1731, %v1728
    %v1905 = vpack.c.bf16 %v1739, %v1736
    %v1906 = vpack.c.bf16 %v1747, %v1744
    %v1907 = vpack.c.bf16 %v1755, %v1752
    %v1908 = vpack.c.bf16 %v1763, %v1760
    %v1909 = vpack.c.bf16 %v1771, %v1768
    %v1910 = vpack.c.bf16 %v1779, %v1776
    %v1911 = vpack.c.bf16 %v1787, %v1784
    %v1912 = vpack.c.bf16 %v1795, %v1792
    %v1913 = vpack.c.bf16 %v1803, %v1800
    %v1914 = vpack.c.bf16 %v1811, %v1808
    %v1915 = vpack.c.bf16 %v1819, %v1816
    %v1916 = vpack.c.bf16 %v1827, %v1824
    %v1917 = vpack.c.bf16 %v1835, %v1832
    %v1918 = vpack.c.bf16 %v1843, %v1840
    %v1919 = vpack.c.bf16 %v1851, %v1848
    %v1920 = vpack.c.bf16 %v1859, %v1856
    %v1921 = vpack.c.bf16 %v1867, %v1864
    %v1922 = vpack.c.bf16 %v1875, %v1872
    %v1923 = vpack.c.bf16 %v1883, %v1880
    %v1924 = vpack.c.bf16 %v1891, %v1888
    %v1925 = vpack.c.bf16 %v1899, %v1896
    %v1926 = vld [vmem:[%s5] sm:$0x1]
    %v1928 = vlaneseq
    %v1929 = vshrl.u32 %v1928, 7
    %v1930 = vsub.s32 0, %v1929
    %v1931 = vrot.slane %v1926, %v1930
    %1933 = vmatprep.subr.bf16.mxu0 0
    %1934 = vmatpush1.bf16.msra.mxu0 %v1909
    %1935 = vmatprep.subr.bf16.mxu0 0
    %1936 = vmatpush1.bf16.msra.mxu0 %v1908
    %1937 = vmatprep.subr.bf16.mxu0 0
    %1938 = vmatpush1.bf16.msra.mxu0 %v1907
    %1939 = vmatprep.subr.bf16.mxu0 0
    %1940 = vmatpush1.bf16.msra.mxu0 %v1906
    %1941 = vmatprep.subr.bf16.mxu0 0
    %1942 = vmatpush1.bf16.msra.mxu0 %v1905
    %1943 = vmatprep.subr.bf16.mxu0 0
    %1944 = vmatpush1.bf16.msra.mxu0 %v1904
    %1945 = vmatprep.subr.bf16.mxu0 0
    %1946 = vmatpush1.bf16.msra.mxu0 %v1903
    %1947 = vmatprep.subr.bf16.mxu0 0
    %1948 = vmatpush1.bf16.msra.mxu0 %v1902
    %1949 = vmatprep.subr.bf16.mxu0 0
    %1950 = vmatpush2.bf16.msra.mxu0 %v1917
    %1951 = vmatprep.subr.bf16.mxu0 0
    %1952 = vmatpush2.bf16.msra.mxu0 %v1916
    %1953 = vmatprep.subr.bf16.mxu0 0
    %1954 = vmatpush2.bf16.msra.mxu0 %v1915
    %1955 = vmatprep.subr.bf16.mxu0 0
    %1956 = vmatpush2.bf16.msra.mxu0 %v1914
    %1957 = vmatprep.subr.bf16.mxu0 0
    %1958 = vmatpush2.bf16.msra.mxu0 %v1913
    %1959 = vmatprep.subr.bf16.mxu0 0
    %1960 = vmatpush2.bf16.msra.mxu0 %v1912
    %1961 = vmatprep.subr.bf16.mxu0 0
    %1962 = vmatpush2.bf16.msra.mxu0 %v1911
    %1963 = vmatprep.subr.bf16.mxu0 0
    %1964 = vmatpush2.bf16.msra.mxu0 %v1910
    %1965 = vmatprep.mubr.bf16.mxu0 %v948
    %1966 = vmatmul.mubr.bf16.gmra.mxu0 %v947
    %v1967 = vpop.f32.mrf.mxu0
    %v1968 = vadd.f32 %v1931, %v1967
    %v1969 = vpop.f32.mrf.mxu0
    %v1970 = vpop.f32.mrf.mxu0
    %v1971 = vadd.f32 %v1931, %v1970
    %v1972 = vpop.f32.mrf.mxu0
    %1973 = vmatprep.mubr.bf16.mxu0 %v951
    %1974 = vmatmul.mubr.bf16.gmra.mxu0 %v950
    %v1975 = vpop.f32.mrf.mxu0
    %v1976 = vadd.f32 %v1931, %v1975
    %v1977 = vpop.f32.mrf.mxu0
    %v1978 = vpop.f32.mrf.mxu0
    %v1979 = vadd.f32 %v1931, %v1978
    %v1980 = vpop.f32.mrf.mxu0
    %1981 = vmatprep.mubr.bf16.mxu0 %v954
    %1982 = vmatmul.mubr.bf16.gmra.mxu0 %v953
    %v1983 = vpop.f32.mrf.mxu0
    %v1984 = vadd.f32 %v1931, %v1983
    %v1985 = vpop.f32.mrf.mxu0
    %v1986 = vpop.f32.mrf.mxu0
    %v1987 = vadd.f32 %v1931, %v1986
    %v1988 = vpop.f32.mrf.mxu0
    %1989 = vmatprep.mubr.bf16.mxu0 %v957
    %1990 = vmatmul.mubr.bf16.gmra.mxu0 %v956
    %v1991 = vpop.f32.mrf.mxu0
    %v1992 = vadd.f32 %v1931, %v1991
    %v1993 = vpop.f32.mrf.mxu0
    %v1994 = vpop.f32.mrf.mxu0
    %v1995 = vadd.f32 %v1931, %v1994
    %v1996 = vpop.f32.mrf.mxu0
    %1997 = vmatprep.mubr.bf16.mxu0 %v960
    %1998 = vmatmul.mubr.bf16.gmra.mxu0 %v959
    %v1999 = vpop.f32.mrf.mxu0
    %v2000 = vadd.f32 %v1931, %v1999
    %v2001 = vpop.f32.mrf.mxu0
    %v2002 = vpop.f32.mrf.mxu0
    %v2003 = vadd.f32 %v1931, %v2002
    %v2004 = vpop.f32.mrf.mxu0
    %2005 = vmatprep.mubr.bf16.mxu0 %v963
    %2006 = vmatmul.mubr.bf16.gmra.mxu0 %v962
    %v2007 = vpop.f32.mrf.mxu0
    %v2008 = vadd.f32 %v1931, %v2007
    %v2009 = vpop.f32.mrf.mxu0
    %v2010 = vpop.f32.mrf.mxu0
    %v2011 = vadd.f32 %v1931, %v2010
    %v2012 = vpop.f32.mrf.mxu0
    %2013 = vmatprep.mubr.bf16.mxu0 %v966
    %2014 = vmatmul.mubr.bf16.gmra.mxu0 %v965
    %v2015 = vpop.f32.mrf.mxu0
    %v2016 = vadd.f32 %v1931, %v2015
    %v2017 = vpop.f32.mrf.mxu0
    %v2018 = vpop.f32.mrf.mxu0
    %v2019 = vadd.f32 %v1931, %v2018
    %v2020 = vpop.f32.mrf.mxu0
    %2021 = vmatprep.mubr.bf16.mxu0 %v969
    %2022 = vmatmul.mubr.bf16.gmra.mxu0 %v968
    %v2023 = vpop.f32.mrf.mxu0
    %v2024 = vadd.f32 %v1931, %v2023
    %v2025 = vpop.f32.mrf.mxu0
    %v2026 = vpop.f32.mrf.mxu0
    %v2027 = vadd.f32 %v1931, %v2026
    %v2028 = vpop.f32.mrf.mxu0
    %2029 = vmatprep.mubr.bf16.mxu0 %v972
    %2030 = vmatmul.mubr.bf16.gmra.mxu0 %v971
    %v2031 = vpop.f32.mrf.mxu0
    %v2032 = vadd.f32 %v1931, %v2031
    %v2033 = vpop.f32.mrf.mxu0
    %v2034 = vpop.f32.mrf.mxu0
    %v2035 = vadd.f32 %v1931, %v2034
    %v2036 = vpop.f32.mrf.mxu0
    %2037 = vmatprep.mubr.bf16.mxu0 %v975
    %2038 = vmatmul.mubr.bf16.gmra.mxu0 %v974
    %v2039 = vpop.f32.mrf.mxu0
    %v2040 = vadd.f32 %v1931, %v2039
    %v2041 = vpop.f32.mrf.mxu0
    %v2042 = vpop.f32.mrf.mxu0
    %v2043 = vadd.f32 %v1931, %v2042
    %v2044 = vpop.f32.mrf.mxu0
    %2045 = vmatprep.mubr.bf16.mxu0 %v978
    %2046 = vmatmul.mubr.bf16.gmra.mxu0 %v977
    %v2047 = vpop.f32.mrf.mxu0
    %v2048 = vadd.f32 %v1931, %v2047
    %v2049 = vpop.f32.mrf.mxu0
    %v2050 = vpop.f32.mrf.mxu0
    %v2051 = vadd.f32 %v1931, %v2050
    %v2052 = vpop.f32.mrf.mxu0
    %2053 = vmatprep.mubr.bf16.mxu0 %v981
    %2054 = vmatmul.mubr.bf16.gmra.mxu0 %v980
    %v2055 = vpop.f32.mrf.mxu0
    %v2056 = vadd.f32 %v1931, %v2055
    %v2057 = vpop.f32.mrf.mxu0
    %v2058 = vpop.f32.mrf.mxu0
    %v2059 = vadd.f32 %v1931, %v2058
    %v2060 = vpop.f32.mrf.mxu0
    %2061 = vmatprep.mubr.bf16.mxu0 %v984
    %2062 = vmatmul.mubr.bf16.gmra.mxu0 %v983
    %v2063 = vpop.f32.mrf.mxu0
    %v2064 = vadd.f32 %v1931, %v2063
    %v2065 = vpop.f32.mrf.mxu0
    %v2066 = vpop.f32.mrf.mxu0
    %v2067 = vadd.f32 %v1931, %v2066
    %v2068 = vpop.f32.mrf.mxu0
    %2069 = vmatprep.mubr.bf16.mxu0 %v987
    %2070 = vmatmul.mubr.bf16.gmra.mxu0 %v986
    %v2071 = vpop.f32.mrf.mxu0
    %v2072 = vadd.f32 %v1931, %v2071
    %v2073 = vpop.f32.mrf.mxu0
    %v2074 = vpop.f32.mrf.mxu0
    %v2075 = vadd.f32 %v1931, %v2074
    %v2076 = vpop.f32.mrf.mxu0
    %2077 = vmatprep.mubr.bf16.mxu0 %v990
    %2078 = vmatmul.mubr.bf16.gmra.mxu0 %v989
    %v2079 = vpop.f32.mrf.mxu0
    %v2080 = vadd.f32 %v1931, %v2079
    %v2081 = vpop.f32.mrf.mxu0
    %v2082 = vpop.f32.mrf.mxu0
    %v2083 = vadd.f32 %v1931, %v2082
    %v2084 = vpop.f32.mrf.mxu0
    %2085 = vmatprep.mubr.bf16.mxu0 %v993
    %2086 = vmatmul.mubr.bf16.gmra.mxu0 %v992
    %v2087 = vpop.f32.mrf.mxu0
    %v2088 = vadd.f32 %v1931, %v2087
    %v2089 = vpop.f32.mrf.mxu0
    %v2090 = vpop.f32.mrf.mxu0
    %v2091 = vadd.f32 %v1931, %v2090
    %v2092 = vpop.f32.mrf.mxu0
    %2093 = vmatprep.mubr.bf16.mxu0 %v996
    %2094 = vmatmul.mubr.bf16.gmra.mxu0 %v995
    %v2095 = vpop.f32.mrf.mxu0
    %v2096 = vadd.f32 %v1931, %v2095
    %v2097 = vpop.f32.mrf.mxu0
    %v2098 = vpop.f32.mrf.mxu0
    %v2099 = vadd.f32 %v1931, %v2098
    %v2100 = vpop.f32.mrf.mxu0
    %2101 = vmatprep.mubr.bf16.mxu0 %v999
    %2102 = vmatmul.mubr.bf16.gmra.mxu0 %v998
    %v2103 = vpop.f32.mrf.mxu0
    %v2104 = vadd.f32 %v1931, %v2103
    %v2105 = vpop.f32.mrf.mxu0
    %v2106 = vpop.f32.mrf.mxu0
    %v2107 = vadd.f32 %v1931, %v2106
    %v2108 = vpop.f32.mrf.mxu0
    %2109 = vmatprep.mubr.bf16.mxu0 %v1002
    %2110 = vmatmul.mubr.bf16.gmra.mxu0 %v1001
    %v2111 = vpop.f32.mrf.mxu0
    %v2112 = vadd.f32 %v1931, %v2111
    %v2113 = vpop.f32.mrf.mxu0
    %v2114 = vpop.f32.mrf.mxu0
    %v2115 = vadd.f32 %v1931, %v2114
    %v2116 = vpop.f32.mrf.mxu0
    %2117 = vmatprep.mubr.bf16.mxu0 %v1005
    %2118 = vmatmul.mubr.bf16.gmra.mxu0 %v1004
    %v2119 = vpop.f32.mrf.mxu0
    %v2120 = vadd.f32 %v1931, %v2119
    %v2121 = vpop.f32.mrf.mxu0
    %v2122 = vpop.f32.mrf.mxu0
    %v2123 = vadd.f32 %v1931, %v2122
    %v2124 = vpop.f32.mrf.mxu0
    %2125 = vmatprep.mubr.bf16.mxu0 %v1008
    %2126 = vmatmul.mubr.bf16.gmra.mxu0 %v1007
    %v2127 = vpop.f32.mrf.mxu0
    %v2128 = vadd.f32 %v1931, %v2127
    %v2129 = vpop.f32.mrf.mxu0
    %v2130 = vpop.f32.mrf.mxu0
    %v2131 = vadd.f32 %v1931, %v2130
    %v2132 = vpop.f32.mrf.mxu0
    %2133 = vmatprep.mubr.bf16.mxu0 %v1011
    %2134 = vmatmul.mubr.bf16.gmra.mxu0 %v1010
    %v2135 = vpop.f32.mrf.mxu0
    %v2136 = vadd.f32 %v1931, %v2135
    %v2137 = vpop.f32.mrf.mxu0
    %v2138 = vpop.f32.mrf.mxu0
    %v2139 = vadd.f32 %v1931, %v2138
    %v2140 = vpop.f32.mrf.mxu0
    %2141 = vmatprep.mubr.bf16.mxu0 %v1014
    %2142 = vmatmul.mubr.bf16.gmra.mxu0 %v1013
    %v2143 = vpop.f32.mrf.mxu0
    %v2144 = vadd.f32 %v1931, %v2143
    %v2145 = vpop.f32.mrf.mxu0
    %v2146 = vpop.f32.mrf.mxu0
    %v2147 = vadd.f32 %v1931, %v2146
    %v2148 = vpop.f32.mrf.mxu0
    %2149 = vmatprep.mubr.bf16.mxu0 %v1017
    %2150 = vmatmul.mubr.bf16.gmra.mxu0 %v1016
    %v2151 = vpop.f32.mrf.mxu0
    %v2152 = vadd.f32 %v1931, %v2151
    %v2153 = vpop.f32.mrf.mxu0
    %v2154 = vpop.f32.mrf.mxu0
    %v2155 = vadd.f32 %v1931, %v2154
    %v2156 = vpop.f32.mrf.mxu0
    %2157 = vdwg.mxu0
    %2158 = vmatprep.subr.bf16.mxu0 0
    %2159 = vmatpush1.bf16.msra.mxu0 %v1925
    %2160 = vmatprep.subr.bf16.mxu0 0
    %2161 = vmatpush1.bf16.msra.mxu0 %v1924
    %2162 = vmatprep.subr.bf16.mxu0 0
    %2163 = vmatpush1.bf16.msra.mxu0 %v1923
    %2164 = vmatprep.subr.bf16.mxu0 0
    %2165 = vmatpush1.bf16.msra.mxu0 %v1922
    %2166 = vmatprep.subr.bf16.mxu0 0
    %2167 = vmatpush1.bf16.msra.mxu0 %v1921
    %2168 = vmatprep.subr.bf16.mxu0 0
    %2169 = vmatpush1.bf16.msra.mxu0 %v1920
    %2170 = vmatprep.subr.bf16.mxu0 0
    %2171 = vmatpush1.bf16.msra.mxu0 %v1919
    %2172 = vmatprep.subr.bf16.mxu0 0
    %2173 = vmatpush1.bf16.msra.mxu0 %v1918
    %2174 = vmatprep.subr.bf16.mxu0 0
    %2175 = vmatpush2.bf16.msra.mxu0 0
    %2176 = vmatprep.subr.bf16.mxu0 0
    %2177 = vmatpush2.bf16.msra.mxu0 0
    %2178 = vmatprep.subr.bf16.mxu0 0
    %2179 = vmatpush2.bf16.msra.mxu0 0
    %2180 = vmatprep.subr.bf16.mxu0 0
    %2181 = vmatpush2.bf16.msra.mxu0 0
    %2182 = vmatprep.subr.bf16.mxu0 0
    %2183 = vmatpush2.bf16.msra.mxu0 0
    %2184 = vmatprep.subr.bf16.mxu0 0
    %2185 = vmatpush2.bf16.msra.mxu0 0
    %2186 = vmatprep.subr.bf16.mxu0 0
    %2187 = vmatpush2.bf16.msra.mxu0 0
    %2188 = vmatprep.subr.bf16.mxu0 0
    %2189 = vmatpush2.bf16.msra.mxu0 0
    %2190 = vmatprep.mubr.bf16.mxu0 0
    %2191 = vmatmul.mubr.bf16.gmra.mxu0 %v949
    %v2192 = vpop.f32.mrf.mxu0
    %v2193 = vadd.f32 %v1968, %v2192
    %v2194 = vpop.f32.mrf.mxu0
    %v2195 = vpop.f32.mrf.mxu0
    %v2196 = vadd.f32 %v1971, %v2195
    %v2197 = vpop.f32.mrf.mxu0
    %2198 = vmatprep.mubr.bf16.mxu0 0
    %2199 = vmatmul.mubr.bf16.gmra.mxu0 %v952
    %v2200 = vpop.f32.mrf.mxu0
    %v2201 = vadd.f32 %v1976, %v2200
    %v2202 = vpop.f32.mrf.mxu0
    %v2203 = vpop.f32.mrf.mxu0
    %v2204 = vadd.f32 %v1979, %v2203
    %v2205 = vpop.f32.mrf.mxu0
    %2206 = vmatprep.mubr.bf16.mxu0 0
    %2207 = vmatmul.mubr.bf16.gmra.mxu0 %v955
    %v2208 = vpop.f32.mrf.mxu0
    %v2209 = vadd.f32 %v1984, %v2208
    %v2210 = vpop.f32.mrf.mxu0
    %v2211 = vpop.f32.mrf.mxu0
    %v2212 = vadd.f32 %v1987, %v2211
    %v2213 = vpop.f32.mrf.mxu0
    %2214 = vmatprep.mubr.bf16.mxu0 0
    %2215 = vmatmul.mubr.bf16.gmra.mxu0 %v958
    %v2216 = vpop.f32.mrf.mxu0
    %v2217 = vadd.f32 %v1992, %v2216
    %v2218 = vpop.f32.mrf.mxu0
    %v2219 = vpop.f32.mrf.mxu0
    %v2220 = vadd.f32 %v1995, %v2219
    %v2221 = vpop.f32.mrf.mxu0
    %2222 = vmatprep.mubr.bf16.mxu0 0
    %2223 = vmatmul.mubr.bf16.gmra.mxu0 %v961
    %v2224 = vpop.f32.mrf.mxu0
    %v2225 = vadd.f32 %v2000, %v2224
    %v2226 = vpop.f32.mrf.mxu0
    %v2227 = vpop.f32.mrf.mxu0
    %v2228 = vadd.f32 %v2003, %v2227
    %v2229 = vpop.f32.mrf.mxu0
    %2230 = vmatprep.mubr.bf16.mxu0 0
    %2231 = vmatmul.mubr.bf16.gmra.mxu0 %v964
    %v2232 = vpop.f32.mrf.mxu0
    %v2233 = vadd.f32 %v2008, %v2232
    %v2234 = vpop.f32.mrf.mxu0
    %v2235 = vpop.f32.mrf.mxu0
    %v2236 = vadd.f32 %v2011, %v2235
    %v2237 = vpop.f32.mrf.mxu0
    %2238 = vmatprep.mubr.bf16.mxu0 0
    %2239 = vmatmul.mubr.bf16.gmra.mxu0 %v967
    %v2240 = vpop.f32.mrf.mxu0
    %v2241 = vadd.f32 %v2016, %v2240
    %v2242 = vpop.f32.mrf.mxu0
    %v2243 = vpop.f32.mrf.mxu0
    %v2244 = vadd.f32 %v2019, %v2243
    %v2245 = vpop.f32.mrf.mxu0
    %2246 = vmatprep.mubr.bf16.mxu0 0
    %2247 = vmatmul.mubr.bf16.gmra.mxu0 %v970
    %v2248 = vpop.f32.mrf.mxu0
    %v2249 = vadd.f32 %v2024, %v2248
    %v2250 = vpop.f32.mrf.mxu0
    %v2251 = vpop.f32.mrf.mxu0
    %v2252 = vadd.f32 %v2027, %v2251
    %v2253 = vpop.f32.mrf.mxu0
    %2254 = vmatprep.mubr.bf16.mxu0 0
    %2255 = vmatmul.mubr.bf16.gmra.mxu0 %v973
    %v2256 = vpop.f32.mrf.mxu0
    %v2257 = vadd.f32 %v2032, %v2256
    %v2258 = vpop.f32.mrf.mxu0
    %v2259 = vpop.f32.mrf.mxu0
    %v2260 = vadd.f32 %v2035, %v2259
    %v2261 = vpop.f32.mrf.mxu0
    %2262 = vmatprep.mubr.bf16.mxu0 0
    %2263 = vmatmul.mubr.bf16.gmra.mxu0 %v976
    %v2264 = vpop.f32.mrf.mxu0
    %v2265 = vadd.f32 %v2040, %v2264
    %v2266 = vpop.f32.mrf.mxu0
    %v2267 = vpop.f32.mrf.mxu0
    %v2268 = vadd.f32 %v2043, %v2267
    %v2269 = vpop.f32.mrf.mxu0
    %2270 = vmatprep.mubr.bf16.mxu0 0
    %2271 = vmatmul.mubr.bf16.gmra.mxu0 %v979
    %v2272 = vpop.f32.mrf.mxu0
    %v2273 = vadd.f32 %v2048, %v2272
    %v2274 = vpop.f32.mrf.mxu0
    %v2275 = vpop.f32.mrf.mxu0
    %v2276 = vadd.f32 %v2051, %v2275
    %v2277 = vpop.f32.mrf.mxu0
    %2278 = vmatprep.mubr.bf16.mxu0 0
    %2279 = vmatmul.mubr.bf16.gmra.mxu0 %v982
    %v2280 = vpop.f32.mrf.mxu0
    %v2281 = vadd.f32 %v2056, %v2280
    %v2282 = vpop.f32.mrf.mxu0
    %v2283 = vpop.f32.mrf.mxu0
    %v2284 = vadd.f32 %v2059, %v2283
    %v2285 = vpop.f32.mrf.mxu0
    %2286 = vmatprep.mubr.bf16.mxu0 0
    %2287 = vmatmul.mubr.bf16.gmra.mxu0 %v985
    %v2288 = vpop.f32.mrf.mxu0
    %v2289 = vadd.f32 %v2064, %v2288
    %v2290 = vpop.f32.mrf.mxu0
    %v2291 = vpop.f32.mrf.mxu0
    %v2292 = vadd.f32 %v2067, %v2291
    %v2293 = vpop.f32.mrf.mxu0
    %2294 = vmatprep.mubr.bf16.mxu0 0
    %2295 = vmatmul.mubr.bf16.gmra.mxu0 %v988
    %v2296 = vpop.f32.mrf.mxu0
    %v2297 = vadd.f32 %v2072, %v2296
    %v2298 = vpop.f32.mrf.mxu0
    %v2299 = vpop.f32.mrf.mxu0
    %v2300 = vadd.f32 %v2075, %v2299
    %v2301 = vpop.f32.mrf.mxu0
    %2302 = vmatprep.mubr.bf16.mxu0 0
    %2303 = vmatmul.mubr.bf16.gmra.mxu0 %v991
    %v2304 = vpop.f32.mrf.mxu0
    %v2305 = vadd.f32 %v2080, %v2304
    %v2306 = vpop.f32.mrf.mxu0
    %v2307 = vpop.f32.mrf.mxu0
    %v2308 = vadd.f32 %v2083, %v2307
    %v2309 = vpop.f32.mrf.mxu0
    %2310 = vmatprep.mubr.bf16.mxu0 0
    %2311 = vmatmul.mubr.bf16.gmra.mxu0 %v994
    %v2312 = vpop.f32.mrf.mxu0
    %v2313 = vadd.f32 %v2088, %v2312
    %v2314 = vpop.f32.mrf.mxu0
    %v2315 = vpop.f32.mrf.mxu0
    %v2316 = vadd.f32 %v2091, %v2315
    %v2317 = vpop.f32.mrf.mxu0
    %2318 = vmatprep.mubr.bf16.mxu0 0
    %2319 = vmatmul.mubr.bf16.gmra.mxu0 %v997
    %v2320 = vpop.f32.mrf.mxu0
    %v2321 = vadd.f32 %v2096, %v2320
    %v2322 = vpop.f32.mrf.mxu0
    %v2323 = vpop.f32.mrf.mxu0
    %v2324 = vadd.f32 %v2099, %v2323
    %v2325 = vpop.f32.mrf.mxu0
    %2326 = vmatprep.mubr.bf16.mxu0 0
    %2327 = vmatmul.mubr.bf16.gmra.mxu0 %v1000
    %v2328 = vpop.f32.mrf.mxu0
    %v2329 = vadd.f32 %v2104, %v2328
    %v2330 = vpop.f32.mrf.mxu0
    %v2331 = vpop.f32.mrf.mxu0
    %v2332 = vadd.f32 %v2107, %v2331
    %v2333 = vpop.f32.mrf.mxu0
    %2334 = vmatprep.mubr.bf16.mxu0 0
    %2335 = vmatmul.mubr.bf16.gmra.mxu0 %v1003
    %v2336 = vpop.f32.mrf.mxu0
    %v2337 = vadd.f32 %v2112, %v2336
    %v2338 = vpop.f32.mrf.mxu0
    %v2339 = vpop.f32.mrf.mxu0
    %v2340 = vadd.f32 %v2115, %v2339
    %v2341 = vpop.f32.mrf.mxu0
    %2342 = vmatprep.mubr.bf16.mxu0 0
    %2343 = vmatmul.mubr.bf16.gmra.mxu0 %v1006
    %v2344 = vpop.f32.mrf.mxu0
    %v2345 = vadd.f32 %v2120, %v2344
    %v2346 = vpop.f32.mrf.mxu0
    %v2347 = vpop.f32.mrf.mxu0
    %v2348 = vadd.f32 %v2123, %v2347
    %v2349 = vpop.f32.mrf.mxu0
    %2350 = vmatprep.mubr.bf16.mxu0 0
    %2351 = vmatmul.mubr.bf16.gmra.mxu0 %v1009
    %v2352 = vpop.f32.mrf.mxu0
    %v2353 = vadd.f32 %v2128, %v2352
    %v2354 = vpop.f32.mrf.mxu0
    %v2355 = vpop.f32.mrf.mxu0
    %v2356 = vadd.f32 %v2131, %v2355
    %v2357 = vpop.f32.mrf.mxu0
    %2358 = vmatprep.mubr.bf16.mxu0 0
    %2359 = vmatmul.mubr.bf16.gmra.mxu0 %v1012
    %v2360 = vpop.f32.mrf.mxu0
    %v2361 = vadd.f32 %v2136, %v2360
    %v2362 = vpop.f32.mrf.mxu0
    %v2363 = vpop.f32.mrf.mxu0
    %v2364 = vadd.f32 %v2139, %v2363
    %v2365 = vpop.f32.mrf.mxu0
    %2366 = vmatprep.mubr.bf16.mxu0 0
    %2367 = vmatmul.mubr.bf16.gmra.mxu0 %v1015
    %v2368 = vpop.f32.mrf.mxu0
    %v2369 = vadd.f32 %v2144, %v2368
    %v2370 = vpop.f32.mrf.mxu0
    %v2371 = vpop.f32.mrf.mxu0
    %v2372 = vadd.f32 %v2147, %v2371
    %v2373 = vpop.f32.mrf.mxu0
    %2374 = vmatprep.mubr.bf16.mxu0 0
    %2375 = vmatmul.mubr.bf16.gmra.mxu0 %v1018
    %v2376 = vpop.f32.mrf.mxu0
    %v2377 = vadd.f32 %v2152, %v2376
    %v2378 = vpop.f32.mrf.mxu0
    %v2379 = vpop.f32.mrf.mxu0
    %v2380 = vadd.f32 %v2155, %v2379
    %v2381 = vpop.f32.mrf.mxu0
    %2382 = vdwg.mxu0
    %v2383 = vmax.f32 %v2193, 0.0
    %v2384 = vmax.f32 %v2196, 0.0
    %v2385 = vmax.f32 %v2201, 0.0
    %v2386 = vmax.f32 %v2204, 0.0
    %v2387 = vmax.f32 %v2209, 0.0
    %v2388 = vmax.f32 %v2212, 0.0
    %v2389 = vmax.f32 %v2217, 0.0
    %v2390 = vmax.f32 %v2220, 0.0
    %v2391 = vmax.f32 %v2225, 0.0
    %v2392 = vmax.f32 %v2228, 0.0
    %v2393 = vmax.f32 %v2233, 0.0
    %v2394 = vmax.f32 %v2236, 0.0
    %v2395 = vmax.f32 %v2241, 0.0
    %v2396 = vmax.f32 %v2244, 0.0
    %v2397 = vmax.f32 %v2249, 0.0
    %v2398 = vmax.f32 %v2252, 0.0
    %v2399 = vmax.f32 %v2257, 0.0
    %v2400 = vmax.f32 %v2260, 0.0
    %v2401 = vmax.f32 %v2265, 0.0
    %v2402 = vmax.f32 %v2268, 0.0
    %v2403 = vmax.f32 %v2273, 0.0
    %v2404 = vmax.f32 %v2276, 0.0
    %v2405 = vmax.f32 %v2281, 0.0
    %v2406 = vmax.f32 %v2284, 0.0
    %v2407 = vmax.f32 %v2289, 0.0
    %v2408 = vmax.f32 %v2292, 0.0
    %v2409 = vmax.f32 %v2297, 0.0
    %v2410 = vmax.f32 %v2300, 0.0
    %v2411 = vmax.f32 %v2305, 0.0
    %v2412 = vmax.f32 %v2308, 0.0
    %v2413 = vmax.f32 %v2313, 0.0
    %v2414 = vmax.f32 %v2316, 0.0
    %v2415 = vmax.f32 %v2321, 0.0
    %v2416 = vmax.f32 %v2324, 0.0
    %v2417 = vmax.f32 %v2329, 0.0
    %v2418 = vmax.f32 %v2332, 0.0
    %v2419 = vmax.f32 %v2337, 0.0
    %v2420 = vmax.f32 %v2340, 0.0
    %v2421 = vmax.f32 %v2345, 0.0
    %v2422 = vmax.f32 %v2348, 0.0
    %v2423 = vmax.f32 %v2353, 0.0
    %v2424 = vmax.f32 %v2356, 0.0
    %v2425 = vmax.f32 %v2361, 0.0
    %v2426 = vmax.f32 %v2364, 0.0
    %v2427 = vmax.f32 %v2369, 0.0
    %v2428 = vmax.f32 %v2372, 0.0
    %v2429 = vmax.f32 %v2377, 0.0
    %v2430 = vmax.f32 %v2380, 0.0
    %v2431 = vpack.c.bf16 %v2384, %v2383
    %v2432 = vpack.c.bf16 %v2386, %v2385
    %v2433 = vpack.c.bf16 %v2388, %v2387
    %v2434 = vpack.c.bf16 %v2390, %v2389
    %v2435 = vpack.c.bf16 %v2392, %v2391
    %v2436 = vpack.c.bf16 %v2394, %v2393
    %v2437 = vpack.c.bf16 %v2396, %v2395
    %v2438 = vpack.c.bf16 %v2398, %v2397
    %v2439 = vpack.c.bf16 %v2400, %v2399
    %v2440 = vpack.c.bf16 %v2402, %v2401
    %v2441 = vpack.c.bf16 %v2404, %v2403
    %v2442 = vpack.c.bf16 %v2406, %v2405
    %v2443 = vpack.c.bf16 %v2408, %v2407
    %v2444 = vpack.c.bf16 %v2410, %v2409
    %v2445 = vpack.c.bf16 %v2412, %v2411
    %v2446 = vpack.c.bf16 %v2414, %v2413
    %v2447 = vpack.c.bf16 %v2416, %v2415
    %v2448 = vpack.c.bf16 %v2418, %v2417
    %v2449 = vpack.c.bf16 %v2420, %v2419
    %v2450 = vpack.c.bf16 %v2422, %v2421
    %v2451 = vpack.c.bf16 %v2424, %v2423
    %v2452 = vpack.c.bf16 %v2426, %v2425
    %v2453 = vpack.c.bf16 %v2428, %v2427
    %v2454 = vpack.c.bf16 %v2430, %v2429
    %v2455 = vld [vmem:[#allocation10] sm:$0xf]
    %v2456 = vld [vmem:[#allocation10 + $0x4] sm:$0xf]
    %v2457 = vld [vmem:[#allocation10 + $0x8] sm:$0xf]
    %v2458 = vld [vmem:[#allocation10 + $0xc] sm:$0xf]
    %v2459 = vld [vmem:[#allocation10 + $0x10] sm:$0xf]
    %v2460 = vld [vmem:[#allocation10 + $0x14] sm:$0xf]
    %v2461 = vld [vmem:[#allocation10 + $0x18] sm:$0xf]
    %v2462 = vld [vmem:[#allocation10 + $0x1c] sm:$0xf]
    %v2463 = vld [vmem:[#allocation10 + $0x20] sm:$0xf]
    %v2464 = vld [vmem:[#allocation10 + $0x24] sm:$0xf]
    %v2465 = vld [vmem:[#allocation10 + $0x28] sm:$0xf]
    %v2466 = vld [vmem:[#allocation10 + $0x2c] sm:$0xf]
    %v2467 = vld [vmem:[#allocation10 + $0x30] sm:$0xf]
    %v2468 = vld [vmem:[#allocation10 + $0x34] sm:$0xf]
    %v2469 = vld [vmem:[#allocation10 + $0x38] sm:$0xf]
    %v2470 = vld [vmem:[#allocation10 + $0x3c] sm:$0xf]
    %v2487 = vunpack.c.l.b16 %v2455
    %v2488 = vunpack.c.l.b16 %v2456
    %v2489 = vunpack.c.l.b16 %v2457
    %v2490 = vunpack.c.l.b16 %v2458
    %v2491 = vunpack.c.l.b16 %v2459
    %v2492 = vunpack.c.l.b16 %v2460
    %v2493 = vunpack.c.l.b16 %v2461
    %v2494 = vunpack.c.l.b16 %v2462
    %v2495 = vunpack.c.l.b16 %v2463
    %v2496 = vunpack.c.l.b16 %v2464
    %v2497 = vunpack.c.l.b16 %v2465
    %v2498 = vunpack.c.l.b16 %v2466
    %v2499 = vunpack.c.l.b16 %v2467
    %v2500 = vunpack.c.l.b16 %v2468
    %v2501 = vunpack.c.l.b16 %v2469
    %v2502 = vunpack.c.l.b16 %v2470
    %v2503 = vpack.c.b16 %v2488, %v2487
    %v2504 = vpack.c.b16 %v2490, %v2489
    %v2505 = vpack.c.b16 %v2492, %v2491
    %v2506 = vpack.c.b16 %v2494, %v2493
    %v2507 = vpack.c.b16 %v2496, %v2495
    %v2508 = vpack.c.b16 %v2498, %v2497
    %v2509 = vpack.c.b16 %v2500, %v2499
    %v2510 = vpack.c.b16 %v2502, %v2501
    %2519 = vmatprep.subr.bf16.mxu0 0
    %2520 = vmatpush1.bf16.msra.mxu0 %v2510
    %2521 = vmatprep.subr.bf16.mxu0 0
    %2522 = vmatpush1.bf16.msra.mxu0 %v2509
    %2523 = vmatprep.subr.bf16.mxu0 0
    %2524 = vmatpush1.bf16.msra.mxu0 %v2508
    %2525 = vmatprep.subr.bf16.mxu0 0
    %2526 = vmatpush1.bf16.msra.mxu0 %v2507
    %2527 = vmatprep.subr.bf16.mxu0 0
    %2528 = vmatpush1.bf16.msra.mxu0 %v2506
    %2529 = vmatprep.subr.bf16.mxu0 0
    %2530 = vmatpush1.bf16.msra.mxu0 %v2505
    %2531 = vmatprep.subr.bf16.mxu0 0
    %2532 = vmatpush1.bf16.msra.mxu0 %v2504
    %2533 = vmatprep.subr.bf16.mxu0 0
    %2534 = vmatpush1.bf16.msra.mxu0 %v2503
    %2535 = vmatprep.subr.bf16.mxu0 0
    %2536 = vmatpush2.bf16.msra.mxu0 0
    %2537 = vmatprep.subr.bf16.mxu0 0
    %2538 = vmatpush2.bf16.msra.mxu0 0
    %2539 = vmatprep.subr.bf16.mxu0 0
    %2540 = vmatpush2.bf16.msra.mxu0 0
    %2541 = vmatprep.subr.bf16.mxu0 0
    %2542 = vmatpush2.bf16.msra.mxu0 0
    %2543 = vmatprep.subr.bf16.mxu0 0
    %2544 = vmatpush2.bf16.msra.mxu0 0
    %2545 = vmatprep.subr.bf16.mxu0 0
    %2546 = vmatpush2.bf16.msra.mxu0 0
    %2547 = vmatprep.subr.bf16.mxu0 0
    %2548 = vmatpush2.bf16.msra.mxu0 0
    %2549 = vmatprep.subr.bf16.mxu0 0
    %2550 = vmatpush2.bf16.msra.mxu0 0
    %2551 = vmatprep.mubr.bf16.mxu0 0
    %2552 = vmatmul.mubr.bf16.gmra.mxu0 %v2431
    %v2553 = vpop.f32.mrf.mxu0
    %v2554 = vadd.f32 0.0, %v2553
    %v2555 = vpop.f32.mrf.mxu0
    %v2556 = vpop.f32.mrf.mxu0
    %v2557 = vadd.f32 0.0, %v2556
    %v2558 = vpop.f32.mrf.mxu0
    %2559 = vmatprep.mubr.bf16.mxu0 0
    %2560 = vmatmul.mubr.bf16.gmra.mxu0 %v2432
    %v2561 = vpop.f32.mrf.mxu0
    %v2562 = vadd.f32 0.0, %v2561
    %v2563 = vpop.f32.mrf.mxu0
    %v2564 = vpop.f32.mrf.mxu0
    %v2565 = vadd.f32 0.0, %v2564
    %v2566 = vpop.f32.mrf.mxu0
    %2567 = vmatprep.mubr.bf16.mxu0 0
    %2568 = vmatmul.mubr.bf16.gmra.mxu0 %v2433
    %v2569 = vpop.f32.mrf.mxu0
    %v2570 = vadd.f32 0.0, %v2569
    %v2571 = vpop.f32.mrf.mxu0
    %v2572 = vpop.f32.mrf.mxu0
    %v2573 = vadd.f32 0.0, %v2572
    %v2574 = vpop.f32.mrf.mxu0
    %2575 = vmatprep.mubr.bf16.mxu0 0
    %2576 = vmatmul.mubr.bf16.gmra.mxu0 %v2434
    %v2577 = vpop.f32.mrf.mxu0
    %v2578 = vadd.f32 0.0, %v2577
    %v2579 = vpop.f32.mrf.mxu0
    %v2580 = vpop.f32.mrf.mxu0
    %v2581 = vadd.f32 0.0, %v2580
    %v2582 = vpop.f32.mrf.mxu0
    %2583 = vmatprep.mubr.bf16.mxu0 0
    %2584 = vmatmul.mubr.bf16.gmra.mxu0 %v2435
    %v2585 = vpop.f32.mrf.mxu0
    %v2586 = vadd.f32 0.0, %v2585
    %v2587 = vpop.f32.mrf.mxu0
    %v2588 = vpop.f32.mrf.mxu0
    %v2589 = vadd.f32 0.0, %v2588
    %v2590 = vpop.f32.mrf.mxu0
    %2591 = vmatprep.mubr.bf16.mxu0 0
    %2592 = vmatmul.mubr.bf16.gmra.mxu0 %v2436
    %v2593 = vpop.f32.mrf.mxu0
    %v2594 = vadd.f32 0.0, %v2593
    %v2595 = vpop.f32.mrf.mxu0
    %v2596 = vpop.f32.mrf.mxu0
    %v2597 = vadd.f32 0.0, %v2596
    %v2598 = vpop.f32.mrf.mxu0
    %2599 = vmatprep.mubr.bf16.mxu0 0
    %2600 = vmatmul.mubr.bf16.gmra.mxu0 %v2437
    %v2601 = vpop.f32.mrf.mxu0
    %v2602 = vadd.f32 0.0, %v2601
    %v2603 = vpop.f32.mrf.mxu0
    %v2604 = vpop.f32.mrf.mxu0
    %v2605 = vadd.f32 0.0, %v2604
    %v2606 = vpop.f32.mrf.mxu0
    %2607 = vmatprep.mubr.bf16.mxu0 0
    %2608 = vmatmul.mubr.bf16.gmra.mxu0 %v2438
    %v2609 = vpop.f32.mrf.mxu0
    %v2610 = vadd.f32 0.0, %v2609
    %v2611 = vpop.f32.mrf.mxu0
    %v2612 = vpop.f32.mrf.mxu0
    %v2613 = vadd.f32 0.0, %v2612
    %v2614 = vpop.f32.mrf.mxu0
    %2615 = vmatprep.mubr.bf16.mxu0 0
    %2616 = vmatmul.mubr.bf16.gmra.mxu0 %v2439
    %v2617 = vpop.f32.mrf.mxu0
    %v2618 = vadd.f32 0.0, %v2617
    %v2619 = vpop.f32.mrf.mxu0
    %v2620 = vpop.f32.mrf.mxu0
    %v2621 = vadd.f32 0.0, %v2620
    %v2622 = vpop.f32.mrf.mxu0
    %2623 = vmatprep.mubr.bf16.mxu0 0
    %2624 = vmatmul.mubr.bf16.gmra.mxu0 %v2440
    %v2625 = vpop.f32.mrf.mxu0
    %v2626 = vadd.f32 0.0, %v2625
    %v2627 = vpop.f32.mrf.mxu0
    %v2628 = vpop.f32.mrf.mxu0
    %v2629 = vadd.f32 0.0, %v2628
    %v2630 = vpop.f32.mrf.mxu0
    %2631 = vmatprep.mubr.bf16.mxu0 0
    %2632 = vmatmul.mubr.bf16.gmra.mxu0 %v2441
    %v2633 = vpop.f32.mrf.mxu0
    %v2634 = vadd.f32 0.0, %v2633
    %v2635 = vpop.f32.mrf.mxu0
    %v2636 = vpop.f32.mrf.mxu0
    %v2637 = vadd.f32 0.0, %v2636
    %v2638 = vpop.f32.mrf.mxu0
    %2639 = vmatprep.mubr.bf16.mxu0 0
    %2640 = vmatmul.mubr.bf16.gmra.mxu0 %v2442
    %v2641 = vpop.f32.mrf.mxu0
    %v2642 = vadd.f32 0.0, %v2641
    %v2643 = vpop.f32.mrf.mxu0
    %v2644 = vpop.f32.mrf.mxu0
    %v2645 = vadd.f32 0.0, %v2644
    %v2646 = vpop.f32.mrf.mxu0
    %2647 = vmatprep.mubr.bf16.mxu0 0
    %2648 = vmatmul.mubr.bf16.gmra.mxu0 %v2443
    %v2649 = vpop.f32.mrf.mxu0
    %v2650 = vadd.f32 0.0, %v2649
    %v2651 = vpop.f32.mrf.mxu0
    %v2652 = vpop.f32.mrf.mxu0
    %v2653 = vadd.f32 0.0, %v2652
    %v2654 = vpop.f32.mrf.mxu0
    %2655 = vmatprep.mubr.bf16.mxu0 0
    %2656 = vmatmul.mubr.bf16.gmra.mxu0 %v2444
    %v2657 = vpop.f32.mrf.mxu0
    %v2658 = vadd.f32 0.0, %v2657
    %v2659 = vpop.f32.mrf.mxu0
    %v2660 = vpop.f32.mrf.mxu0
    %v2661 = vadd.f32 0.0, %v2660
    %v2662 = vpop.f32.mrf.mxu0
    %2663 = vmatprep.mubr.bf16.mxu0 0
    %2664 = vmatmul.mubr.bf16.gmra.mxu0 %v2445
    %v2665 = vpop.f32.mrf.mxu0
    %v2666 = vadd.f32 0.0, %v2665
    %v2667 = vpop.f32.mrf.mxu0
    %v2668 = vpop.f32.mrf.mxu0
    %v2669 = vadd.f32 0.0, %v2668
    %v2670 = vpop.f32.mrf.mxu0
    %2671 = vmatprep.mubr.bf16.mxu0 0
    %2672 = vmatmul.mubr.bf16.gmra.mxu0 %v2446
    %v2673 = vpop.f32.mrf.mxu0
    %v2674 = vadd.f32 0.0, %v2673
    %v2675 = vpop.f32.mrf.mxu0
    %v2676 = vpop.f32.mrf.mxu0
    %v2677 = vadd.f32 0.0, %v2676
    %v2678 = vpop.f32.mrf.mxu0
    %2679 = vmatprep.mubr.bf16.mxu0 0
    %2680 = vmatmul.mubr.bf16.gmra.mxu0 %v2447
    %v2681 = vpop.f32.mrf.mxu0
    %v2682 = vadd.f32 0.0, %v2681
    %v2683 = vpop.f32.mrf.mxu0
    %v2684 = vpop.f32.mrf.mxu0
    %v2685 = vadd.f32 0.0, %v2684
    %v2686 = vpop.f32.mrf.mxu0
    %2687 = vmatprep.mubr.bf16.mxu0 0
    %2688 = vmatmul.mubr.bf16.gmra.mxu0 %v2448
    %v2689 = vpop.f32.mrf.mxu0
    %v2690 = vadd.f32 0.0, %v2689
    %v2691 = vpop.f32.mrf.mxu0
    %v2692 = vpop.f32.mrf.mxu0
    %v2693 = vadd.f32 0.0, %v2692
    %v2694 = vpop.f32.mrf.mxu0
    %2695 = vmatprep.mubr.bf16.mxu0 0
    %2696 = vmatmul.mubr.bf16.gmra.mxu0 %v2449
    %v2697 = vpop.f32.mrf.mxu0
    %v2698 = vadd.f32 0.0, %v2697
    %v2699 = vpop.f32.mrf.mxu0
    %v2700 = vpop.f32.mrf.mxu0
    %v2701 = vadd.f32 0.0, %v2700
    %v2702 = vpop.f32.mrf.mxu0
    %2703 = vmatprep.mubr.bf16.mxu0 0
    %2704 = vmatmul.mubr.bf16.gmra.mxu0 %v2450
    %v2705 = vpop.f32.mrf.mxu0
    %v2706 = vadd.f32 0.0, %v2705
    %v2707 = vpop.f32.mrf.mxu0
    %v2708 = vpop.f32.mrf.mxu0
    %v2709 = vadd.f32 0.0, %v2708
    %v2710 = vpop.f32.mrf.mxu0
    %2711 = vmatprep.mubr.bf16.mxu0 0
    %2712 = vmatmul.mubr.bf16.gmra.mxu0 %v2451
    %v2713 = vpop.f32.mrf.mxu0
    %v2714 = vadd.f32 0.0, %v2713
    %v2715 = vpop.f32.mrf.mxu0
    %v2716 = vpop.f32.mrf.mxu0
    %v2717 = vadd.f32 0.0, %v2716
    %v2718 = vpop.f32.mrf.mxu0
    %2719 = vmatprep.mubr.bf16.mxu0 0
    %2720 = vmatmul.mubr.bf16.gmra.mxu0 %v2452
    %v2721 = vpop.f32.mrf.mxu0
    %v2722 = vadd.f32 0.0, %v2721
    %v2723 = vpop.f32.mrf.mxu0
    %v2724 = vpop.f32.mrf.mxu0
    %v2725 = vadd.f32 0.0, %v2724
    %v2726 = vpop.f32.mrf.mxu0
    %2727 = vmatprep.mubr.bf16.mxu0 0
    %2728 = vmatmul.mubr.bf16.gmra.mxu0 %v2453
    %v2729 = vpop.f32.mrf.mxu0
    %v2730 = vadd.f32 0.0, %v2729
    %v2731 = vpop.f32.mrf.mxu0
    %v2732 = vpop.f32.mrf.mxu0
    %v2733 = vadd.f32 0.0, %v2732
    %v2734 = vpop.f32.mrf.mxu0
    %2735 = vmatprep.mubr.bf16.mxu0 0
    %2736 = vmatmul.mubr.bf16.gmra.mxu0 %v2454
    %v2737 = vpop.f32.mrf.mxu0
    %v2738 = vadd.f32 0.0, %v2737
    %v2739 = vpop.f32.mrf.mxu0
    %v2740 = vpop.f32.mrf.mxu0
    %v2741 = vadd.f32 0.0, %v2740
    %v2742 = vpop.f32.mrf.mxu0
    %2743 = vdwg.mxu0
    %v2744 = vpack.c.bf16 %v2557, %v2554
    %v2745 = vpack.c.bf16 %v2565, %v2562
    %v2746 = vpack.c.bf16 %v2573, %v2570
    %v2747 = vpack.c.bf16 %v2581, %v2578
    %v2748 = vpack.c.bf16 %v2589, %v2586
    %v2749 = vpack.c.bf16 %v2597, %v2594
    %v2750 = vpack.c.bf16 %v2605, %v2602
    %v2751 = vpack.c.bf16 %v2613, %v2610
    %v2752 = vpack.c.bf16 %v2621, %v2618
    %v2753 = vpack.c.bf16 %v2629, %v2626
    %v2754 = vpack.c.bf16 %v2637, %v2634
    %v2755 = vpack.c.bf16 %v2645, %v2642
    %v2756 = vpack.c.bf16 %v2653, %v2650
    %v2757 = vpack.c.bf16 %v2661, %v2658
    %v2758 = vpack.c.bf16 %v2669, %v2666
    %v2759 = vpack.c.bf16 %v2677, %v2674
    %v2760 = vpack.c.bf16 %v2685, %v2682
    %v2761 = vpack.c.bf16 %v2693, %v2690
    %v2762 = vpack.c.bf16 %v2701, %v2698
    %v2763 = vpack.c.bf16 %v2709, %v2706
    %v2764 = vpack.c.bf16 %v2717, %v2714
    %v2765 = vpack.c.bf16 %v2725, %v2722
    %v2766 = vpack.c.bf16 %v2733, %v2730
    %v2767 = vpack.c.bf16 %v2741, %v2738
    %v2768 = vld [vmem:[%s7] sm:$0x1]
    %v2770 = vlaneseq
    %v2771 = vshrl.u32 %v2770, 7
    %v2772 = vsub.s32 0, %v2771
    %v2773 = vrot.slane %v2768, %v2772
    %2775 = vmatprep.subr.bf16.mxu0 0
    %2776 = vmatpush1.bf16.msra.mxu0 %v2751
    %2777 = vmatprep.subr.bf16.mxu0 0
    %2778 = vmatpush1.bf16.msra.mxu0 %v2750
    %2779 = vmatprep.subr.bf16.mxu0 0
    %2780 = vmatpush1.bf16.msra.mxu0 %v2749
    %2781 = vmatprep.subr.bf16.mxu0 0
    %2782 = vmatpush1.bf16.msra.mxu0 %v2748
    %2783 = vmatprep.subr.bf16.mxu0 0
    %2784 = vmatpush1.bf16.msra.mxu0 %v2747
    %2785 = vmatprep.subr.bf16.mxu0 0
    %2786 = vmatpush1.bf16.msra.mxu0 %v2746
    %2787 = vmatprep.subr.bf16.mxu0 0
    %2788 = vmatpush1.bf16.msra.mxu0 %v2745
    %2789 = vmatprep.subr.bf16.mxu0 0
    %2790 = vmatpush1.bf16.msra.mxu0 %v2744
    %2791 = vmatprep.subr.bf16.mxu0 0
    %2792 = vmatpush2.bf16.msra.mxu0 %v2759
    %2793 = vmatprep.subr.bf16.mxu0 0
    %2794 = vmatpush2.bf16.msra.mxu0 %v2758
    %2795 = vmatprep.subr.bf16.mxu0 0
    %2796 = vmatpush2.bf16.msra.mxu0 %v2757
    %2797 = vmatprep.subr.bf16.mxu0 0
    %2798 = vmatpush2.bf16.msra.mxu0 %v2756
    %2799 = vmatprep.subr.bf16.mxu0 0
    %2800 = vmatpush2.bf16.msra.mxu0 %v2755
    %2801 = vmatprep.subr.bf16.mxu0 0
    %2802 = vmatpush2.bf16.msra.mxu0 %v2754
    %2803 = vmatprep.subr.bf16.mxu0 0
    %2804 = vmatpush2.bf16.msra.mxu0 %v2753
    %2805 = vmatprep.subr.bf16.mxu0 0
    %2806 = vmatpush2.bf16.msra.mxu0 %v2752
    %2807 = vmatprep.mubr.bf16.mxu0 %v948
    %2808 = vmatmul.mubr.bf16.gmra.mxu0 %v947
    %v2809 = vpop.f32.mrf.mxu0
    %v2810 = vadd.f32 %v2773, %v2809
    %v2811 = vpop.f32.mrf.mxu0
    %v2812 = vpop.f32.mrf.mxu0
    %v2813 = vadd.f32 %v2773, %v2812
    %v2814 = vpop.f32.mrf.mxu0
    %2815 = vmatprep.mubr.bf16.mxu0 %v951
    %2816 = vmatmul.mubr.bf16.gmra.mxu0 %v950
    %v2817 = vpop.f32.mrf.mxu0
    %v2818 = vadd.f32 %v2773, %v2817
    %v2819 = vpop.f32.mrf.mxu0
    %v2820 = vpop.f32.mrf.mxu0
    %v2821 = vadd.f32 %v2773, %v2820
    %v2822 = vpop.f32.mrf.mxu0
    %2823 = vmatprep.mubr.bf16.mxu0 %v954
    %2824 = vmatmul.mubr.bf16.gmra.mxu0 %v953
    %v2825 = vpop.f32.mrf.mxu0
    %v2826 = vadd.f32 %v2773, %v2825
    %v2827 = vpop.f32.mrf.mxu0
    %v2828 = vpop.f32.mrf.mxu0
    %v2829 = vadd.f32 %v2773, %v2828
    %v2830 = vpop.f32.mrf.mxu0
    %2831 = vmatprep.mubr.bf16.mxu0 %v957
    %2832 = vmatmul.mubr.bf16.gmra.mxu0 %v956
    %v2833 = vpop.f32.mrf.mxu0
    %v2834 = vadd.f32 %v2773, %v2833
    %v2835 = vpop.f32.mrf.mxu0
    %v2836 = vpop.f32.mrf.mxu0
    %v2837 = vadd.f32 %v2773, %v2836
    %v2838 = vpop.f32.mrf.mxu0
    %2839 = vmatprep.mubr.bf16.mxu0 %v960
    %2840 = vmatmul.mubr.bf16.gmra.mxu0 %v959
    %v2841 = vpop.f32.mrf.mxu0
    %v2842 = vadd.f32 %v2773, %v2841
    %v2843 = vpop.f32.mrf.mxu0
    %v2844 = vpop.f32.mrf.mxu0
    %v2845 = vadd.f32 %v2773, %v2844
    %v2846 = vpop.f32.mrf.mxu0
    %2847 = vmatprep.mubr.bf16.mxu0 %v963
    %2848 = vmatmul.mubr.bf16.gmra.mxu0 %v962
    %v2849 = vpop.f32.mrf.mxu0
    %v2850 = vadd.f32 %v2773, %v2849
    %v2851 = vpop.f32.mrf.mxu0
    %v2852 = vpop.f32.mrf.mxu0
    %v2853 = vadd.f32 %v2773, %v2852
    %v2854 = vpop.f32.mrf.mxu0
    %2855 = vmatprep.mubr.bf16.mxu0 %v966
    %2856 = vmatmul.mubr.bf16.gmra.mxu0 %v965
    %v2857 = vpop.f32.mrf.mxu0
    %v2858 = vadd.f32 %v2773, %v2857
    %v2859 = vpop.f32.mrf.mxu0
    %v2860 = vpop.f32.mrf.mxu0
    %v2861 = vadd.f32 %v2773, %v2860
    %v2862 = vpop.f32.mrf.mxu0
    %2863 = vmatprep.mubr.bf16.mxu0 %v969
    %2864 = vmatmul.mubr.bf16.gmra.mxu0 %v968
    %v2865 = vpop.f32.mrf.mxu0
    %v2866 = vadd.f32 %v2773, %v2865
    %v2867 = vpop.f32.mrf.mxu0
    %v2868 = vpop.f32.mrf.mxu0
    %v2869 = vadd.f32 %v2773, %v2868
    %v2870 = vpop.f32.mrf.mxu0
    %2871 = vmatprep.mubr.bf16.mxu0 %v972
    %2872 = vmatmul.mubr.bf16.gmra.mxu0 %v971
    %v2873 = vpop.f32.mrf.mxu0
    %v2874 = vadd.f32 %v2773, %v2873
    %v2875 = vpop.f32.mrf.mxu0
    %v2876 = vpop.f32.mrf.mxu0
    %v2877 = vadd.f32 %v2773, %v2876
    %v2878 = vpop.f32.mrf.mxu0
    %2879 = vmatprep.mubr.bf16.mxu0 %v975
    %2880 = vmatmul.mubr.bf16.gmra.mxu0 %v974
    %v2881 = vpop.f32.mrf.mxu0
    %v2882 = vadd.f32 %v2773, %v2881
    %v2883 = vpop.f32.mrf.mxu0
    %v2884 = vpop.f32.mrf.mxu0
    %v2885 = vadd.f32 %v2773, %v2884
    %v2886 = vpop.f32.mrf.mxu0
    %2887 = vmatprep.mubr.bf16.mxu0 %v978
    %2888 = vmatmul.mubr.bf16.gmra.mxu0 %v977
    %v2889 = vpop.f32.mrf.mxu0
    %v2890 = vadd.f32 %v2773, %v2889
    %v2891 = vpop.f32.mrf.mxu0
    %v2892 = vpop.f32.mrf.mxu0
    %v2893 = vadd.f32 %v2773, %v2892
    %v2894 = vpop.f32.mrf.mxu0
    %2895 = vmatprep.mubr.bf16.mxu0 %v981
    %2896 = vmatmul.mubr.bf16.gmra.mxu0 %v980
    %v2897 = vpop.f32.mrf.mxu0
    %v2898 = vadd.f32 %v2773, %v2897
    %v2899 = vpop.f32.mrf.mxu0
    %v2900 = vpop.f32.mrf.mxu0
    %v2901 = vadd.f32 %v2773, %v2900
    %v2902 = vpop.f32.mrf.mxu0
    %2903 = vmatprep.mubr.bf16.mxu0 %v984
    %2904 = vmatmul.mubr.bf16.gmra.mxu0 %v983
    %v2905 = vpop.f32.mrf.mxu0
    %v2906 = vadd.f32 %v2773, %v2905
    %v2907 = vpop.f32.mrf.mxu0
    %v2908 = vpop.f32.mrf.mxu0
    %v2909 = vadd.f32 %v2773, %v2908
    %v2910 = vpop.f32.mrf.mxu0
    %2911 = vmatprep.mubr.bf16.mxu0 %v987
    %2912 = vmatmul.mubr.bf16.gmra.mxu0 %v986
    %v2913 = vpop.f32.mrf.mxu0
    %v2914 = vadd.f32 %v2773, %v2913
    %v2915 = vpop.f32.mrf.mxu0
    %v2916 = vpop.f32.mrf.mxu0
    %v2917 = vadd.f32 %v2773, %v2916
    %v2918 = vpop.f32.mrf.mxu0
    %2919 = vmatprep.mubr.bf16.mxu0 %v990
    %2920 = vmatmul.mubr.bf16.gmra.mxu0 %v989
    %v2921 = vpop.f32.mrf.mxu0
    %v2922 = vadd.f32 %v2773, %v2921
    %v2923 = vpop.f32.mrf.mxu0
    %v2924 = vpop.f32.mrf.mxu0
    %v2925 = vadd.f32 %v2773, %v2924
    %v2926 = vpop.f32.mrf.mxu0
    %2927 = vmatprep.mubr.bf16.mxu0 %v993
    %2928 = vmatmul.mubr.bf16.gmra.mxu0 %v992
    %v2929 = vpop.f32.mrf.mxu0
    %v2930 = vadd.f32 %v2773, %v2929
    %v2931 = vpop.f32.mrf.mxu0
    %v2932 = vpop.f32.mrf.mxu0
    %v2933 = vadd.f32 %v2773, %v2932
    %v2934 = vpop.f32.mrf.mxu0
    %2935 = vmatprep.mubr.bf16.mxu0 %v996
    %2936 = vmatmul.mubr.bf16.gmra.mxu0 %v995
    %v2937 = vpop.f32.mrf.mxu0
    %v2938 = vadd.f32 %v2773, %v2937
    %v2939 = vpop.f32.mrf.mxu0
    %v2940 = vpop.f32.mrf.mxu0
    %v2941 = vadd.f32 %v2773, %v2940
    %v2942 = vpop.f32.mrf.mxu0
    %2943 = vmatprep.mubr.bf16.mxu0 %v999
    %2944 = vmatmul.mubr.bf16.gmra.mxu0 %v998
    %v2945 = vpop.f32.mrf.mxu0
    %v2946 = vadd.f32 %v2773, %v2945
    %v2947 = vpop.f32.mrf.mxu0
    %v2948 = vpop.f32.mrf.mxu0
    %v2949 = vadd.f32 %v2773, %v2948
    %v2950 = vpop.f32.mrf.mxu0
    %2951 = vmatprep.mubr.bf16.mxu0 %v1002
    %2952 = vmatmul.mubr.bf16.gmra.mxu0 %v1001
    %v2953 = vpop.f32.mrf.mxu0
    %v2954 = vadd.f32 %v2773, %v2953
    %v2955 = vpop.f32.mrf.mxu0
    %v2956 = vpop.f32.mrf.mxu0
    %v2957 = vadd.f32 %v2773, %v2956
    %v2958 = vpop.f32.mrf.mxu0
    %2959 = vmatprep.mubr.bf16.mxu0 %v1005
    %2960 = vmatmul.mubr.bf16.gmra.mxu0 %v1004
    %v2961 = vpop.f32.mrf.mxu0
    %v2962 = vadd.f32 %v2773, %v2961
    %v2963 = vpop.f32.mrf.mxu0
    %v2964 = vpop.f32.mrf.mxu0
    %v2965 = vadd.f32 %v2773, %v2964
    %v2966 = vpop.f32.mrf.mxu0
    %2967 = vmatprep.mubr.bf16.mxu0 %v1008
    %2968 = vmatmul.mubr.bf16.gmra.mxu0 %v1007
    %v2969 = vpop.f32.mrf.mxu0
    %v2970 = vadd.f32 %v2773, %v2969
    %v2971 = vpop.f32.mrf.mxu0
    %v2972 = vpop.f32.mrf.mxu0
    %v2973 = vadd.f32 %v2773, %v2972
    %v2974 = vpop.f32.mrf.mxu0
    %2975 = vmatprep.mubr.bf16.mxu0 %v1011
    %2976 = vmatmul.mubr.bf16.gmra.mxu0 %v1010
    %v2977 = vpop.f32.mrf.mxu0
    %v2978 = vadd.f32 %v2773, %v2977
    %v2979 = vpop.f32.mrf.mxu0
    %v2980 = vpop.f32.mrf.mxu0
    %v2981 = vadd.f32 %v2773, %v2980
    %v2982 = vpop.f32.mrf.mxu0
    %2983 = vmatprep.mubr.bf16.mxu0 %v1014
    %2984 = vmatmul.mubr.bf16.gmra.mxu0 %v1013
    %v2985 = vpop.f32.mrf.mxu0
    %v2986 = vadd.f32 %v2773, %v2985
    %v2987 = vpop.f32.mrf.mxu0
    %v2988 = vpop.f32.mrf.mxu0
    %v2989 = vadd.f32 %v2773, %v2988
    %v2990 = vpop.f32.mrf.mxu0
    %2991 = vmatprep.mubr.bf16.mxu0 %v1017
    %2992 = vmatmul.mubr.bf16.gmra.mxu0 %v1016
    %v2993 = vpop.f32.mrf.mxu0
    %v2994 = vadd.f32 %v2773, %v2993
    %v2995 = vpop.f32.mrf.mxu0
    %v2996 = vpop.f32.mrf.mxu0
    %v2997 = vadd.f32 %v2773, %v2996
    %v2998 = vpop.f32.mrf.mxu0
    %2999 = vdwg.mxu0
    %3000 = vmatprep.subr.bf16.mxu0 0
    %3001 = vmatpush1.bf16.msra.mxu0 %v2767
    %3002 = vmatprep.subr.bf16.mxu0 0
    %3003 = vmatpush1.bf16.msra.mxu0 %v2766
    %3004 = vmatprep.subr.bf16.mxu0 0
    %3005 = vmatpush1.bf16.msra.mxu0 %v2765
    %3006 = vmatprep.subr.bf16.mxu0 0
    %3007 = vmatpush1.bf16.msra.mxu0 %v2764
    %3008 = vmatprep.subr.bf16.mxu0 0
    %3009 = vmatpush1.bf16.msra.mxu0 %v2763
    %3010 = vmatprep.subr.bf16.mxu0 0
    %3011 = vmatpush1.bf16.msra.mxu0 %v2762
    %3012 = vmatprep.subr.bf16.mxu0 0
    %3013 = vmatpush1.bf16.msra.mxu0 %v2761
    %3014 = vmatprep.subr.bf16.mxu0 0
    %3015 = vmatpush1.bf16.msra.mxu0 %v2760
    %3016 = vmatprep.subr.bf16.mxu0 0
    %3017 = vmatpush2.bf16.msra.mxu0 0
    %3018 = vmatprep.subr.bf16.mxu0 0
    %3019 = vmatpush2.bf16.msra.mxu0 0
    %3020 = vmatprep.subr.bf16.mxu0 0
    %3021 = vmatpush2.bf16.msra.mxu0 0
    %3022 = vmatprep.subr.bf16.mxu0 0
    %3023 = vmatpush2.bf16.msra.mxu0 0
    %3024 = vmatprep.subr.bf16.mxu0 0
    %3025 = vmatpush2.bf16.msra.mxu0 0
    %3026 = vmatprep.subr.bf16.mxu0 0
    %3027 = vmatpush2.bf16.msra.mxu0 0
    %3028 = vmatprep.subr.bf16.mxu0 0
    %3029 = vmatpush2.bf16.msra.mxu0 0
    %3030 = vmatprep.subr.bf16.mxu0 0
    %3031 = vmatpush2.bf16.msra.mxu0 0
    %3032 = vmatprep.mubr.bf16.mxu0 0
    %3033 = vmatmul.mubr.bf16.gmra.mxu0 %v949
    %v3034 = vpop.f32.mrf.mxu0
    %v3035 = vadd.f32 %v2810, %v3034
    %v3036 = vpop.f32.mrf.mxu0
    %v3037 = vpop.f32.mrf.mxu0
    %v3038 = vadd.f32 %v2813, %v3037
    %v3039 = vpop.f32.mrf.mxu0
    %3040 = vmatprep.mubr.bf16.mxu0 0
    %3041 = vmatmul.mubr.bf16.gmra.mxu0 %v952
    %v3042 = vpop.f32.mrf.mxu0
    %v3043 = vadd.f32 %v2818, %v3042
    %v3044 = vpop.f32.mrf.mxu0
    %v3045 = vpop.f32.mrf.mxu0
    %v3046 = vadd.f32 %v2821, %v3045
    %v3047 = vpop.f32.mrf.mxu0
    %3048 = vmatprep.mubr.bf16.mxu0 0
    %3049 = vmatmul.mubr.bf16.gmra.mxu0 %v955
    %v3050 = vpop.f32.mrf.mxu0
    %v3051 = vadd.f32 %v2826, %v3050
    %v3052 = vpop.f32.mrf.mxu0
    %v3053 = vpop.f32.mrf.mxu0
    %v3054 = vadd.f32 %v2829, %v3053
    %v3055 = vpop.f32.mrf.mxu0
    %3056 = vmatprep.mubr.bf16.mxu0 0
    %3057 = vmatmul.mubr.bf16.gmra.mxu0 %v958
    %v3058 = vpop.f32.mrf.mxu0
    %v3059 = vadd.f32 %v2834, %v3058
    %v3060 = vpop.f32.mrf.mxu0
    %v3061 = vpop.f32.mrf.mxu0
    %v3062 = vadd.f32 %v2837, %v3061
    %v3063 = vpop.f32.mrf.mxu0
    %3064 = vmatprep.mubr.bf16.mxu0 0
    %3065 = vmatmul.mubr.bf16.gmra.mxu0 %v961
    %v3066 = vpop.f32.mrf.mxu0
    %v3067 = vadd.f32 %v2842, %v3066
    %v3068 = vpop.f32.mrf.mxu0
    %v3069 = vpop.f32.mrf.mxu0
    %v3070 = vadd.f32 %v2845, %v3069
    %v3071 = vpop.f32.mrf.mxu0
    %3072 = vmatprep.mubr.bf16.mxu0 0
    %3073 = vmatmul.mubr.bf16.gmra.mxu0 %v964
    %v3074 = vpop.f32.mrf.mxu0
    %v3075 = vadd.f32 %v2850, %v3074
    %v3076 = vpop.f32.mrf.mxu0
    %v3077 = vpop.f32.mrf.mxu0
    %v3078 = vadd.f32 %v2853, %v3077
    %v3079 = vpop.f32.mrf.mxu0
    %3080 = vmatprep.mubr.bf16.mxu0 0
    %3081 = vmatmul.mubr.bf16.gmra.mxu0 %v967
    %v3082 = vpop.f32.mrf.mxu0
    %v3083 = vadd.f32 %v2858, %v3082
    %v3084 = vpop.f32.mrf.mxu0
    %v3085 = vpop.f32.mrf.mxu0
    %v3086 = vadd.f32 %v2861, %v3085
    %v3087 = vpop.f32.mrf.mxu0
    %3088 = vmatprep.mubr.bf16.mxu0 0
    %3089 = vmatmul.mubr.bf16.gmra.mxu0 %v970
    %v3090 = vpop.f32.mrf.mxu0
    %v3091 = vadd.f32 %v2866, %v3090
    %v3092 = vpop.f32.mrf.mxu0
    %v3093 = vpop.f32.mrf.mxu0
    %v3094 = vadd.f32 %v2869, %v3093
    %v3095 = vpop.f32.mrf.mxu0
    %3096 = vmatprep.mubr.bf16.mxu0 0
    %3097 = vmatmul.mubr.bf16.gmra.mxu0 %v973
    %v3098 = vpop.f32.mrf.mxu0
    %v3099 = vadd.f32 %v2874, %v3098
    %v3100 = vpop.f32.mrf.mxu0
    %v3101 = vpop.f32.mrf.mxu0
    %v3102 = vadd.f32 %v2877, %v3101
    %v3103 = vpop.f32.mrf.mxu0
    %3104 = vmatprep.mubr.bf16.mxu0 0
    %3105 = vmatmul.mubr.bf16.gmra.mxu0 %v976
    %v3106 = vpop.f32.mrf.mxu0
    %v3107 = vadd.f32 %v2882, %v3106
    %v3108 = vpop.f32.mrf.mxu0
    %v3109 = vpop.f32.mrf.mxu0
    %v3110 = vadd.f32 %v2885, %v3109
    %v3111 = vpop.f32.mrf.mxu0
    %3112 = vmatprep.mubr.bf16.mxu0 0
    %3113 = vmatmul.mubr.bf16.gmra.mxu0 %v979
    %v3114 = vpop.f32.mrf.mxu0
    %v3115 = vadd.f32 %v2890, %v3114
    %v3116 = vpop.f32.mrf.mxu0
    %v3117 = vpop.f32.mrf.mxu0
    %v3118 = vadd.f32 %v2893, %v3117
    %v3119 = vpop.f32.mrf.mxu0
    %3120 = vmatprep.mubr.bf16.mxu0 0
    %3121 = vmatmul.mubr.bf16.gmra.mxu0 %v982
    %v3122 = vpop.f32.mrf.mxu0
    %v3123 = vadd.f32 %v2898, %v3122
    %v3124 = vpop.f32.mrf.mxu0
    %v3125 = vpop.f32.mrf.mxu0
    %v3126 = vadd.f32 %v2901, %v3125
    %v3127 = vpop.f32.mrf.mxu0
    %3128 = vmatprep.mubr.bf16.mxu0 0
    %3129 = vmatmul.mubr.bf16.gmra.mxu0 %v985
    %v3130 = vpop.f32.mrf.mxu0
    %v3131 = vadd.f32 %v2906, %v3130
    %v3132 = vpop.f32.mrf.mxu0
    %v3133 = vpop.f32.mrf.mxu0
    %v3134 = vadd.f32 %v2909, %v3133
    %v3135 = vpop.f32.mrf.mxu0
    %3136 = vmatprep.mubr.bf16.mxu0 0
    %3137 = vmatmul.mubr.bf16.gmra.mxu0 %v988
    %v3138 = vpop.f32.mrf.mxu0
    %v3139 = vadd.f32 %v2914, %v3138
    %v3140 = vpop.f32.mrf.mxu0
    %v3141 = vpop.f32.mrf.mxu0
    %v3142 = vadd.f32 %v2917, %v3141
    %v3143 = vpop.f32.mrf.mxu0
    %3144 = vmatprep.mubr.bf16.mxu0 0
    %3145 = vmatmul.mubr.bf16.gmra.mxu0 %v991
    %v3146 = vpop.f32.mrf.mxu0
    %v3147 = vadd.f32 %v2922, %v3146
    %v3148 = vpop.f32.mrf.mxu0
    %v3149 = vpop.f32.mrf.mxu0
    %v3150 = vadd.f32 %v2925, %v3149
    %v3151 = vpop.f32.mrf.mxu0
    %3152 = vmatprep.mubr.bf16.mxu0 0
    %3153 = vmatmul.mubr.bf16.gmra.mxu0 %v994
    %v3154 = vpop.f32.mrf.mxu0
    %v3155 = vadd.f32 %v2930, %v3154
    %v3156 = vpop.f32.mrf.mxu0
    %v3157 = vpop.f32.mrf.mxu0
    %v3158 = vadd.f32 %v2933, %v3157
    %v3159 = vpop.f32.mrf.mxu0
    %3160 = vmatprep.mubr.bf16.mxu0 0
    %3161 = vmatmul.mubr.bf16.gmra.mxu0 %v997
    %v3162 = vpop.f32.mrf.mxu0
    %v3163 = vadd.f32 %v2938, %v3162
    %v3164 = vpop.f32.mrf.mxu0
    %v3165 = vpop.f32.mrf.mxu0
    %v3166 = vadd.f32 %v2941, %v3165
    %v3167 = vpop.f32.mrf.mxu0
    %3168 = vmatprep.mubr.bf16.mxu0 0
    %3169 = vmatmul.mubr.bf16.gmra.mxu0 %v1000
    %v3170 = vpop.f32.mrf.mxu0
    %v3171 = vadd.f32 %v2946, %v3170
    %v3172 = vpop.f32.mrf.mxu0
    %v3173 = vpop.f32.mrf.mxu0
    %v3174 = vadd.f32 %v2949, %v3173
    %v3175 = vpop.f32.mrf.mxu0
    %3176 = vmatprep.mubr.bf16.mxu0 0
    %3177 = vmatmul.mubr.bf16.gmra.mxu0 %v1003
    %v3178 = vpop.f32.mrf.mxu0
    %v3179 = vadd.f32 %v2954, %v3178
    %v3180 = vpop.f32.mrf.mxu0
    %v3181 = vpop.f32.mrf.mxu0
    %v3182 = vadd.f32 %v2957, %v3181
    %v3183 = vpop.f32.mrf.mxu0
    %3184 = vmatprep.mubr.bf16.mxu0 0
    %3185 = vmatmul.mubr.bf16.gmra.mxu0 %v1006
    %v3186 = vpop.f32.mrf.mxu0
    %v3187 = vadd.f32 %v2962, %v3186
    %v3188 = vpop.f32.mrf.mxu0
    %v3189 = vpop.f32.mrf.mxu0
    %v3190 = vadd.f32 %v2965, %v3189
    %v3191 = vpop.f32.mrf.mxu0
    %3192 = vmatprep.mubr.bf16.mxu0 0
    %3193 = vmatmul.mubr.bf16.gmra.mxu0 %v1009
    %v3194 = vpop.f32.mrf.mxu0
    %v3195 = vadd.f32 %v2970, %v3194
    %v3196 = vpop.f32.mrf.mxu0
    %v3197 = vpop.f32.mrf.mxu0
    %v3198 = vadd.f32 %v2973, %v3197
    %v3199 = vpop.f32.mrf.mxu0
    %3200 = vmatprep.mubr.bf16.mxu0 0
    %3201 = vmatmul.mubr.bf16.gmra.mxu0 %v1012
    %v3202 = vpop.f32.mrf.mxu0
    %v3203 = vadd.f32 %v2978, %v3202
    %v3204 = vpop.f32.mrf.mxu0
    %v3205 = vpop.f32.mrf.mxu0
    %v3206 = vadd.f32 %v2981, %v3205
    %v3207 = vpop.f32.mrf.mxu0
    %3208 = vmatprep.mubr.bf16.mxu0 0
    %3209 = vmatmul.mubr.bf16.gmra.mxu0 %v1015
    %v3210 = vpop.f32.mrf.mxu0
    %v3211 = vadd.f32 %v2986, %v3210
    %v3212 = vpop.f32.mrf.mxu0
    %v3213 = vpop.f32.mrf.mxu0
    %v3214 = vadd.f32 %v2989, %v3213
    %v3215 = vpop.f32.mrf.mxu0
    %3216 = vmatprep.mubr.bf16.mxu0 0
    %3217 = vmatmul.mubr.bf16.gmra.mxu0 %v1018
    %v3218 = vpop.f32.mrf.mxu0
    %v3219 = vadd.f32 %v2994, %v3218
    %v3220 = vpop.f32.mrf.mxu0
    %v3221 = vpop.f32.mrf.mxu0
    %v3222 = vadd.f32 %v2997, %v3221
    %v3223 = vpop.f32.mrf.mxu0
    %3224 = vdwg.mxu0
    %v3225 = vlaneseq
    %v3226 = vand.u32 %v3225, 127
    %vm3227 = vcmp.lt.s32.totalorder %v3226, 10
    %v3228 = vsel %vm3227, %v3035, -inf
    %v3229 = vsel %vm3227, %v3038, -inf
    %v3230 = vsel %vm3227, %v3043, -inf
    %v3231 = vsel %vm3227, %v3046, -inf
    %v3232 = vsel %vm3227, %v3051, -inf
    %v3233 = vsel %vm3227, %v3054, -inf
    %v3234 = vsel %vm3227, %v3059, -inf
    %v3235 = vsel %vm3227, %v3062, -inf
    %v3236 = vsel %vm3227, %v3067, -inf
    %v3237 = vsel %vm3227, %v3070, -inf
    %v3238 = vsel %vm3227, %v3075, -inf
    %v3239 = vsel %vm3227, %v3078, -inf
    %v3240 = vsel %vm3227, %v3083, -inf
    %v3241 = vsel %vm3227, %v3086, -inf
    %v3242 = vsel %vm3227, %v3091, -inf
    %v3243 = vsel %vm3227, %v3094, -inf
    %v3244 = vsel %vm3227, %v3099, -inf
    %v3245 = vsel %vm3227, %v3102, -inf
    %v3246 = vsel %vm3227, %v3107, -inf
    %v3247 = vsel %vm3227, %v3110, -inf
    %v3248 = vsel %vm3227, %v3115, -inf
    %v3249 = vsel %vm3227, %v3118, -inf
    %v3250 = vsel %vm3227, %v3123, -inf
    %v3251 = vsel %vm3227, %v3126, -inf
    %v3252 = vsel %vm3227, %v3131, -inf
    %v3253 = vsel %vm3227, %v3134, -inf
    %v3254 = vsel %vm3227, %v3139, -inf
    %v3255 = vsel %vm3227, %v3142, -inf
    %v3256 = vsel %vm3227, %v3147, -inf
    %v3257 = vsel %vm3227, %v3150, -inf
    %v3258 = vsel %vm3227, %v3155, -inf
    %v3259 = vsel %vm3227, %v3158, -inf
    %v3260 = vsel %vm3227, %v3163, -inf
    %v3261 = vsel %vm3227, %v3166, -inf
    %v3262 = vsel %vm3227, %v3171, -inf
    %v3263 = vsel %vm3227, %v3174, -inf
    %v3264 = vsel %vm3227, %v3179, -inf
    %v3265 = vsel %vm3227, %v3182, -inf
    %v3266 = vsel %vm3227, %v3187, -inf
    %v3267 = vsel %vm3227, %v3190, -inf
    %v3268 = vsel %vm3227, %v3195, -inf
    %v3269 = vsel %vm3227, %v3198, -inf
    %v3270 = vsel %vm3227, %v3203, -inf
    %v3271 = vsel %vm3227, %v3206, -inf
    %v3272 = vsel %vm3227, %v3211, -inf
    %v3273 = vsel %vm3227, %v3214, -inf
    %v3274 = vsel %vm3227, %v3219, -inf
    %v3275 = vsel %vm3227, %v3222, -inf
    %3276 = vmax.xlane.f32.xlu0 %v3228
    %v3277 = vpop.xlane.xlu0 %3276
    %3278 = vmax.xlane.f32.xlu0 %v3229
    %v3279 = vpop.xlane.xlu0 %3278
    %3280 = vmax.xlane.f32.xlu0 %v3230
    %v3281 = vpop.xlane.xlu0 %3280
    %3282 = vmax.xlane.f32.xlu0 %v3231
    %v3283 = vpop.xlane.xlu0 %3282
    %3284 = vmax.xlane.f32.xlu0 %v3232
    %v3285 = vpop.xlane.xlu0 %3284
    %3286 = vmax.xlane.f32.xlu0 %v3233
    %v3287 = vpop.xlane.xlu0 %3286
    %3288 = vmax.xlane.f32.xlu0 %v3234
    %v3289 = vpop.xlane.xlu0 %3288
    %3290 = vmax.xlane.f32.xlu0 %v3235
    %v3291 = vpop.xlane.xlu0 %3290
    %3292 = vmax.xlane.f32.xlu0 %v3236
    %v3293 = vpop.xlane.xlu0 %3292
    %3294 = vmax.xlane.f32.xlu0 %v3237
    %v3295 = vpop.xlane.xlu0 %3294
    %3296 = vmax.xlane.f32.xlu0 %v3238
    %v3297 = vpop.xlane.xlu0 %3296
    %3298 = vmax.xlane.f32.xlu0 %v3239
    %v3299 = vpop.xlane.xlu0 %3298
    %3300 = vmax.xlane.f32.xlu0 %v3240
    %v3301 = vpop.xlane.xlu0 %3300
    %3302 = vmax.xlane.f32.xlu0 %v3241
    %v3303 = vpop.xlane.xlu0 %3302
    %3304 = vmax.xlane.f32.xlu0 %v3242
    %v3305 = vpop.xlane.xlu0 %3304
    %3306 = vmax.xlane.f32.xlu0 %v3243
    %v3307 = vpop.xlane.xlu0 %3306
    %3308 = vmax.xlane.f32.xlu0 %v3244
    %v3309 = vpop.xlane.xlu0 %3308
    %3310 = vmax.xlane.f32.xlu0 %v3245
    %v3311 = vpop.xlane.xlu0 %3310
    %3312 = vmax.xlane.f32.xlu0 %v3246
    %v3313 = vpop.xlane.xlu0 %3312
    %3314 = vmax.xlane.f32.xlu0 %v3247
    %v3315 = vpop.xlane.xlu0 %3314
    %3316 = vmax.xlane.f32.xlu0 %v3248
    %v3317 = vpop.xlane.xlu0 %3316
    %3318 = vmax.xlane.f32.xlu0 %v3249
    %v3319 = vpop.xlane.xlu0 %3318
    %3320 = vmax.xlane.f32.xlu0 %v3250
    %v3321 = vpop.xlane.xlu0 %3320
    %3322 = vmax.xlane.f32.xlu0 %v3251
    %v3323 = vpop.xlane.xlu0 %3322
    %3324 = vmax.xlane.f32.xlu0 %v3252
    %v3325 = vpop.xlane.xlu0 %3324
    %3326 = vmax.xlane.f32.xlu0 %v3253
    %v3327 = vpop.xlane.xlu0 %3326
    %3328 = vmax.xlane.f32.xlu0 %v3254
    %v3329 = vpop.xlane.xlu0 %3328
    %3330 = vmax.xlane.f32.xlu0 %v3255
    %v3331 = vpop.xlane.xlu0 %3330
    %3332 = vmax.xlane.f32.xlu0 %v3256
    %v3333 = vpop.xlane.xlu0 %3332
    %3334 = vmax.xlane.f32.xlu0 %v3257
    %v3335 = vpop.xlane.xlu0 %3334
    %3336 = vmax.xlane.f32.xlu0 %v3258
    %v3337 = vpop.xlane.xlu0 %3336
    %3338 = vmax.xlane.f32.xlu0 %v3259
    %v3339 = vpop.xlane.xlu0 %3338
    %3340 = vmax.xlane.f32.xlu0 %v3260
    %v3341 = vpop.xlane.xlu0 %3340
    %3342 = vmax.xlane.f32.xlu0 %v3261
    %v3343 = vpop.xlane.xlu0 %3342
    %3344 = vmax.xlane.f32.xlu0 %v3262
    %v3345 = vpop.xlane.xlu0 %3344
    %3346 = vmax.xlane.f32.xlu0 %v3263
    %v3347 = vpop.xlane.xlu0 %3346
    %3348 = vmax.xlane.f32.xlu0 %v3264
    %v3349 = vpop.xlane.xlu0 %3348
    %3350 = vmax.xlane.f32.xlu0 %v3265
    %v3351 = vpop.xlane.xlu0 %3350
    %3352 = vmax.xlane.f32.xlu0 %v3266
    %v3353 = vpop.xlane.xlu0 %3352
    %3354 = vmax.xlane.f32.xlu0 %v3267
    %v3355 = vpop.xlane.xlu0 %3354
    %3356 = vmax.xlane.f32.xlu0 %v3268
    %v3357 = vpop.xlane.xlu0 %3356
    %3358 = vmax.xlane.f32.xlu0 %v3269
    %v3359 = vpop.xlane.xlu0 %3358
    %3360 = vmax.xlane.f32.xlu0 %v3270
    %v3361 = vpop.xlane.xlu0 %3360
    %3362 = vmax.xlane.f32.xlu0 %v3271
    %v3363 = vpop.xlane.xlu0 %3362
    %3364 = vmax.xlane.f32.xlu0 %v3272
    %v3365 = vpop.xlane.xlu0 %3364
    %3366 = vmax.xlane.f32.xlu0 %v3273
    %v3367 = vpop.xlane.xlu0 %3366
    %3368 = vmax.xlane.f32.xlu0 %v3274
    %v3369 = vpop.xlane.xlu0 %3368
    %3370 = vmax.xlane.f32.xlu0 %v3275
    %v3371 = vpop.xlane.xlu0 %3370
    %v3372 = vsub.f32 %v3228, %v3277
    %v3373 = vsub.f32 %v3229, %v3279
    %v3374 = vsub.f32 %v3230, %v3281
    %v3375 = vsub.f32 %v3231, %v3283
    %v3376 = vsub.f32 %v3232, %v3285
    %v3377 = vsub.f32 %v3233, %v3287
    %v3378 = vsub.f32 %v3234, %v3289
    %v3379 = vsub.f32 %v3235, %v3291
    %v3380 = vsub.f32 %v3236, %v3293
    %v3381 = vsub.f32 %v3237, %v3295
    %v3382 = vsub.f32 %v3238, %v3297
    %v3383 = vsub.f32 %v3239, %v3299
    %v3384 = vsub.f32 %v3240, %v3301
    %v3385 = vsub.f32 %v3241, %v3303
    %v3386 = vsub.f32 %v3242, %v3305
    %v3387 = vsub.f32 %v3243, %v3307
    %v3388 = vsub.f32 %v3244, %v3309
    %v3389 = vsub.f32 %v3245, %v3311
    %v3390 = vsub.f32 %v3246, %v3313
    %v3391 = vsub.f32 %v3247, %v3315
    %v3392 = vsub.f32 %v3248, %v3317
    %v3393 = vsub.f32 %v3249, %v3319
    %v3394 = vsub.f32 %v3250, %v3321
    %v3395 = vsub.f32 %v3251, %v3323
    %v3396 = vsub.f32 %v3252, %v3325
    %v3397 = vsub.f32 %v3253, %v3327
    %v3398 = vsub.f32 %v3254, %v3329
    %v3399 = vsub.f32 %v3255, %v3331
    %v3400 = vsub.f32 %v3256, %v3333
    %v3401 = vsub.f32 %v3257, %v3335
    %v3402 = vsub.f32 %v3258, %v3337
    %v3403 = vsub.f32 %v3259, %v3339
    %v3404 = vsub.f32 %v3260, %v3341
    %v3405 = vsub.f32 %v3261, %v3343
    %v3406 = vsub.f32 %v3262, %v3345
    %v3407 = vsub.f32 %v3263, %v3347
    %v3408 = vsub.f32 %v3264, %v3349
    %v3409 = vsub.f32 %v3265, %v3351
    %v3410 = vsub.f32 %v3266, %v3353
    %v3411 = vsub.f32 %v3267, %v3355
    %v3412 = vsub.f32 %v3268, %v3357
    %v3413 = vsub.f32 %v3269, %v3359
    %v3414 = vsub.f32 %v3270, %v3361
    %v3415 = vsub.f32 %v3271, %v3363
    %v3416 = vsub.f32 %v3272, %v3365
    %v3417 = vsub.f32 %v3273, %v3367
    %v3418 = vsub.f32 %v3274, %v3369
    %v3419 = vsub.f32 %v3275, %v3371
    %v3420 = vmul.f32 %v3372, 1.442695
    %v3421 = vpow.pop %v3420
    %v3422 = vmul.f32 %v3373, 1.442695
    %v3423 = vpow.pop %v3422
    %v3424 = vmul.f32 %v3374, 1.442695
    %v3425 = vpow.pop %v3424
    %v3426 = vmul.f32 %v3375, 1.442695
    %v3427 = vpow.pop %v3426
    %v3428 = vmul.f32 %v3376, 1.442695
    %v3429 = vpow.pop %v3428
    %v3430 = vmul.f32 %v3377, 1.442695
    %v3431 = vpow.pop %v3430
    %v3432 = vmul.f32 %v3378, 1.442695
    %v3433 = vpow.pop %v3432
    %v3434 = vmul.f32 %v3379, 1.442695
    %v3435 = vpow.pop %v3434
    %v3436 = vmul.f32 %v3380, 1.442695
    %v3437 = vpow.pop %v3436
    %v3438 = vmul.f32 %v3381, 1.442695
    %v3439 = vpow.pop %v3438
    %v3440 = vmul.f32 %v3382, 1.442695
    %v3441 = vpow.pop %v3440
    %v3442 = vmul.f32 %v3383, 1.442695
    %v3443 = vpow.pop %v3442
    %v3444 = vmul.f32 %v3384, 1.442695
    %v3445 = vpow.pop %v3444
    %v3446 = vmul.f32 %v3385, 1.442695
    %v3447 = vpow.pop %v3446
    %v3448 = vmul.f32 %v3386, 1.442695
    %v3449 = vpow.pop %v3448
    %v3450 = vmul.f32 %v3387, 1.442695
    %v3451 = vpow.pop %v3450
    %v3452 = vmul.f32 %v3388, 1.442695
    %v3453 = vpow.pop %v3452
    %v3454 = vmul.f32 %v3389, 1.442695
    %v3455 = vpow.pop %v3454
    %v3456 = vmul.f32 %v3390, 1.442695
    %v3457 = vpow.pop %v3456
    %v3458 = vmul.f32 %v3391, 1.442695
    %v3459 = vpow.pop %v3458
    %v3460 = vmul.f32 %v3392, 1.442695
    %v3461 = vpow.pop %v3460
    %v3462 = vmul.f32 %v3393, 1.442695
    %v3463 = vpow.pop %v3462
    %v3464 = vmul.f32 %v3394, 1.442695
    %v3465 = vpow.pop %v3464
    %v3466 = vmul.f32 %v3395, 1.442695
    %v3467 = vpow.pop %v3466
    %v3468 = vmul.f32 %v3396, 1.442695
    %v3469 = vpow.pop %v3468
    %v3470 = vmul.f32 %v3397, 1.442695
    %v3471 = vpow.pop %v3470
    %v3472 = vmul.f32 %v3398, 1.442695
    %v3473 = vpow.pop %v3472
    %v3474 = vmul.f32 %v3399, 1.442695
    %v3475 = vpow.pop %v3474
    %v3476 = vmul.f32 %v3400, 1.442695
    %v3477 = vpow.pop %v3476
    %v3478 = vmul.f32 %v3401, 1.442695
    %v3479 = vpow.pop %v3478
    %v3480 = vmul.f32 %v3402, 1.442695
    %v3481 = vpow.pop %v3480
    %v3482 = vmul.f32 %v3403, 1.442695
    %v3483 = vpow.pop %v3482
    %v3484 = vmul.f32 %v3404, 1.442695
    %v3485 = vpow.pop %v3484
    %v3486 = vmul.f32 %v3405, 1.442695
    %v3487 = vpow.pop %v3486
    %v3488 = vmul.f32 %v3406, 1.442695
    %v3489 = vpow.pop %v3488
    %v3490 = vmul.f32 %v3407, 1.442695
    %v3491 = vpow.pop %v3490
    %v3492 = vmul.f32 %v3408, 1.442695
    %v3493 = vpow.pop %v3492
    %v3494 = vmul.f32 %v3409, 1.442695
    %v3495 = vpow.pop %v3494
    %v3496 = vmul.f32 %v3410, 1.442695
    %v3497 = vpow.pop %v3496
    %v3498 = vmul.f32 %v3411, 1.442695
    %v3499 = vpow.pop %v3498
    %v3500 = vmul.f32 %v3412, 1.442695
    %v3501 = vpow.pop %v3500
    %v3502 = vmul.f32 %v3413, 1.442695
    %v3503 = vpow.pop %v3502
    %v3504 = vmul.f32 %v3414, 1.442695
    %v3505 = vpow.pop %v3504
    %v3506 = vmul.f32 %v3415, 1.442695
    %v3507 = vpow.pop %v3506
    %v3508 = vmul.f32 %v3416, 1.442695
    %v3509 = vpow.pop %v3508
    %v3510 = vmul.f32 %v3417, 1.442695
    %v3511 = vpow.pop %v3510
    %v3512 = vmul.f32 %v3418, 1.442695
    %v3513 = vpow.pop %v3512
    %v3514 = vmul.f32 %v3419, 1.442695
    %v3515 = vpow.pop %v3514
    %v3516 = vsel %vm3227, %v3421, 0.0
    %v3517 = vsel %vm3227, %v3423, 0.0
    %v3518 = vsel %vm3227, %v3425, 0.0
    %v3519 = vsel %vm3227, %v3427, 0.0
    %v3520 = vsel %vm3227, %v3429, 0.0
    %v3521 = vsel %vm3227, %v3431, 0.0
    %v3522 = vsel %vm3227, %v3433, 0.0
    %v3523 = vsel %vm3227, %v3435, 0.0
    %v3524 = vsel %vm3227, %v3437, 0.0
    %v3525 = vsel %vm3227, %v3439, 0.0
    %v3526 = vsel %vm3227, %v3441, 0.0
    %v3527 = vsel %vm3227, %v3443, 0.0
    %v3528 = vsel %vm3227, %v3445, 0.0
    %v3529 = vsel %vm3227, %v3447, 0.0
    %v3530 = vsel %vm3227, %v3449, 0.0
    %v3531 = vsel %vm3227, %v3451, 0.0
    %v3532 = vsel %vm3227, %v3453, 0.0
    %v3533 = vsel %vm3227, %v3455, 0.0
    %v3534 = vsel %vm3227, %v3457, 0.0
    %v3535 = vsel %vm3227, %v3459, 0.0
    %v3536 = vsel %vm3227, %v3461, 0.0
    %v3537 = vsel %vm3227, %v3463, 0.0
    %v3538 = vsel %vm3227, %v3465, 0.0
    %v3539 = vsel %vm3227, %v3467, 0.0
    %v3540 = vsel %vm3227, %v3469, 0.0
    %v3541 = vsel %vm3227, %v3471, 0.0
    %v3542 = vsel %vm3227, %v3473, 0.0
    %v3543 = vsel %vm3227, %v3475, 0.0
    %v3544 = vsel %vm3227, %v3477, 0.0
    %v3545 = vsel %vm3227, %v3479, 0.0
    %v3546 = vsel %vm3227, %v3481, 0.0
    %v3547 = vsel %vm3227, %v3483, 0.0
    %v3548 = vsel %vm3227, %v3485, 0.0
    %v3549 = vsel %vm3227, %v3487, 0.0
    %v3550 = vsel %vm3227, %v3489, 0.0
    %v3551 = vsel %vm3227, %v3491, 0.0
    %v3552 = vsel %vm3227, %v3493, 0.0
    %v3553 = vsel %vm3227, %v3495, 0.0
    %v3554 = vsel %vm3227, %v3497, 0.0
    %v3555 = vsel %vm3227, %v3499, 0.0
    %v3556 = vsel %vm3227, %v3501, 0.0
    %v3557 = vsel %vm3227, %v3503, 0.0
    %v3558 = vsel %vm3227, %v3505, 0.0
    %v3559 = vsel %vm3227, %v3507, 0.0
    %v3560 = vsel %vm3227, %v3509, 0.0
    %v3561 = vsel %vm3227, %v3511, 0.0
    %v3562 = vsel %vm3227, %v3513, 0.0
    %v3563 = vsel %vm3227, %v3515, 0.0
    %3564 = vadd.xlane.f32.xlu0 %v3516
    %v3565 = vpop.xlane.xlu0 %3564
    %3566 = vadd.xlane.f32.xlu0 %v3517
    %v3567 = vpop.xlane.xlu0 %3566
    %3568 = vadd.xlane.f32.xlu0 %v3518
    %v3569 = vpop.xlane.xlu0 %3568
    %3570 = vadd.xlane.f32.xlu0 %v3519
    %v3571 = vpop.xlane.xlu0 %3570
    %3572 = vadd.xlane.f32.xlu0 %v3520
    %v3573 = vpop.xlane.xlu0 %3572
    %3574 = vadd.xlane.f32.xlu0 %v3521
    %v3575 = vpop.xlane.xlu0 %3574
    %3576 = vadd.xlane.f32.xlu0 %v3522
    %v3577 = vpop.xlane.xlu0 %3576
    %3578 = vadd.xlane.f32.xlu0 %v3523
    %v3579 = vpop.xlane.xlu0 %3578
    %3580 = vadd.xlane.f32.xlu0 %v3524
    %v3581 = vpop.xlane.xlu0 %3580
    %3582 = vadd.xlane.f32.xlu0 %v3525
    %v3583 = vpop.xlane.xlu0 %3582
    %3584 = vadd.xlane.f32.xlu0 %v3526
    %v3585 = vpop.xlane.xlu0 %3584
    %3586 = vadd.xlane.f32.xlu0 %v3527
    %v3587 = vpop.xlane.xlu0 %3586
    %3588 = vadd.xlane.f32.xlu0 %v3528
    %v3589 = vpop.xlane.xlu0 %3588
    %3590 = vadd.xlane.f32.xlu0 %v3529
    %v3591 = vpop.xlane.xlu0 %3590
    %3592 = vadd.xlane.f32.xlu0 %v3530
    %v3593 = vpop.xlane.xlu0 %3592
    %3594 = vadd.xlane.f32.xlu0 %v3531
    %v3595 = vpop.xlane.xlu0 %3594
    %3596 = vadd.xlane.f32.xlu0 %v3532
    %v3597 = vpop.xlane.xlu0 %3596
    %3598 = vadd.xlane.f32.xlu0 %v3533
    %v3599 = vpop.xlane.xlu0 %3598
    %3600 = vadd.xlane.f32.xlu0 %v3534
    %v3601 = vpop.xlane.xlu0 %3600
    %3602 = vadd.xlane.f32.xlu0 %v3535
    %v3603 = vpop.xlane.xlu0 %3602
    %3604 = vadd.xlane.f32.xlu0 %v3536
    %v3605 = vpop.xlane.xlu0 %3604
    %3606 = vadd.xlane.f32.xlu0 %v3537
    %v3607 = vpop.xlane.xlu0 %3606
    %3608 = vadd.xlane.f32.xlu0 %v3538
    %v3609 = vpop.xlane.xlu0 %3608
    %3610 = vadd.xlane.f32.xlu0 %v3539
    %v3611 = vpop.xlane.xlu0 %3610
    %3612 = vadd.xlane.f32.xlu0 %v3540
    %v3613 = vpop.xlane.xlu0 %3612
    %3614 = vadd.xlane.f32.xlu0 %v3541
    %v3615 = vpop.xlane.xlu0 %3614
    %3616 = vadd.xlane.f32.xlu0 %v3542
    %v3617 = vpop.xlane.xlu0 %3616
    %3618 = vadd.xlane.f32.xlu0 %v3543
    %v3619 = vpop.xlane.xlu0 %3618
    %3620 = vadd.xlane.f32.xlu0 %v3544
    %v3621 = vpop.xlane.xlu0 %3620
    %3622 = vadd.xlane.f32.xlu0 %v3545
    %v3623 = vpop.xlane.xlu0 %3622
    %3624 = vadd.xlane.f32.xlu0 %v3546
    %v3625 = vpop.xlane.xlu0 %3624
    %3626 = vadd.xlane.f32.xlu0 %v3547
    %v3627 = vpop.xlane.xlu0 %3626
    %3628 = vadd.xlane.f32.xlu0 %v3548
    %v3629 = vpop.xlane.xlu0 %3628
    %3630 = vadd.xlane.f32.xlu0 %v3549
    %v3631 = vpop.xlane.xlu0 %3630
    %3632 = vadd.xlane.f32.xlu0 %v3550
    %v3633 = vpop.xlane.xlu0 %3632
    %3634 = vadd.xlane.f32.xlu0 %v3551
    %v3635 = vpop.xlane.xlu0 %3634
    %3636 = vadd.xlane.f32.xlu0 %v3552
    %v3637 = vpop.xlane.xlu0 %3636
    %3638 = vadd.xlane.f32.xlu0 %v3553
    %v3639 = vpop.xlane.xlu0 %3638
    %3640 = vadd.xlane.f32.xlu0 %v3554
    %v3641 = vpop.xlane.xlu0 %3640
    %3642 = vadd.xlane.f32.xlu0 %v3555
    %v3643 = vpop.xlane.xlu0 %3642
    %3644 = vadd.xlane.f32.xlu0 %v3556
    %v3645 = vpop.xlane.xlu0 %3644
    %3646 = vadd.xlane.f32.xlu0 %v3557
    %v3647 = vpop.xlane.xlu0 %3646
    %3648 = vadd.xlane.f32.xlu0 %v3558
    %v3649 = vpop.xlane.xlu0 %3648
    %3650 = vadd.xlane.f32.xlu0 %v3559
    %v3651 = vpop.xlane.xlu0 %3650
    %3652 = vadd.xlane.f32.xlu0 %v3560
    %v3653 = vpop.xlane.xlu0 %3652
    %3654 = vadd.xlane.f32.xlu0 %v3561
    %v3655 = vpop.xlane.xlu0 %3654
    %3656 = vadd.xlane.f32.xlu0 %v3562
    %v3657 = vpop.xlane.xlu0 %3656
    %3658 = vadd.xlane.f32.xlu0 %v3563
    %v3659 = vpop.xlane.xlu0 %3658
    %v3660 = vlog2.pop %v3565
    %v3661 = vmul.f32 %v3660, 0.6931472
    %v3662 = vlog2.pop %v3567
    %v3663 = vmul.f32 %v3662, 0.6931472
    %v3664 = vlog2.pop %v3569
    %v3665 = vmul.f32 %v3664, 0.6931472
    %v3666 = vlog2.pop %v3571
    %v3667 = vmul.f32 %v3666, 0.6931472
    %v3668 = vlog2.pop %v3573
    %v3669 = vmul.f32 %v3668, 0.6931472
    %v3670 = vlog2.pop %v3575
    %v3671 = vmul.f32 %v3670, 0.6931472
    %v3672 = vlog2.pop %v3577
    %v3673 = vmul.f32 %v3672, 0.6931472
    %v3674 = vlog2.pop %v3579
    %v3675 = vmul.f32 %v3674, 0.6931472
    %v3676 = vlog2.pop %v3581
    %v3677 = vmul.f32 %v3676, 0.6931472
    %v3678 = vlog2.pop %v3583
    %v3679 = vmul.f32 %v3678, 0.6931472
    %v3680 = vlog2.pop %v3585
    %v3681 = vmul.f32 %v3680, 0.6931472
    %v3682 = vlog2.pop %v3587
    %v3683 = vmul.f32 %v3682, 0.6931472
    %v3684 = vlog2.pop %v3589
    %v3685 = vmul.f32 %v3684, 0.6931472
    %v3686 = vlog2.pop %v3591
    %v3687 = vmul.f32 %v3686, 0.6931472
    %v3688 = vlog2.pop %v3593
    %v3689 = vmul.f32 %v3688, 0.6931472
    %v3690 = vlog2.pop %v3595
    %v3691 = vmul.f32 %v3690, 0.6931472
    %v3692 = vlog2.pop %v3597
    %v3693 = vmul.f32 %v3692, 0.6931472
    %v3694 = vlog2.pop %v3599
    %v3695 = vmul.f32 %v3694, 0.6931472
    %v3696 = vlog2.pop %v3601
    %v3697 = vmul.f32 %v3696, 0.6931472
    %v3698 = vlog2.pop %v3603
    %v3699 = vmul.f32 %v3698, 0.6931472
    %v3700 = vlog2.pop %v3605
    %v3701 = vmul.f32 %v3700, 0.6931472
    %v3702 = vlog2.pop %v3607
    %v3703 = vmul.f32 %v3702, 0.6931472
    %v3704 = vlog2.pop %v3609
    %v3705 = vmul.f32 %v3704, 0.6931472
    %v3706 = vlog2.pop %v3611
    %v3707 = vmul.f32 %v3706, 0.6931472
    %v3708 = vlog2.pop %v3613
    %v3709 = vmul.f32 %v3708, 0.6931472
    %v3710 = vlog2.pop %v3615
    %v3711 = vmul.f32 %v3710, 0.6931472
    %v3712 = vlog2.pop %v3617
    %v3713 = vmul.f32 %v3712, 0.6931472
    %v3714 = vlog2.pop %v3619
    %v3715 = vmul.f32 %v3714, 0.6931472
    %v3716 = vlog2.pop %v3621
    %v3717 = vmul.f32 %v3716, 0.6931472
    %v3718 = vlog2.pop %v3623
    %v3719 = vmul.f32 %v3718, 0.6931472
    %v3720 = vlog2.pop %v3625
    %v3721 = vmul.f32 %v3720, 0.6931472
    %v3722 = vlog2.pop %v3627
    %v3723 = vmul.f32 %v3722, 0.6931472
    %v3724 = vlog2.pop %v3629
    %v3725 = vmul.f32 %v3724, 0.6931472
    %v3726 = vlog2.pop %v3631
    %v3727 = vmul.f32 %v3726, 0.6931472
    %v3728 = vlog2.pop %v3633
    %v3729 = vmul.f32 %v3728, 0.6931472
    %v3730 = vlog2.pop %v3635
    %v3731 = vmul.f32 %v3730, 0.6931472
    %v3732 = vlog2.pop %v3637
    %v3733 = vmul.f32 %v3732, 0.6931472
    %v3734 = vlog2.pop %v3639
    %v3735 = vmul.f32 %v3734, 0.6931472
    %v3736 = vlog2.pop %v3641
    %v3737 = vmul.f32 %v3736, 0.6931472
    %v3738 = vlog2.pop %v3643
    %v3739 = vmul.f32 %v3738, 0.6931472
    %v3740 = vlog2.pop %v3645
    %v3741 = vmul.f32 %v3740, 0.6931472
    %v3742 = vlog2.pop %v3647
    %v3743 = vmul.f32 %v3742, 0.6931472
    %v3744 = vlog2.pop %v3649
    %v3745 = vmul.f32 %v3744, 0.6931472
    %v3746 = vlog2.pop %v3651
    %v3747 = vmul.f32 %v3746, 0.6931472
    %v3748 = vlog2.pop %v3653
    %v3749 = vmul.f32 %v3748, 0.6931472
    %v3750 = vlog2.pop %v3655
    %v3751 = vmul.f32 %v3750, 0.6931472
    %v3752 = vlog2.pop %v3657
    %v3753 = vmul.f32 %v3752, 0.6931472
    %v3754 = vlog2.pop %v3659
    %v3755 = vmul.f32 %v3754, 0.6931472
    %v3756 = vsub.f32 %v3372, %v3661
    %v3757 = vsub.f32 %v3373, %v3663
    %v3758 = vsub.f32 %v3374, %v3665
    %v3759 = vsub.f32 %v3375, %v3667
    %v3760 = vsub.f32 %v3376, %v3669
    %v3761 = vsub.f32 %v3377, %v3671
    %v3762 = vsub.f32 %v3378, %v3673
    %v3763 = vsub.f32 %v3379, %v3675
    %v3764 = vsub.f32 %v3380, %v3677
    %v3765 = vsub.f32 %v3381, %v3679
    %v3766 = vsub.f32 %v3382, %v3681
    %v3767 = vsub.f32 %v3383, %v3683
    %v3768 = vsub.f32 %v3384, %v3685
    %v3769 = vsub.f32 %v3385, %v3687
    %v3770 = vsub.f32 %v3386, %v3689
    %v3771 = vsub.f32 %v3387, %v3691
    %v3772 = vsub.f32 %v3388, %v3693
    %v3773 = vsub.f32 %v3389, %v3695
    %v3774 = vsub.f32 %v3390, %v3697
    %v3775 = vsub.f32 %v3391, %v3699
    %v3776 = vsub.f32 %v3392, %v3701
    %v3777 = vsub.f32 %v3393, %v3703
    %v3778 = vsub.f32 %v3394, %v3705
    %v3779 = vsub.f32 %v3395, %v3707
    %v3780 = vsub.f32 %v3396, %v3709
    %v3781 = vsub.f32 %v3397, %v3711
    %v3782 = vsub.f32 %v3398, %v3713
    %v3783 = vsub.f32 %v3399, %v3715
    %v3784 = vsub.f32 %v3400, %v3717
    %v3785 = vsub.f32 %v3401, %v3719
    %v3786 = vsub.f32 %v3402, %v3721
    %v3787 = vsub.f32 %v3403, %v3723
    %v3788 = vsub.f32 %v3404, %v3725
    %v3789 = vsub.f32 %v3405, %v3727
    %v3790 = vsub.f32 %v3406, %v3729
    %v3791 = vsub.f32 %v3407, %v3731
    %v3792 = vsub.f32 %v3408, %v3733
    %v3793 = vsub.f32 %v3409, %v3735
    %v3794 = vsub.f32 %v3410, %v3737
    %v3795 = vsub.f32 %v3411, %v3739
    %v3796 = vsub.f32 %v3412, %v3741
    %v3797 = vsub.f32 %v3413, %v3743
    %v3798 = vsub.f32 %v3414, %v3745
    %v3799 = vsub.f32 %v3415, %v3747
    %v3800 = vsub.f32 %v3416, %v3749
    %v3801 = vsub.f32 %v3417, %v3751
    %v3802 = vsub.f32 %v3418, %v3753
    %v3803 = vsub.f32 %v3419, %v3755
    %3804 = vst [vmem:[#allocation11] sm:$0xff] %v3756
    %3805 = vst [vmem:[#allocation11 + $0x8] sm:$0xff] %v3757
    %3806 = vst [vmem:[#allocation11 + $0x10] sm:$0xff] %v3758
    %3807 = vst [vmem:[#allocation11 + $0x18] sm:$0xff] %v3759
    %3808 = vst [vmem:[#allocation11 + $0x20] sm:$0xff] %v3760
    %3809 = vst [vmem:[#allocation11 + $0x28] sm:$0xff] %v3761
    %3810 = vst [vmem:[#allocation11 + $0x30] sm:$0xff] %v3762
    %3811 = vst [vmem:[#allocation11 + $0x38] sm:$0xff] %v3763
    %3812 = vst [vmem:[#allocation11 + $0x40] sm:$0xff] %v3764
    %3813 = vst [vmem:[#allocation11 + $0x48] sm:$0xff] %v3765
    %3814 = vst [vmem:[#allocation11 + $0x50] sm:$0xff] %v3766
    %3815 = vst [vmem:[#allocation11 + $0x58] sm:$0xff] %v3767
    %3816 = vst [vmem:[#allocation11 + $0x60] sm:$0xff] %v3768
    %3817 = vst [vmem:[#allocation11 + $0x68] sm:$0xff] %v3769
    %3818 = vst [vmem:[#allocation11 + $0x70] sm:$0xff] %v3770
    %3819 = vst [vmem:[#allocation11 + $0x78] sm:$0xff] %v3771
    %3820 = vst [vmem:[#allocation11 + $0x80] sm:$0xff] %v3772
    %3821 = vst [vmem:[#allocation11 + $0x88] sm:$0xff] %v3773
    %3822 = vst [vmem:[#allocation11 + $0x90] sm:$0xff] %v3774
    %3823 = vst [vmem:[#allocation11 + $0x98] sm:$0xff] %v3775
    %3824 = vst [vmem:[#allocation11 + $0xa0] sm:$0xff] %v3776
    %3825 = vst [vmem:[#allocation11 + $0xa8] sm:$0xff] %v3777
    %3826 = vst [vmem:[#allocation11 + $0xb0] sm:$0xff] %v3778
    %3827 = vst [vmem:[#allocation11 + $0xb8] sm:$0xff] %v3779
    %3828 = vst [vmem:[#allocation11 + $0xc0] sm:$0xff] %v3780
    %3829 = vst [vmem:[#allocation11 + $0xc8] sm:$0xff] %v3781
    %3830 = vst [vmem:[#allocation11 + $0xd0] sm:$0xff] %v3782
    %3831 = vst [vmem:[#allocation11 + $0xd8] sm:$0xff] %v3783
    %3832 = vst [vmem:[#allocation11 + $0xe0] sm:$0xff] %v3784
    %3833 = vst [vmem:[#allocation11 + $0xe8] sm:$0xff] %v3785
    %3834 = vst [vmem:[#allocation11 + $0xf0] sm:$0xff] %v3786
    %3835 = vst [vmem:[#allocation11 + $0xf8] sm:$0xff] %v3787
    %3836 = vst [vmem:[#allocation11 + $0x100] sm:$0xff] %v3788
    %3837 = vst [vmem:[#allocation11 + $0x108] sm:$0xff] %v3789
    %3838 = vst [vmem:[#allocation11 + $0x110] sm:$0xff] %v3790
    %3839 = vst [vmem:[#allocation11 + $0x118] sm:$0xff] %v3791
    %3840 = vst [vmem:[#allocation11 + $0x120] sm:$0xff] %v3792
    %3841 = vst [vmem:[#allocation11 + $0x128] sm:$0xff] %v3793
    %3842 = vst [vmem:[#allocation11 + $0x130] sm:$0xff] %v3794
    %3843 = vst [vmem:[#allocation11 + $0x138] sm:$0xff] %v3795
    %3844 = vst [vmem:[#allocation11 + $0x140] sm:$0xff] %v3796
    %3845 = vst [vmem:[#allocation11 + $0x148] sm:$0xff] %v3797
    %3846 = vst [vmem:[#allocation11 + $0x150] sm:$0xff] %v3798
    %3847 = vst [vmem:[#allocation11 + $0x158] sm:$0xff] %v3799
    %3848 = vst [vmem:[#allocation11 + $0x160] sm:$0xff] %v3800
    %3849 = vst [vmem:[#allocation11 + $0x168] sm:$0xff] %v3801
    %3850 = vst [vmem:[#allocation11 + $0x170] sm:$0xff] %v3802
    %3851 = vst [vmem:[#allocation11 + $0x178] sm:$0xff] %v3803
    // Predicated region
    $region54: #{tpu_custom_call.1} parent=1 // pred_check
      _
    $region55: #{tpu_custom_call.1} parent=1 // pred_check_branch
      %3853 = sbr.rel (0) target = $region57
    $region56: #{tpu_custom_call.1} parent=1 // pred_region
      %s3855 = ssub.s32 6144, 6144
      %3856 = vsyncadd [#allocation4], %s3855
      %s3857 = sshll.u32 [#allocation11], 4
      %s3858 = int_to_ptr.vmem [resolvable:$true] %s3857
      %3863 = dma.vmem_to_hbm [thread:$0]  %s3858, 6144, %s8, [#allocation4], 128, 128, 8
    $region57: #{tpu_custom_call.1} parent=1 // pred_fallthru
      _
    // Predicated region
    $region58: #{tpu_custom_call.1} parent=1 // pred_check
      _
    $region59: #{tpu_custom_call.1} parent=1 // pred_check_branch
      %3865 = sbr.rel (0) target = $region61
    $region60: #{tpu_custom_call.1} parent=1 // pred_region
      %3866 = dma.done [#allocation4], 6144
    $region61: #{tpu_custom_call.1} parent=1 // pred_fallthru
      _
    %3867 = vsyncpa [#allocation3], 1
    %3868 = vsyncpa [#allocation6], 1
    %3869 = vsyncpa [#allocation9], 1
    %3870 = vsyncpa [#allocation4], 1

</llo_original>
